<compile_context>
chip_gen: v7x
topology: tpu7x:2x2x1
jax: 0.10.0
libtpu: 0.0.40
codegen_flags: <defaults>
</compile_context>

<pallas_src>
import jax
import jax.numpy as jnp
from jax.experimental import pallas as pl
from jax.experimental.pallas import tpu as pltpu

EPS = 1e-5        # PyTorch BatchNorm1d default eps
IN_DIM = 2048
HID_DIM = 512
OUT_DIM = 257
OUT_PAD = 384     # 3 * 128 lanes -> unmasked vst in the epilogue


def _round_up(a, b):
    return -(-a // b) * b


def head_kernel(x_ref, w1_ref, c1_ref, w2_ref, c2_ref, out_ref):
    # BN1(2048) + Dropout(eval) + Linear(2048->512) + BN2(512), all folded into
    # (w1', c1'); bf16 operands on the MXU, f32 accumulation.
    feats = x_ref[...]                                            # (tile_n, 2048) f32
    h = jnp.dot(feats.astype(jnp.bfloat16), w1_ref[...],
                preferred_element_type=jnp.float32) + c1_ref[...]
    h = jnp.maximum(h, 0.0)                                       # ReLU(inplace)

    # Dropout(eval) + Linear(512->257) (padded to 384 lanes, zero extra cols).
    out_ref[...] = (jnp.dot(h.astype(jnp.bfloat16), w2_ref[...],
                            preferred_element_type=jnp.float32)
                    + c2_ref[...]).astype(out_ref.dtype)


def _fold_params(p):
    """Fold BN1 into Linear1 and BN2 into Linear1's output scale/bias.

    w1' = s1[:,None] * w1 * s2[None,:]
    c1' = ((b1 - m1*s1) @ w1 + c1 - m2) * s2 + b2
    Second linear is zero-padded from 257 to OUT_PAD output lanes.
    """
    g1, b1 = p["g1"].reshape(-1), p["b1"].reshape(-1)
    m1, v1 = p["m1"].reshape(-1), p["v1"].reshape(-1)
    g2, b2 = p["g2"].reshape(-1), p["b2"].reshape(-1)
    m2, v2 = p["m2"].reshape(-1), p["v2"].reshape(-1)
    w1, c1 = p["w1"], p["c1"].reshape(-1)
    w2, c2 = p["w2"], p["c2"].reshape(1, -1)

    s1 = g1 * jax.lax.rsqrt(v1 + EPS)
    s2 = g2 * jax.lax.rsqrt(v2 + EPS)

    w1f = (s1[:, None] * w1) * s2[None, :]
    c1f = (((b1 - m1 * s1) @ w1 + c1 - m2) * s2 + b2).reshape(1, -1)

    pad = OUT_PAD - w2.shape[1]
    w2p = jnp.pad(w2, ((0, 0), (0, pad)))
    c2p = jnp.pad(c2, ((0, 0), (0, pad)))

    return {
        "w1": w1f.astype(jnp.bfloat16),
        "c1": c1f.astype(jnp.float32),
        "w2": w2p.astype(jnp.bfloat16),
        "c2": c2p.astype(jnp.float32),
    }


def model_ft_forward(x_nchw, params, tile_n=None):
    """x_nchw: (N, 2048, H, W) last backbone feature map (NCHW). Returns (N, 257) f32."""
    n, c = x_nchw.shape[0], x_nchw.shape[1]
    assert c == IN_DIM, "classifier head requires 2048 channels"

    # AdaptiveAvgPool2d(1) + x.view(-1, 2048) as ONE lane-friendly XLA reduce in
    # the wrapper: the kernel then sees a lane-dense (N, 2048) tensor instead of
    # a (N, 2048, hw) tile whose tiny spatial extent pads to 128 lanes in VMEM.
    feats = jnp.mean(x_nchw.reshape(n, c, -1).astype(jnp.float32), axis=-1)

    folded = _fold_params(params)

    n_pad8 = _round_up(n, 8)
    if tile_n is None:
        if n_pad8 >= 16:
            # Keep grid length >= 2 so ("parallel",) can shard across both
            # TensorCores on v7x, while targeting the full 128 MXU M-dimension.
            tile_n = min(128, (n_pad8 // 2) // 8 * 8)
        else:
            tile_n = n_pad8
    tile_n = max(8, tile_n)

    n_pad = _round_up(n, tile_n)
    if n_pad != n:
        feats = jnp.pad(feats, ((0, n_pad - n), (0, 0)))

    grid = (n_pad // tile_n,)

    # Advisory cost estimate so XLA can overlap this small head with neighbors.
    flops = 2 * n_pad * (IN_DIM * HID_DIM + HID_DIM * OUT_PAD)
    bytes_accessed = (n_pad * IN_DIM * 4                        # x (f32)
                      + folded["w1"].size * 2                   # w1 (bf16)
                      + folded["w2"].size * 2                   # w2 (bf16)
                      + folded["c1"].size * 4 + folded["c2"].size * 4
                      + n_pad * OUT_PAD * 4)                    # out (f32)

    # VMEM budget (double-buffered, tile_n=128): x 2 MiB + w1 4 MiB +
    # w2 0.75 MiB + out 0.4 MiB + biases ~0.04 MiB  ~= 7.2 MiB.  Fits v5e's
    # 16 MiB scoped default and v7x's 64 MiB physical VMEM with wide margin.
    out = pl.pallas_call(
        head_kernel,
        out_shape=jax.ShapeDtypeStruct((n_pad, OUT_PAD), jnp.float32),
        grid=grid,
        in_specs=[
            pl.BlockSpec((tile_n, IN_DIM), lambda i: (i, 0)),   # x tiles
            pl.BlockSpec(folded["w1"].shape, lambda i: (0, 0)), # resident weights
            pl.BlockSpec(folded["c1"].shape, lambda i: (0, 0)),
            pl.BlockSpec(folded["w2"].shape, lambda i: (0, 0)),
            pl.BlockSpec(folded["c2"].shape, lambda i: (0, 0)),
        ],
        out_specs=pl.BlockSpec((tile_n, OUT_PAD), lambda i: (i, 0)),
        compiler_params=pltpu.CompilerParams(
            dimension_semantics=("parallel",),                  # megacore on v7x
            vmem_limit_bytes=32 * 1024 * 1024),
        cost_estimate=pl.CostEstimate(flops=flops, transcendentals=0,
                                      bytes_accessed=bytes_accessed),
    )(feats, folded["w1"], folded["c1"], folded["w2"], folded["c2"])

    return out[:n, :OUT_DIM]


def init_params(key):
    """Deterministic synthetic parameters with the module's shapes."""
    ks = jax.random.split(key, 10)
    p = {}
    # BatchNorm1d(2048): gamma, beta, running_mean, running_var.
    p["g1"] = 1.0 + 0.1 * jax.random.normal(ks[0], (1, IN_DIM), jnp.float32)
    p["b1"] = 0.1 * jax.random.normal(ks[1], (1, IN_DIM), jnp.float32)
    p["m1"] = 0.1 * jax.random.normal(ks[2], (1, IN_DIM), jnp.float32)
    p["v1"] = jax.random.uniform(ks[3], (1, IN_DIM), jnp.float32, 0.5, 1.5)
    # Linear(2048, 512): stored as (in, out) = PyTorch weight transposed.
    p["w1"] = 0.02 * jax.random.normal(ks[4], (IN_DIM, HID_DIM), jnp.float32)
    p["c1"] = 0.01 * jax.random.normal(ks[5], (1, HID_DIM), jnp.float32)
    # BatchNorm1d(512).
    p["g2"] = 1.0 + 0.1 * jax.random.normal(ks[6], (1, HID_DIM), jnp.float32)
    p["b2"] = 0.1 * jax.random.normal(ks[7], (1, HID_DIM), jnp.float32)
    p["m2"] = 0.1 * jax.random.normal(ks[8], (1, HID_DIM), jnp.float32)
    p["v2"] = jax.random.uniform(ks[9], (1, HID_DIM), jnp.float32, 0.5, 1.5)
    # Linear(512, 257).
    k2 = jax.random.split(jax.random.PRNGKey(1), 2)
    p["w2"] = 0.02 * jax.random.normal(k2[0], (HID_DIM, OUT_DIM), jnp.float32)
    p["c2"] = 0.01 * jax.random.normal(k2[1], (1, OUT_DIM), jnp.float32)
    return p


def reference_forward(x_nchw, p):
    """Pure-JAX (f32) reference matching the PyTorch eval-mode head."""
    n = x_nchw.shape[0]
    feats = jnp.mean(x_nchw.reshape(n, IN_DIM, -1), axis=-1)
    s1 = p["g1"].reshape(-1) * jax.lax.rsqrt(p["v1"].reshape(-1) + EPS)
    y = (feats - p["m1"].reshape(-1)) * s1 + p["b1"].reshape(-1)
    h = y @ p["w1"] + p["c1"].reshape(-1)
    s2 = p["g2"].reshape(-1) * jax.lax.rsqrt(p["v2"].reshape(-1) + EPS)
    h = (h - p["m2"].reshape(-1)) * s2 + p["b2"].reshape(-1)
    h = jnp.maximum(h, 0.0)
    return h @ p["w2"] + p["c2"].reshape(-1)


if __name__ == "__main__":
    key = jax.random.PRNGKey(0)
    kx, kp = jax.random.split(key)

    # Small, shape-consistent input: last ResNeXt stage output (N, 2048, 4, 4).
    # N=16 exercises the grid>=2 (megacore) path: tile_n=8, 2 grid steps.
    x = jax.random.normal(kx, (16, 2048, 4, 4), jnp.float32)
    params = init_params(kp)

    out = model_ft_forward(x, params)
    out = jax.block_until_ready(out)

    assert out.shape == (16, OUT_DIM) and out.dtype == jnp.float32
    assert bool(jnp.all(jnp.isfinite(out)))

    ref = reference_forward(x, params)
    max_err = float(jnp.max(jnp.abs(out - ref)))
    assert max_err < 3e-2, f"max abs err {max_err}"

    print("KERNEL_OK")
</pallas_src>

<mosaic_0001>
module attributes {stable_mosaic.version = 11 : i64} {
  func.func @head_kernel(%arg0: i32, %arg1: memref<8x2048xf32, #tpu.memory_space<vmem>>, %arg2: memref<2048x512xbf16, #tpu.memory_space<vmem>>, %arg3: memref<1x512xf32, #tpu.memory_space<vmem>>, %arg4: memref<512x384xbf16, #tpu.memory_space<vmem>>, %arg5: memref<1x384xf32, #tpu.memory_space<vmem>>, %arg6: memref<8x384xf32, #tpu.memory_space<vmem>>) attributes {dimension_semantics = [#tpu.dimension_semantics<parallel>], iteration_bounds = array<i64: 2>, scalar_prefetch = 0 : i64, scratch_operands = 0 : i64, tpu.core_type = #tpu.core_type<tc>, window_params = [{transform_indices = @transform_0, window_bounds = array<i64: 8, 2048>}, {pipeline_mode = #tpu.pipeline_mode<synchronous>, transform_indices = @transform_1, window_bounds = array<i64: 2048, 512>}, {pipeline_mode = #tpu.pipeline_mode<synchronous>, transform_indices = @transform_2, window_bounds = array<i64: 1, 512>}, {pipeline_mode = #tpu.pipeline_mode<synchronous>, transform_indices = @transform_3, window_bounds = array<i64: 512, 384>}, {pipeline_mode = #tpu.pipeline_mode<synchronous>, transform_indices = @transform_4, window_bounds = array<i64: 1, 384>}, {transform_indices = @transform_5, window_bounds = array<i64: 8, 384>}]} {
    %c0 = arith.constant 0 : index
    %c0_0 = arith.constant 0 : index
    %0 = vector.load %arg1[%c0, %c0_0] : memref<8x2048xf32, #tpu.memory_space<vmem>>, vector<8x2048xf32>
    %1 = arith.truncf %0 : vector<8x2048xf32> to vector<8x2048xbf16>
    %c0_1 = arith.constant 0 : index
    %c0_2 = arith.constant 0 : index
    %2 = vector.load %arg2[%c0_1, %c0_2] : memref<2048x512xbf16, #tpu.memory_space<vmem>>, vector<2048x512xbf16>
    %cst = arith.constant dense<0.000000e+00> : vector<8x512xf32>
    %3 = tpu.matmul %1, %2, %cst {dimension_numbers = #tpu.dot_dimension_numbers<[1], [0], [0], [1], [0, 0, 1, 1], [], []>} : vector<8x2048xbf16>, vector<2048x512xbf16>, vector<8x512xf32> -> vector<8x512xf32>
    %c0_3 = arith.constant 0 : index
    %c0_4 = arith.constant 0 : index
    %4 = vector.load %arg3[%c0_3, %c0_4] : memref<1x512xf32, #tpu.memory_space<vmem>>, vector<1x512xf32>
    %5 = vector.broadcast %4 : vector<1x512xf32> to vector<8x512xf32>
    %6 = arith.addf %3, %5 : vector<8x512xf32>
    %cst_5 = arith.constant 0.000000e+00 : f32
    %7 = vector.broadcast %cst_5 : f32 to vector<8x512xf32>
    %8 = arith.maximumf %6, %7 : vector<8x512xf32>
    %9 = arith.truncf %8 : vector<8x512xf32> to vector<8x512xbf16>
    %c0_6 = arith.constant 0 : index
    %c0_7 = arith.constant 0 : index
    %10 = vector.load %arg4[%c0_6, %c0_7] : memref<512x384xbf16, #tpu.memory_space<vmem>>, vector<512x384xbf16>
    %cst_8 = arith.constant dense<0.000000e+00> : vector<8x384xf32>
    %11 = tpu.matmul %9, %10, %cst_8 {dimension_numbers = #tpu.dot_dimension_numbers<[1], [0], [0], [1], [0, 0, 1, 1], [], []>} : vector<8x512xbf16>, vector<512x384xbf16>, vector<8x384xf32> -> vector<8x384xf32>
    %c0_9 = arith.constant 0 : index
    %c0_10 = arith.constant 0 : index
    %12 = vector.load %arg5[%c0_9, %c0_10] : memref<1x384xf32, #tpu.memory_space<vmem>>, vector<1x384xf32>
    %13 = vector.broadcast %12 : vector<1x384xf32> to vector<8x384xf32>
    %14 = arith.addf %11, %13 : vector<8x384xf32>
    %c0_11 = arith.constant 0 : index
    %c0_12 = arith.constant 0 : index
    %15 = vector.load %arg6[%c0_11, %c0_12] : memref<8x384xf32, #tpu.memory_space<vmem>>, vector<8x384xf32>
    tpu.vector_store %arg6[%c0_11, %c0_12], %14 {strides = array<i32>} : memref<8x384xf32, #tpu.memory_space<vmem>>, vector<8x384xf32>,
    return
  }
  func.func @transform_0(%arg0: i32) -> (i32, i32) {
    %c0_i32 = arith.constant 0 : i32
    %c0_i32_0 = arith.constant 0 : i32
    return %arg0, %c0_i32 : i32, i32
  }
  func.func @transform_1(%arg0: i32) -> (i32, i32) {
    %c0_i32 = arith.constant 0 : i32
    %c0_i32_0 = arith.constant 0 : i32
    %c0_i32_1 = arith.constant 0 : i32
    return %c0_i32, %c0_i32_0 : i32, i32
  }
  func.func @transform_2(%arg0: i32) -> (i32, i32) {
    %c0_i32 = arith.constant 0 : i32
    %c0_i32_0 = arith.constant 0 : i32
    %c0_i32_1 = arith.constant 0 : i32
    return %c0_i32, %c0_i32_0 : i32, i32
  }
  func.func @transform_3(%arg0: i32) -> (i32, i32) {
    %c0_i32 = arith.constant 0 : i32
    %c0_i32_0 = arith.constant 0 : i32
    %c0_i32_1 = arith.constant 0 : i32
    return %c0_i32, %c0_i32_0 : i32, i32
  }
  func.func @transform_4(%arg0: i32) -> (i32, i32) {
    %c0_i32 = arith.constant 0 : i32
    %c0_i32_0 = arith.constant 0 : i32
    %c0_i32_1 = arith.constant 0 : i32
    return %c0_i32, %c0_i32_0 : i32, i32
  }
  func.func @transform_5(%arg0: i32) -> (i32, i32) {
    %c0_i32 = arith.constant 0 : i32
    %c0_i32_0 = arith.constant 0 : i32
    return %arg0, %c0_i32 : i32, i32
  }
}

</mosaic_0001>

<llo_original>
// kernel: tpu_custom_call.1
$region0: #{tpu_custom_call.1}
  #allocation0 [shape = 'u32[]', space=smem, size = 0x4, offset = 0x4, fixed_abs, tag = 'smem constant byte address 0x4 - core index']
  #allocation1 [shape = 'u32[144,128]{1,0:T(1,128)}', space=vmem, size = 0x12000, scoped, tag = 'internal scratch']
  %s0 = inlined_call_operand.hbm [shape: f32[16,2048], index: 0, kind: input, shape index: {}]
  %s1 = inlined_call_operand.hbm [shape: bf16[2048,512], index: 1, kind: input, shape index: {}]
  %s2 = inlined_call_operand.hbm [shape: f32[1,512], index: 2, kind: input, shape index: {}]
  %s3 = inlined_call_operand.hbm [shape: bf16[512,384], index: 3, kind: input, shape index: {}]
  %s4 = inlined_call_operand.hbm [shape: f32[1,384], index: 4, kind: input, shape index: {}]
  %s5 = inlined_call_operand.hbm [shape: f32[16,384], index: 5, kind: output, shape index: {}]
  %s6 = sld [smem:[#allocation0]]
  $region73: #{tpu_custom_call.1} parent=0
    _
  %s8 = ssub.s32 1, %s6
  %s9 = scalar_select 0, %s8, %s6
  $region1: #{tpu_custom_call.1} parent=0
    #allocation2 [shape = 'u8[131072]{0}', space=vmem, size = 0x20000, scoped, tag = 'input window, operand 0']
    #allocation3 [shape = 's32[2]{0}', space=sflag, size = 0x8, scoped, tag = 'scoped memory for tpu_custom_call.1']
    #allocation4 [shape = 's32[2]{0}', space=sflag, size = 0x8, scoped, tag = 'scoped memory for tpu_custom_call.1']
    #allocation5 [shape = 'u8[2097152]{0}', space=vmem, size = 0x200000, scoped, tag = 'input window, operand 1, single buffered']
    #allocation6 [shape = 's32[1]{0}', space=sflag, size = 0x4, scoped, tag = 'scoped memory for tpu_custom_call.1']
    #allocation7 [shape = 'u8[2048]{0}', space=vmem, size = 0x800, scoped, tag = 'input window, operand 2, single buffered']
    #allocation8 [shape = 'u8[393216]{0}', space=vmem, size = 0x60000, scoped, tag = 'input window, operand 3, single buffered']
    #allocation9 [shape = 's32[1]{0}', space=sflag, size = 0x4, scoped, tag = 'scoped memory for tpu_custom_call.1']
    #allocation10 [shape = 'u8[1536]{0}', space=vmem, size = 0x800, scoped, tag = 'input window, operand 4, single buffered']
    #allocation11 [shape = 'u8[24576]{0}', space=vmem, size = 0x6000, scoped, tag = 'output window, operand 0']
    %10 = vsyncpa [#allocation3], 0
    %s11 = scalar_lea.sflag [#allocation3], 1
    %12 = vsyncpa %s11, 0
    %13 = vsyncpa [#allocation6], 0
    %14 = vsyncpa [#allocation9], 0
    %15 = vsyncpa [#allocation4], 0
    %s16 = scalar_lea.sflag [#allocation4], 1
    %17 = vsyncpa %s16, 0
    loop: start=0, step=1, limit=4
    $region2: #{tpu_custom_call.1} parent=1 // loop_pre_header
      _
    $region3: #{tpu_custom_call.1} parent=1 // loop_header
      %s19 = sphi 0, %s23
      %p20 = scmp.ge.s32.totalorder %s19, 4
      %s29 = sphi 0, %s31
      %s32 = sphi 0, %s29
      %s33 = sphi 0, %s32
      %s49 = sphi 0, %s33
      %s53 = sphi 0, %s53
      %s55 = sphi 0, %s53
      %s56 = sphi 0, %s55
      %s70 = sphi 0, %s56
      %s74 = sphi 0, %s74
      %s76 = sphi 0, %s74
      %s77 = sphi 0, %s76
      %s91 = sphi 0, %s77
      %s95 = sphi 0, %s95
      %s97 = sphi 0, %s95
      %s98 = sphi 0, %s97
      %s112 = sphi 0, %s98
      %s116 = sphi 0, %s116
      %s118 = sphi 0, %s116
      %s119 = sphi 0, %s118
      %s133 = sphi 0, %s119
      %s139 = sphi 0, %s141
      %s142 = sphi 0, %s139
      %s143 = sphi 0, %s142
      %s159 = sphi 0, %s143
    $region4: #{tpu_custom_call.1} parent=1 // loop_header_branch
      %22 = sbr.rel (%p20) target = $region8
    $region5: #{tpu_custom_call.1} parent=1 // loop_body
      %s24 = ssub.s32 %s19, 1
      %s25 = ssub.s32 %s19, 2
      %s26 = sadd.s32 %s19, 1
      %s27 = ssub.s32 %s19, %s26
      %p28 = scmp.eq.s32.totalorder %s27, 0
      %s30 = sadd.s32 %s29, 1
      %s31 = scalar_select %p28, %s29, %s30
      %p34 = pneg %p28
      %p35 = scmp.eq.s32.totalorder %s19, 1
      %p36 = por %p34, %p35
      %p37 = scmp.ne.s32.totalorder %s29, %s32
      %p38 = scmp.eq.s32.totalorder %s19, 0
      %p39 = por %p37, %p38
      %p40 = scmp.ne.s32.totalorder %s29, %s32
      %p41 = scmp.eq.s32.totalorder %s24, 1
      %p42 = por %p40, %p41
      %p43 = scmp.ne.s32.totalorder %s32, %s33
      %p44 = scmp.eq.s32.totalorder %s24, 0
      %p45 = por %p43, %p44
      %p46 = scmp.ne.s32.totalorder %s32, %s33
      %p47 = scmp.eq.s32.totalorder %s25, 1
      %p48 = por %p46, %p47
      %p50 = scmp.ne.s32.totalorder %s33, %s49
      %p51 = scmp.eq.s32.totalorder %s25, 0
      %p52 = por %p50, %p51
      %s54 = sadd.s32 %s53, 1
      %p57 = scmp.eq.s32.totalorder %s19, 1
      %p58 = scmp.ne.s32.totalorder %s53, %s55
      %p59 = scmp.eq.s32.totalorder %s19, 0
      %p60 = por %p58, %p59
      %p61 = scmp.ne.s32.totalorder %s53, %s55
      %p62 = scmp.eq.s32.totalorder %s24, 1
      %p63 = por %p61, %p62
      %p64 = scmp.ne.s32.totalorder %s55, %s56
      %p65 = scmp.eq.s32.totalorder %s24, 0
      %p66 = por %p64, %p65
      %p67 = scmp.ne.s32.totalorder %s55, %s56
      %p68 = scmp.eq.s32.totalorder %s25, 1
      %p69 = por %p67, %p68
      %p71 = scmp.ne.s32.totalorder %s56, %s70
      %p72 = scmp.eq.s32.totalorder %s25, 0
      %p73 = por %p71, %p72
      %s75 = sadd.s32 %s74, 1
      %p78 = scmp.eq.s32.totalorder %s19, 1
      %p79 = scmp.ne.s32.totalorder %s74, %s76
      %p80 = scmp.eq.s32.totalorder %s19, 0
      %p81 = por %p79, %p80
      %p82 = scmp.ne.s32.totalorder %s74, %s76
      %p83 = scmp.eq.s32.totalorder %s24, 1
      %p84 = por %p82, %p83
      %p85 = scmp.ne.s32.totalorder %s76, %s77
      %p86 = scmp.eq.s32.totalorder %s24, 0
      %p87 = por %p85, %p86
      %p88 = scmp.ne.s32.totalorder %s76, %s77
      %p89 = scmp.eq.s32.totalorder %s25, 1
      %p90 = por %p88, %p89
      %p92 = scmp.ne.s32.totalorder %s77, %s91
      %p93 = scmp.eq.s32.totalorder %s25, 0
      %p94 = por %p92, %p93
      %s96 = sadd.s32 %s95, 1
      %p99 = scmp.eq.s32.totalorder %s19, 1
      %p100 = scmp.ne.s32.totalorder %s95, %s97
      %p101 = scmp.eq.s32.totalorder %s19, 0
      %p102 = por %p100, %p101
      %p103 = scmp.ne.s32.totalorder %s95, %s97
      %p104 = scmp.eq.s32.totalorder %s24, 1
      %p105 = por %p103, %p104
      %p106 = scmp.ne.s32.totalorder %s97, %s98
      %p107 = scmp.eq.s32.totalorder %s24, 0
      %p108 = por %p106, %p107
      %p109 = scmp.ne.s32.totalorder %s97, %s98
      %p110 = scmp.eq.s32.totalorder %s25, 1
      %p111 = por %p109, %p110
      %p113 = scmp.ne.s32.totalorder %s98, %s112
      %p114 = scmp.eq.s32.totalorder %s25, 0
      %p115 = por %p113, %p114
      %s117 = sadd.s32 %s116, 1
      %p120 = scmp.eq.s32.totalorder %s19, 1
      %p121 = scmp.ne.s32.totalorder %s116, %s118
      %p122 = scmp.eq.s32.totalorder %s19, 0
      %p123 = por %p121, %p122
      %p124 = scmp.ne.s32.totalorder %s116, %s118
      %p125 = scmp.eq.s32.totalorder %s24, 1
      %p126 = por %p124, %p125
      %p127 = scmp.ne.s32.totalorder %s118, %s119
      %p128 = scmp.eq.s32.totalorder %s24, 0
      %p129 = por %p127, %p128
      %p130 = scmp.ne.s32.totalorder %s118, %s119
      %p131 = scmp.eq.s32.totalorder %s25, 1
      %p132 = por %p130, %p131
      %p134 = scmp.ne.s32.totalorder %s119, %s133
      %p135 = scmp.eq.s32.totalorder %s25, 0
      %p136 = por %p134, %p135
      %s137 = ssub.s32 %s19, %s26
      %p138 = scmp.eq.s32.totalorder %s137, 0
      %s140 = sadd.s32 %s139, 1
      %s141 = scalar_select %p138, %s139, %s140
      %p144 = pneg %p138
      %p145 = scmp.eq.s32.totalorder %s19, 1
      %p146 = por %p144, %p145
      %p147 = scmp.ne.s32.totalorder %s139, %s142
      %p148 = scmp.eq.s32.totalorder %s19, 0
      %p149 = por %p147, %p148
      %p150 = scmp.ne.s32.totalorder %s139, %s142
      %p151 = scmp.eq.s32.totalorder %s24, 1
      %p152 = por %p150, %p151
      %p153 = scmp.ne.s32.totalorder %s142, %s143
      %p154 = scmp.eq.s32.totalorder %s24, 0
      %p155 = por %p153, %p154
      %p156 = scmp.ne.s32.totalorder %s142, %s143
      %p157 = scmp.eq.s32.totalorder %s25, 1
      %p158 = por %p156, %p157
      %p160 = scmp.ne.s32.totalorder %s143, %s159
      %p161 = scmp.eq.s32.totalorder %s25, 0
      %p162 = por %p160, %p161
      %p163 = scmp.le.s32.totalorder 1, %s19
      %p164 = scmp.lt.s32.totalorder %s19, 3
      %p165 = pnand %p163, %p164
      %p166 = pneg %p165
      // Predicated region
      $region9: #{tpu_custom_call.1} parent=5 // pred_check
        _
      $region10: #{tpu_custom_call.1} parent=5 // pred_check_branch
        %168 = sbr.rel (%p165) target = $region12
      $region11: #{tpu_custom_call.1} parent=5 // pred_region
        %s169 = ssub.s32 %s19, 1
        // Predicated region
        $region13: #{tpu_custom_call.1} parent=11 // pred_check
          %p170 = pneg %p66
        $region14: #{tpu_custom_call.1} parent=11 // pred_check_branch
          %172 = sbr.rel (%p170) target = $region16
        $region15: #{tpu_custom_call.1} parent=11 // pred_region
          %s174 = ssub.s32 65536, 65536
          %175 = vsyncadd [#allocation6], %s174
          %s176 = sshll.u32 [#allocation5], 4
          %s177 = int_to_ptr.vmem [resolvable:$true] %s176
          %182 = dma.hbm_to_vmem [thread:$0]  %s1, 65536, %s177, [#allocation6], 256, 256, 16
        $region16: #{tpu_custom_call.1} parent=11 // pred_fallthru
          _
        // Predicated region
        $region17: #{tpu_custom_call.1} parent=11 // pred_check
          %p183 = pneg %p87
        $region18: #{tpu_custom_call.1} parent=11 // pred_check_branch
          %185 = sbr.rel (%p183) target = $region20
        $region19: #{tpu_custom_call.1} parent=11 // pred_region
          %s187 = ssub.s32 64, 64
          %188 = vsyncadd [#allocation6], %s187
          %s190 = sshll.u32 [#allocation7], 4
          %s191 = int_to_ptr.vmem [resolvable:$true] %s190
          %193 = dma.hbm_to_vmem [thread:$0]  %s2, 64, %s191, [#allocation6]
        $region20: #{tpu_custom_call.1} parent=11 // pred_fallthru
          _
        // Predicated region
        $region21: #{tpu_custom_call.1} parent=11 // pred_check
          %p194 = pneg %p108
        $region22: #{tpu_custom_call.1} parent=11 // pred_check_branch
          %196 = sbr.rel (%p194) target = $region24
        $region23: #{tpu_custom_call.1} parent=11 // pred_region
          %s198 = ssub.s32 12288, 12288
          %199 = vsyncadd [#allocation9], %s198
          %s200 = sshll.u32 [#allocation8], 4
          %s201 = int_to_ptr.vmem [resolvable:$true] %s200
          %206 = dma.hbm_to_vmem [thread:$0]  %s3, 12288, %s201, [#allocation9], 192, 192, 12
        $region24: #{tpu_custom_call.1} parent=11 // pred_fallthru
          _
        // Predicated region
        $region25: #{tpu_custom_call.1} parent=11 // pred_check
          %p207 = pneg %p129
        $region26: #{tpu_custom_call.1} parent=11 // pred_check_branch
          %209 = sbr.rel (%p207) target = $region28
        $region27: #{tpu_custom_call.1} parent=11 // pred_region
          %s211 = ssub.s32 48, 48
          %212 = vsyncadd [#allocation9], %s211
          %s214 = sshll.u32 [#allocation10], 4
          %s215 = int_to_ptr.vmem [resolvable:$true] %s214
          %217 = dma.hbm_to_vmem [thread:$0]  %s4, 48, %s215, [#allocation9]
        $region28: #{tpu_custom_call.1} parent=11 // pred_fallthru
          _
      $region12: #{tpu_custom_call.1} parent=5 // pred_fallthru
        _
      %p218 = scmp.lt.s32.totalorder %s19, 2
      // Predicated region
      $region29: #{tpu_custom_call.1} parent=5 // pred_check
        %p219 = pneg %p218
      $region30: #{tpu_custom_call.1} parent=5 // pred_check_branch
        %221 = sbr.rel (%p219) target = $region32
      $region31: #{tpu_custom_call.1} parent=5 // pred_region
        // Predicated region
        $region33: #{tpu_custom_call.1} parent=31 // pred_check
          %p222 = pneg %p39
        $region34: #{tpu_custom_call.1} parent=31 // pred_check_branch
          %224 = sbr.rel (%p222) target = $region36
        $region35: #{tpu_custom_call.1} parent=31 // pred_region
          %s225 = sand.u32 %s29, 1
          %s226 = scalar_lea.sflag [#allocation3], %s225
          %s227 = sand.u32 %s29, 1
          %s228 = smul.addr %s227, 128
          %s229 = scalar_lea.vmem [#allocation2], %s228
          %s231 = ssub.s32 2048, 2048
          %232 = vsyncadd %s226, %s231
          %s233 = smul.addr %s19, 16
          %s234 = smul.addr %s233, 128
          %s235 = scalar_lea.hbm %s0, %s234
          %s237 = sshll.u32 %s229, 4
          %s238 = int_to_ptr.vmem [resolvable:$true] %s237
          %240 = dma.hbm_to_vmem [thread:$0]  %s235, 2048, %s238, %s226
        $region36: #{tpu_custom_call.1} parent=31 // pred_fallthru
          _
      $region32: #{tpu_custom_call.1} parent=5 // pred_fallthru
        _
      %p241 = scmp.le.s32.totalorder 1, %s19
      %p242 = scmp.lt.s32.totalorder %s19, 3
      %p243 = pnand %p241, %p242
      %p244 = pneg %p243
      // Predicated region
      $region37: #{tpu_custom_call.1} parent=5 // pred_check
        _
      $region38: #{tpu_custom_call.1} parent=5 // pred_check_branch
        %246 = sbr.rel (%p243) target = $region40
      $region39: #{tpu_custom_call.1} parent=5 // pred_region
        %s247 = ssub.s32 %s19, 1
        %s248 = sand.u32 %s32, 1
        %s249 = scalar_lea.sflag [#allocation3], %s248
        %s250 = sand.u32 %s32, 1
        %s251 = smul.addr %s250, 128
        %s252 = scalar_lea.vmem [#allocation2], %s251
        // Predicated region
        $region41: #{tpu_custom_call.1} parent=39 // pred_check
          %p253 = pneg %p45
        $region42: #{tpu_custom_call.1} parent=39 // pred_check_branch
          %255 = sbr.rel (%p253) target = $region44
        $region43: #{tpu_custom_call.1} parent=39 // pred_region
          %256 = dma.done %s249, 2048
        $region44: #{tpu_custom_call.1} parent=39 // pred_fallthru
          _
        // Predicated region
        $region45: #{tpu_custom_call.1} parent=39 // pred_check
          %p257 = pneg %p66
        $region46: #{tpu_custom_call.1} parent=39 // pred_check_branch
          %259 = sbr.rel (%p257) target = $region48
        $region47: #{tpu_custom_call.1} parent=39 // pred_region
          %260 = dma.done [#allocation6], 65536
        $region48: #{tpu_custom_call.1} parent=39 // pred_fallthru
          _
        // Predicated region
        $region49: #{tpu_custom_call.1} parent=39 // pred_check
          %p261 = pneg %p87
        $region50: #{tpu_custom_call.1} parent=39 // pred_check_branch
          %263 = sbr.rel (%p261) target = $region52
        $region51: #{tpu_custom_call.1} parent=39 // pred_region
          %264 = dma.done [#allocation6], 64
        $region52: #{tpu_custom_call.1} parent=39 // pred_fallthru
          _
        // Predicated region
        $region53: #{tpu_custom_call.1} parent=39 // pred_check
          %p265 = pneg %p108
        $region54: #{tpu_custom_call.1} parent=39 // pred_check_branch
          %267 = sbr.rel (%p265) target = $region56
        $region55: #{tpu_custom_call.1} parent=39 // pred_region
          %268 = dma.done [#allocation9], 12288
        $region56: #{tpu_custom_call.1} parent=39 // pred_fallthru
          _
        // Predicated region
        $region57: #{tpu_custom_call.1} parent=39 // pred_check
          %p269 = pneg %p129
        $region58: #{tpu_custom_call.1} parent=39 // pred_check_branch
          %271 = sbr.rel (%p269) target = $region60
        $region59: #{tpu_custom_call.1} parent=39 // pred_region
          %272 = dma.done [#allocation9], 48
        $region60: #{tpu_custom_call.1} parent=39 // pred_fallthru
          _
        %s273 = sand.u32 %s32, 1
        %s274 = scalar_lea.sflag [#allocation3], %s273
        %s275 = sand.u32 %s32, 1
        %s276 = smul.addr %s275, 128
        %s277 = scalar_lea.vmem [#allocation2], %s276
        %p278 = pneg %p45
        %p279 = pneg %p42
        %p280 = pneg %p66
        %p281 = pneg %p63
        %p282 = pneg %p87
        %p283 = pneg %p84
        %p284 = pneg %p108
        %p285 = pneg %p105
        %p286 = pneg %p129
        %p287 = pneg %p126
        %p288 = pneg %p155
        %p289 = pneg %p152
        %s290 = sand.u32 %s142, 1
        %s291 = scalar_lea.sflag [#allocation4], %s290
        %s292 = sand.u32 %s142, 1
        %s293 = smul.addr %s292, 24
        %s294 = scalar_lea.vmem [#allocation11], %s293
        %v296 = vld [vmem:[%s252] sm:$0xff]
        %v297 = vld [vmem:[%s252 + $0x8] sm:$0xff]
        %v298 = vld [vmem:[%s252 + $0x10] sm:$0xff]
        %v299 = vld [vmem:[%s252 + $0x18] sm:$0xff]
        %v300 = vld [vmem:[%s252 + $0x20] sm:$0xff]
        %v301 = vld [vmem:[%s252 + $0x28] sm:$0xff]
        %v302 = vld [vmem:[%s252 + $0x30] sm:$0xff]
        %v303 = vld [vmem:[%s252 + $0x38] sm:$0xff]
        %v304 = vld [vmem:[%s252 + $0x40] sm:$0xff]
        %v305 = vld [vmem:[%s252 + $0x48] sm:$0xff]
        %v306 = vld [vmem:[%s252 + $0x50] sm:$0xff]
        %v307 = vld [vmem:[%s252 + $0x58] sm:$0xff]
        %v308 = vld [vmem:[%s252 + $0x60] sm:$0xff]
        %v309 = vld [vmem:[%s252 + $0x68] sm:$0xff]
        %v310 = vld [vmem:[%s252 + $0x70] sm:$0xff]
        %v311 = vld [vmem:[%s252 + $0x78] sm:$0xff]
        %v312 = vpack.c.bf16 %v296, %v296
        %v313 = vpack.c.bf16 %v297, %v297
        %v314 = vpack.c.bf16 %v298, %v298
        %v315 = vpack.c.bf16 %v299, %v299
        %v316 = vpack.c.bf16 %v300, %v300
        %v317 = vpack.c.bf16 %v301, %v301
        %v318 = vpack.c.bf16 %v302, %v302
        %v319 = vpack.c.bf16 %v303, %v303
        %v320 = vpack.c.bf16 %v304, %v304
        %v321 = vpack.c.bf16 %v305, %v305
        %v322 = vpack.c.bf16 %v306, %v306
        %v323 = vpack.c.bf16 %v307, %v307
        %v324 = vpack.c.bf16 %v308, %v308
        %v325 = vpack.c.bf16 %v309, %v309
        %v326 = vpack.c.bf16 %v310, %v310
        %v327 = vpack.c.bf16 %v311, %v311
        %v328 = vld [vmem:[#allocation5] sm:$0xff]
        %v329 = vld [vmem:[#allocation5 + $0x8] sm:$0xff]
        %v330 = vld [vmem:[#allocation5 + $0x10] sm:$0xff]
        %v331 = vld [vmem:[#allocation5 + $0x18] sm:$0xff]
        %v332 = vld [vmem:[#allocation5 + $0x20] sm:$0xff]
        %v333 = vld [vmem:[#allocation5 + $0x28] sm:$0xff]
        %v334 = vld [vmem:[#allocation5 + $0x30] sm:$0xff]
        %v335 = vld [vmem:[#allocation5 + $0x38] sm:$0xff]
        %v336 = vld [vmem:[#allocation5 + $0x40] sm:$0xff]
        %v337 = vld [vmem:[#allocation5 + $0x48] sm:$0xff]
        %v338 = vld [vmem:[#allocation5 + $0x50] sm:$0xff]
        %v339 = vld [vmem:[#allocation5 + $0x58] sm:$0xff]
        %v340 = vld [vmem:[#allocation5 + $0x60] sm:$0xff]
        %v341 = vld [vmem:[#allocation5 + $0x68] sm:$0xff]
        %v342 = vld [vmem:[#allocation5 + $0x70] sm:$0xff]
        %v343 = vld [vmem:[#allocation5 + $0x78] sm:$0xff]
        %v344 = vld [vmem:[#allocation5 + $0x80] sm:$0xff]
        %v345 = vld [vmem:[#allocation5 + $0x88] sm:$0xff]
        %v346 = vld [vmem:[#allocation5 + $0x90] sm:$0xff]
        %v347 = vld [vmem:[#allocation5 + $0x98] sm:$0xff]
        %v348 = vld [vmem:[#allocation5 + $0xa0] sm:$0xff]
        %v349 = vld [vmem:[#allocation5 + $0xa8] sm:$0xff]
        %v350 = vld [vmem:[#allocation5 + $0xb0] sm:$0xff]
        %v351 = vld [vmem:[#allocation5 + $0xb8] sm:$0xff]
        %v352 = vld [vmem:[#allocation5 + $0xc0] sm:$0xff]
        %v353 = vld [vmem:[#allocation5 + $0xc8] sm:$0xff]
        %v354 = vld [vmem:[#allocation5 + $0xd0] sm:$0xff]
        %v355 = vld [vmem:[#allocation5 + $0xd8] sm:$0xff]
        %v356 = vld [vmem:[#allocation5 + $0xe0] sm:$0xff]
        %v357 = vld [vmem:[#allocation5 + $0xe8] sm:$0xff]
        %v358 = vld [vmem:[#allocation5 + $0xf0] sm:$0xff]
        %v359 = vld [vmem:[#allocation5 + $0xf8] sm:$0xff]
        %v360 = vld [vmem:[#allocation5 + $0x100] sm:$0xff]
        %v361 = vld [vmem:[#allocation5 + $0x108] sm:$0xff]
        %v362 = vld [vmem:[#allocation5 + $0x110] sm:$0xff]
        %v363 = vld [vmem:[#allocation5 + $0x118] sm:$0xff]
        %v364 = vld [vmem:[#allocation5 + $0x120] sm:$0xff]
        %v365 = vld [vmem:[#allocation5 + $0x128] sm:$0xff]
        %v366 = vld [vmem:[#allocation5 + $0x130] sm:$0xff]
        %v367 = vld [vmem:[#allocation5 + $0x138] sm:$0xff]
        %v368 = vld [vmem:[#allocation5 + $0x140] sm:$0xff]
        %v369 = vld [vmem:[#allocation5 + $0x148] sm:$0xff]
        %v370 = vld [vmem:[#allocation5 + $0x150] sm:$0xff]
        %v371 = vld [vmem:[#allocation5 + $0x158] sm:$0xff]
        %v372 = vld [vmem:[#allocation5 + $0x160] sm:$0xff]
        %v373 = vld [vmem:[#allocation5 + $0x168] sm:$0xff]
        %v374 = vld [vmem:[#allocation5 + $0x170] sm:$0xff]
        %v375 = vld [vmem:[#allocation5 + $0x178] sm:$0xff]
        %v376 = vld [vmem:[#allocation5 + $0x180] sm:$0xff]
        %v377 = vld [vmem:[#allocation5 + $0x188] sm:$0xff]
        %v378 = vld [vmem:[#allocation5 + $0x190] sm:$0xff]
        %v379 = vld [vmem:[#allocation5 + $0x198] sm:$0xff]
        %v380 = vld [vmem:[#allocation5 + $0x1a0] sm:$0xff]
        %v381 = vld [vmem:[#allocation5 + $0x1a8] sm:$0xff]
        %v382 = vld [vmem:[#allocation5 + $0x1b0] sm:$0xff]
        %v383 = vld [vmem:[#allocation5 + $0x1b8] sm:$0xff]
        %v384 = vld [vmem:[#allocation5 + $0x1c0] sm:$0xff]
        %v385 = vld [vmem:[#allocation5 + $0x1c8] sm:$0xff]
        %v386 = vld [vmem:[#allocation5 + $0x1d0] sm:$0xff]
        %v387 = vld [vmem:[#allocation5 + $0x1d8] sm:$0xff]
        %v388 = vld [vmem:[#allocation5 + $0x1e0] sm:$0xff]
        %v389 = vld [vmem:[#allocation5 + $0x1e8] sm:$0xff]
        %v390 = vld [vmem:[#allocation5 + $0x1f0] sm:$0xff]
        %v391 = vld [vmem:[#allocation5 + $0x1f8] sm:$0xff]
        %v392 = vld [vmem:[#allocation5 + $0x200] sm:$0xff]
        %v393 = vld [vmem:[#allocation5 + $0x208] sm:$0xff]
        %v394 = vld [vmem:[#allocation5 + $0x210] sm:$0xff]
        %v395 = vld [vmem:[#allocation5 + $0x218] sm:$0xff]
        %v396 = vld [vmem:[#allocation5 + $0x220] sm:$0xff]
        %v397 = vld [vmem:[#allocation5 + $0x228] sm:$0xff]
        %v398 = vld [vmem:[#allocation5 + $0x230] sm:$0xff]
        %v399 = vld [vmem:[#allocation5 + $0x238] sm:$0xff]
        %v400 = vld [vmem:[#allocation5 + $0x240] sm:$0xff]
        %v401 = vld [vmem:[#allocation5 + $0x248] sm:$0xff]
        %v402 = vld [vmem:[#allocation5 + $0x250] sm:$0xff]
        %v403 = vld [vmem:[#allocation5 + $0x258] sm:$0xff]
        %v404 = vld [vmem:[#allocation5 + $0x260] sm:$0xff]
        %v405 = vld [vmem:[#allocation5 + $0x268] sm:$0xff]
        %v406 = vld [vmem:[#allocation5 + $0x270] sm:$0xff]
        %v407 = vld [vmem:[#allocation5 + $0x278] sm:$0xff]
        %v408 = vld [vmem:[#allocation5 + $0x280] sm:$0xff]
        %v409 = vld [vmem:[#allocation5 + $0x288] sm:$0xff]
        %v410 = vld [vmem:[#allocation5 + $0x290] sm:$0xff]
        %v411 = vld [vmem:[#allocation5 + $0x298] sm:$0xff]
        %v412 = vld [vmem:[#allocation5 + $0x2a0] sm:$0xff]
        %v413 = vld [vmem:[#allocation5 + $0x2a8] sm:$0xff]
        %v414 = vld [vmem:[#allocation5 + $0x2b0] sm:$0xff]
        %v415 = vld [vmem:[#allocation5 + $0x2b8] sm:$0xff]
        %v416 = vld [vmem:[#allocation5 + $0x2c0] sm:$0xff]
        %v417 = vld [vmem:[#allocation5 + $0x2c8] sm:$0xff]
        %v418 = vld [vmem:[#allocation5 + $0x2d0] sm:$0xff]
        %v419 = vld [vmem:[#allocation5 + $0x2d8] sm:$0xff]
        %v420 = vld [vmem:[#allocation5 + $0x2e0] sm:$0xff]
        %v421 = vld [vmem:[#allocation5 + $0x2e8] sm:$0xff]
        %v422 = vld [vmem:[#allocation5 + $0x2f0] sm:$0xff]
        %v423 = vld [vmem:[#allocation5 + $0x2f8] sm:$0xff]
        %v424 = vld [vmem:[#allocation5 + $0x300] sm:$0xff]
        %v425 = vld [vmem:[#allocation5 + $0x308] sm:$0xff]
        %v426 = vld [vmem:[#allocation5 + $0x310] sm:$0xff]
        %v427 = vld [vmem:[#allocation5 + $0x318] sm:$0xff]
        %v428 = vld [vmem:[#allocation5 + $0x320] sm:$0xff]
        %v429 = vld [vmem:[#allocation5 + $0x328] sm:$0xff]
        %v430 = vld [vmem:[#allocation5 + $0x330] sm:$0xff]
        %v431 = vld [vmem:[#allocation5 + $0x338] sm:$0xff]
        %v432 = vld [vmem:[#allocation5 + $0x340] sm:$0xff]
        %v433 = vld [vmem:[#allocation5 + $0x348] sm:$0xff]
        %v434 = vld [vmem:[#allocation5 + $0x350] sm:$0xff]
        %v435 = vld [vmem:[#allocation5 + $0x358] sm:$0xff]
        %v436 = vld [vmem:[#allocation5 + $0x360] sm:$0xff]
        %v437 = vld [vmem:[#allocation5 + $0x368] sm:$0xff]
        %v438 = vld [vmem:[#allocation5 + $0x370] sm:$0xff]
        %v439 = vld [vmem:[#allocation5 + $0x378] sm:$0xff]
        %v440 = vld [vmem:[#allocation5 + $0x380] sm:$0xff]
        %v441 = vld [vmem:[#allocation5 + $0x388] sm:$0xff]
        %v442 = vld [vmem:[#allocation5 + $0x390] sm:$0xff]
        %v443 = vld [vmem:[#allocation5 + $0x398] sm:$0xff]
        %v444 = vld [vmem:[#allocation5 + $0x3a0] sm:$0xff]
        %v445 = vld [vmem:[#allocation5 + $0x3a8] sm:$0xff]
        %v446 = vld [vmem:[#allocation5 + $0x3b0] sm:$0xff]
        %v447 = vld [vmem:[#allocation5 + $0x3b8] sm:$0xff]
        %v448 = vld [vmem:[#allocation5 + $0x3c0] sm:$0xff]
        %v449 = vld [vmem:[#allocation5 + $0x3c8] sm:$0xff]
        %v450 = vld [vmem:[#allocation5 + $0x3d0] sm:$0xff]
        %v451 = vld [vmem:[#allocation5 + $0x3d8] sm:$0xff]
        %v452 = vld [vmem:[#allocation5 + $0x3e0] sm:$0xff]
        %v453 = vld [vmem:[#allocation5 + $0x3e8] sm:$0xff]
        %v454 = vld [vmem:[#allocation5 + $0x3f0] sm:$0xff]
        %v455 = vld [vmem:[#allocation5 + $0x3f8] sm:$0xff]
        %v456 = vld [vmem:[#allocation5 + $0x400] sm:$0xff]
        %v457 = vld [vmem:[#allocation5 + $0x408] sm:$0xff]
        %v458 = vld [vmem:[#allocation5 + $0x410] sm:$0xff]
        %v459 = vld [vmem:[#allocation5 + $0x418] sm:$0xff]
        %v460 = vld [vmem:[#allocation5 + $0x420] sm:$0xff]
        %v461 = vld [vmem:[#allocation5 + $0x428] sm:$0xff]
        %v462 = vld [vmem:[#allocation5 + $0x430] sm:$0xff]
        %v463 = vld [vmem:[#allocation5 + $0x438] sm:$0xff]
        %v464 = vld [vmem:[#allocation5 + $0x440] sm:$0xff]
        %v465 = vld [vmem:[#allocation5 + $0x448] sm:$0xff]
        %v466 = vld [vmem:[#allocation5 + $0x450] sm:$0xff]
        %v467 = vld [vmem:[#allocation5 + $0x458] sm:$0xff]
        %v468 = vld [vmem:[#allocation5 + $0x460] sm:$0xff]
        %v469 = vld [vmem:[#allocation5 + $0x468] sm:$0xff]
        %v470 = vld [vmem:[#allocation5 + $0x470] sm:$0xff]
        %v471 = vld [vmem:[#allocation5 + $0x478] sm:$0xff]
        %v472 = vld [vmem:[#allocation5 + $0x480] sm:$0xff]
        %v473 = vld [vmem:[#allocation5 + $0x488] sm:$0xff]
        %v474 = vld [vmem:[#allocation5 + $0x490] sm:$0xff]
        %v475 = vld [vmem:[#allocation5 + $0x498] sm:$0xff]
        %v476 = vld [vmem:[#allocation5 + $0x4a0] sm:$0xff]
        %v477 = vld [vmem:[#allocation5 + $0x4a8] sm:$0xff]
        %v478 = vld [vmem:[#allocation5 + $0x4b0] sm:$0xff]
        %v479 = vld [vmem:[#allocation5 + $0x4b8] sm:$0xff]
        %v480 = vld [vmem:[#allocation5 + $0x4c0] sm:$0xff]
        %v481 = vld [vmem:[#allocation5 + $0x4c8] sm:$0xff]
        %v482 = vld [vmem:[#allocation5 + $0x4d0] sm:$0xff]
        %v483 = vld [vmem:[#allocation5 + $0x4d8] sm:$0xff]
        %v484 = vld [vmem:[#allocation5 + $0x4e0] sm:$0xff]
        %v485 = vld [vmem:[#allocation5 + $0x4e8] sm:$0xff]
        %v486 = vld [vmem:[#allocation5 + $0x4f0] sm:$0xff]
        %v487 = vld [vmem:[#allocation5 + $0x4f8] sm:$0xff]
        %v488 = vld [vmem:[#allocation5 + $0x500] sm:$0xff]
        %v489 = vld [vmem:[#allocation5 + $0x508] sm:$0xff]
        %v490 = vld [vmem:[#allocation5 + $0x510] sm:$0xff]
        %v491 = vld [vmem:[#allocation5 + $0x518] sm:$0xff]
        %v492 = vld [vmem:[#allocation5 + $0x520] sm:$0xff]
        %v493 = vld [vmem:[#allocation5 + $0x528] sm:$0xff]
        %v494 = vld [vmem:[#allocation5 + $0x530] sm:$0xff]
        %v495 = vld [vmem:[#allocation5 + $0x538] sm:$0xff]
        %v496 = vld [vmem:[#allocation5 + $0x540] sm:$0xff]
        %v497 = vld [vmem:[#allocation5 + $0x548] sm:$0xff]
        %v498 = vld [vmem:[#allocation5 + $0x550] sm:$0xff]
        %v499 = vld [vmem:[#allocation5 + $0x558] sm:$0xff]
        %v500 = vld [vmem:[#allocation5 + $0x560] sm:$0xff]
        %v501 = vld [vmem:[#allocation5 + $0x568] sm:$0xff]
        %v502 = vld [vmem:[#allocation5 + $0x570] sm:$0xff]
        %v503 = vld [vmem:[#allocation5 + $0x578] sm:$0xff]
        %v504 = vld [vmem:[#allocation5 + $0x580] sm:$0xff]
        %v505 = vld [vmem:[#allocation5 + $0x588] sm:$0xff]
        %v506 = vld [vmem:[#allocation5 + $0x590] sm:$0xff]
        %v507 = vld [vmem:[#allocation5 + $0x598] sm:$0xff]
        %v508 = vld [vmem:[#allocation5 + $0x5a0] sm:$0xff]
        %v509 = vld [vmem:[#allocation5 + $0x5a8] sm:$0xff]
        %v510 = vld [vmem:[#allocation5 + $0x5b0] sm:$0xff]
        %v511 = vld [vmem:[#allocation5 + $0x5b8] sm:$0xff]
        %v512 = vld [vmem:[#allocation5 + $0x5c0] sm:$0xff]
        %v513 = vld [vmem:[#allocation5 + $0x5c8] sm:$0xff]
        %v514 = vld [vmem:[#allocation5 + $0x5d0] sm:$0xff]
        %v515 = vld [vmem:[#allocation5 + $0x5d8] sm:$0xff]
        %v516 = vld [vmem:[#allocation5 + $0x5e0] sm:$0xff]
        %v517 = vld [vmem:[#allocation5 + $0x5e8] sm:$0xff]
        %v518 = vld [vmem:[#allocation5 + $0x5f0] sm:$0xff]
        %v519 = vld [vmem:[#allocation5 + $0x5f8] sm:$0xff]
        %v520 = vld [vmem:[#allocation5 + $0x600] sm:$0xff]
        %v521 = vld [vmem:[#allocation5 + $0x608] sm:$0xff]
        %v522 = vld [vmem:[#allocation5 + $0x610] sm:$0xff]
        %v523 = vld [vmem:[#allocation5 + $0x618] sm:$0xff]
        %v524 = vld [vmem:[#allocation5 + $0x620] sm:$0xff]
        %v525 = vld [vmem:[#allocation5 + $0x628] sm:$0xff]
        %v526 = vld [vmem:[#allocation5 + $0x630] sm:$0xff]
        %v527 = vld [vmem:[#allocation5 + $0x638] sm:$0xff]
        %v528 = vld [vmem:[#allocation5 + $0x640] sm:$0xff]
        %v529 = vld [vmem:[#allocation5 + $0x648] sm:$0xff]
        %v530 = vld [vmem:[#allocation5 + $0x650] sm:$0xff]
        %v531 = vld [vmem:[#allocation5 + $0x658] sm:$0xff]
        %v532 = vld [vmem:[#allocation5 + $0x660] sm:$0xff]
        %v533 = vld [vmem:[#allocation5 + $0x668] sm:$0xff]
        %v534 = vld [vmem:[#allocation5 + $0x670] sm:$0xff]
        %v535 = vld [vmem:[#allocation5 + $0x678] sm:$0xff]
        %v536 = vld [vmem:[#allocation5 + $0x680] sm:$0xff]
        %v537 = vld [vmem:[#allocation5 + $0x688] sm:$0xff]
        %v538 = vld [vmem:[#allocation5 + $0x690] sm:$0xff]
        %v539 = vld [vmem:[#allocation5 + $0x698] sm:$0xff]
        %v540 = vld [vmem:[#allocation5 + $0x6a0] sm:$0xff]
        %v541 = vld [vmem:[#allocation5 + $0x6a8] sm:$0xff]
        %v542 = vld [vmem:[#allocation5 + $0x6b0] sm:$0xff]
        %v543 = vld [vmem:[#allocation5 + $0x6b8] sm:$0xff]
        %v544 = vld [vmem:[#allocation5 + $0x6c0] sm:$0xff]
        %v545 = vld [vmem:[#allocation5 + $0x6c8] sm:$0xff]
        %v546 = vld [vmem:[#allocation5 + $0x6d0] sm:$0xff]
        %v547 = vld [vmem:[#allocation5 + $0x6d8] sm:$0xff]
        %v548 = vld [vmem:[#allocation5 + $0x6e0] sm:$0xff]
        %v549 = vld [vmem:[#allocation5 + $0x6e8] sm:$0xff]
        %v550 = vld [vmem:[#allocation5 + $0x6f0] sm:$0xff]
        %v551 = vld [vmem:[#allocation5 + $0x6f8] sm:$0xff]
        %v552 = vld [vmem:[#allocation5 + $0x700] sm:$0xff]
        %v553 = vld [vmem:[#allocation5 + $0x708] sm:$0xff]
        %v554 = vld [vmem:[#allocation5 + $0x710] sm:$0xff]
        %v555 = vld [vmem:[#allocation5 + $0x718] sm:$0xff]
        %v556 = vld [vmem:[#allocation5 + $0x720] sm:$0xff]
        %v557 = vld [vmem:[#allocation5 + $0x728] sm:$0xff]
        %v558 = vld [vmem:[#allocation5 + $0x730] sm:$0xff]
        %v559 = vld [vmem:[#allocation5 + $0x738] sm:$0xff]
        %v560 = vld [vmem:[#allocation5 + $0x740] sm:$0xff]
        %v561 = vld [vmem:[#allocation5 + $0x748] sm:$0xff]
        %v562 = vld [vmem:[#allocation5 + $0x750] sm:$0xff]
        %v563 = vld [vmem:[#allocation5 + $0x758] sm:$0xff]
        %v564 = vld [vmem:[#allocation5 + $0x760] sm:$0xff]
        %v565 = vld [vmem:[#allocation5 + $0x768] sm:$0xff]
        %v566 = vld [vmem:[#allocation5 + $0x770] sm:$0xff]
        %v567 = vld [vmem:[#allocation5 + $0x778] sm:$0xff]
        %v568 = vld [vmem:[#allocation5 + $0x780] sm:$0xff]
        %v569 = vld [vmem:[#allocation5 + $0x788] sm:$0xff]
        %v570 = vld [vmem:[#allocation5 + $0x790] sm:$0xff]
        %v571 = vld [vmem:[#allocation5 + $0x798] sm:$0xff]
        %v572 = vld [vmem:[#allocation5 + $0x7a0] sm:$0xff]
        %v573 = vld [vmem:[#allocation5 + $0x7a8] sm:$0xff]
        %v574 = vld [vmem:[#allocation5 + $0x7b0] sm:$0xff]
        %v575 = vld [vmem:[#allocation5 + $0x7b8] sm:$0xff]
        %v576 = vld [vmem:[#allocation5 + $0x7c0] sm:$0xff]
        %v577 = vld [vmem:[#allocation5 + $0x7c8] sm:$0xff]
        %v578 = vld [vmem:[#allocation5 + $0x7d0] sm:$0xff]
        %v579 = vld [vmem:[#allocation5 + $0x7d8] sm:$0xff]
        %v580 = vld [vmem:[#allocation5 + $0x7e0] sm:$0xff]
        %v581 = vld [vmem:[#allocation5 + $0x7e8] sm:$0xff]
        %v582 = vld [vmem:[#allocation5 + $0x7f0] sm:$0xff]
        %v583 = vld [vmem:[#allocation5 + $0x7f8] sm:$0xff]
        %v584 = vld [vmem:[#allocation5 + $0x800] sm:$0xff]
        %v585 = vld [vmem:[#allocation5 + $0x808] sm:$0xff]
        %v586 = vld [vmem:[#allocation5 + $0x810] sm:$0xff]
        %v587 = vld [vmem:[#allocation5 + $0x818] sm:$0xff]
        %v588 = vld [vmem:[#allocation5 + $0x820] sm:$0xff]
        %v589 = vld [vmem:[#allocation5 + $0x828] sm:$0xff]
        %v590 = vld [vmem:[#allocation5 + $0x830] sm:$0xff]
        %v591 = vld [vmem:[#allocation5 + $0x838] sm:$0xff]
        %v592 = vld [vmem:[#allocation5 + $0x840] sm:$0xff]
        %v593 = vld [vmem:[#allocation5 + $0x848] sm:$0xff]
        %v594 = vld [vmem:[#allocation5 + $0x850] sm:$0xff]
        %v595 = vld [vmem:[#allocation5 + $0x858] sm:$0xff]
        %v596 = vld [vmem:[#allocation5 + $0x860] sm:$0xff]
        %v597 = vld [vmem:[#allocation5 + $0x868] sm:$0xff]
        %v598 = vld [vmem:[#allocation5 + $0x870] sm:$0xff]
        %v599 = vld [vmem:[#allocation5 + $0x878] sm:$0xff]
        %v600 = vld [vmem:[#allocation5 + $0x880] sm:$0xff]
        %v601 = vld [vmem:[#allocation5 + $0x888] sm:$0xff]
        %v602 = vld [vmem:[#allocation5 + $0x890] sm:$0xff]
        %v603 = vld [vmem:[#allocation5 + $0x898] sm:$0xff]
        %v604 = vld [vmem:[#allocation5 + $0x8a0] sm:$0xff]
        %v605 = vld [vmem:[#allocation5 + $0x8a8] sm:$0xff]
        %v606 = vld [vmem:[#allocation5 + $0x8b0] sm:$0xff]
        %v607 = vld [vmem:[#allocation5 + $0x8b8] sm:$0xff]
        %v608 = vld [vmem:[#allocation5 + $0x8c0] sm:$0xff]
        %v609 = vld [vmem:[#allocation5 + $0x8c8] sm:$0xff]
        %v610 = vld [vmem:[#allocation5 + $0x8d0] sm:$0xff]
        %v611 = vld [vmem:[#allocation5 + $0x8d8] sm:$0xff]
        %v612 = vld [vmem:[#allocation5 + $0x8e0] sm:$0xff]
        %v613 = vld [vmem:[#allocation5 + $0x8e8] sm:$0xff]
        %v614 = vld [vmem:[#allocation5 + $0x8f0] sm:$0xff]
        %v615 = vld [vmem:[#allocation5 + $0x8f8] sm:$0xff]
        %v616 = vld [vmem:[#allocation5 + $0x900] sm:$0xff]
        %v617 = vld [vmem:[#allocation5 + $0x908] sm:$0xff]
        %v618 = vld [vmem:[#allocation5 + $0x910] sm:$0xff]
        %v619 = vld [vmem:[#allocation5 + $0x918] sm:$0xff]
        %v620 = vld [vmem:[#allocation5 + $0x920] sm:$0xff]
        %v621 = vld [vmem:[#allocation5 + $0x928] sm:$0xff]
        %v622 = vld [vmem:[#allocation5 + $0x930] sm:$0xff]
        %v623 = vld [vmem:[#allocation5 + $0x938] sm:$0xff]
        %v624 = vld [vmem:[#allocation5 + $0x940] sm:$0xff]
        %v625 = vld [vmem:[#allocation5 + $0x948] sm:$0xff]
        %v626 = vld [vmem:[#allocation5 + $0x950] sm:$0xff]
        %v627 = vld [vmem:[#allocation5 + $0x958] sm:$0xff]
        %v628 = vld [vmem:[#allocation5 + $0x960] sm:$0xff]
        %v629 = vld [vmem:[#allocation5 + $0x968] sm:$0xff]
        %v630 = vld [vmem:[#allocation5 + $0x970] sm:$0xff]
        %v631 = vld [vmem:[#allocation5 + $0x978] sm:$0xff]
        %v632 = vld [vmem:[#allocation5 + $0x980] sm:$0xff]
        %v633 = vld [vmem:[#allocation5 + $0x988] sm:$0xff]
        %v634 = vld [vmem:[#allocation5 + $0x990] sm:$0xff]
        %v635 = vld [vmem:[#allocation5 + $0x998] sm:$0xff]
        %v636 = vld [vmem:[#allocation5 + $0x9a0] sm:$0xff]
        %v637 = vld [vmem:[#allocation5 + $0x9a8] sm:$0xff]
        %v638 = vld [vmem:[#allocation5 + $0x9b0] sm:$0xff]
        %v639 = vld [vmem:[#allocation5 + $0x9b8] sm:$0xff]
        %v640 = vld [vmem:[#allocation5 + $0x9c0] sm:$0xff]
        %v641 = vld [vmem:[#allocation5 + $0x9c8] sm:$0xff]
        %v642 = vld [vmem:[#allocation5 + $0x9d0] sm:$0xff]
        %v643 = vld [vmem:[#allocation5 + $0x9d8] sm:$0xff]
        %v644 = vld [vmem:[#allocation5 + $0x9e0] sm:$0xff]
        %v645 = vld [vmem:[#allocation5 + $0x9e8] sm:$0xff]
        %v646 = vld [vmem:[#allocation5 + $0x9f0] sm:$0xff]
        %v647 = vld [vmem:[#allocation5 + $0x9f8] sm:$0xff]
        %v648 = vld [vmem:[#allocation5 + $0xa00] sm:$0xff]
        %v649 = vld [vmem:[#allocation5 + $0xa08] sm:$0xff]
        %v650 = vld [vmem:[#allocation5 + $0xa10] sm:$0xff]
        %v651 = vld [vmem:[#allocation5 + $0xa18] sm:$0xff]
        %v652 = vld [vmem:[#allocation5 + $0xa20] sm:$0xff]
        %v653 = vld [vmem:[#allocation5 + $0xa28] sm:$0xff]
        %v654 = vld [vmem:[#allocation5 + $0xa30] sm:$0xff]
        %v655 = vld [vmem:[#allocation5 + $0xa38] sm:$0xff]
        %v656 = vld [vmem:[#allocation5 + $0xa40] sm:$0xff]
        %v657 = vld [vmem:[#allocation5 + $0xa48] sm:$0xff]
        %v658 = vld [vmem:[#allocation5 + $0xa50] sm:$0xff]
        %v659 = vld [vmem:[#allocation5 + $0xa58] sm:$0xff]
        %v660 = vld [vmem:[#allocation5 + $0xa60] sm:$0xff]
        %v661 = vld [vmem:[#allocation5 + $0xa68] sm:$0xff]
        %v662 = vld [vmem:[#allocation5 + $0xa70] sm:$0xff]
        %v663 = vld [vmem:[#allocation5 + $0xa78] sm:$0xff]
        %v664 = vld [vmem:[#allocation5 + $0xa80] sm:$0xff]
        %v665 = vld [vmem:[#allocation5 + $0xa88] sm:$0xff]
        %v666 = vld [vmem:[#allocation5 + $0xa90] sm:$0xff]
        %v667 = vld [vmem:[#allocation5 + $0xa98] sm:$0xff]
        %v668 = vld [vmem:[#allocation5 + $0xaa0] sm:$0xff]
        %v669 = vld [vmem:[#allocation5 + $0xaa8] sm:$0xff]
        %v670 = vld [vmem:[#allocation5 + $0xab0] sm:$0xff]
        %v671 = vld [vmem:[#allocation5 + $0xab8] sm:$0xff]
        %v672 = vld [vmem:[#allocation5 + $0xac0] sm:$0xff]
        %v673 = vld [vmem:[#allocation5 + $0xac8] sm:$0xff]
        %v674 = vld [vmem:[#allocation5 + $0xad0] sm:$0xff]
        %v675 = vld [vmem:[#allocation5 + $0xad8] sm:$0xff]
        %v676 = vld [vmem:[#allocation5 + $0xae0] sm:$0xff]
        %v677 = vld [vmem:[#allocation5 + $0xae8] sm:$0xff]
        %v678 = vld [vmem:[#allocation5 + $0xaf0] sm:$0xff]
        %v679 = vld [vmem:[#allocation5 + $0xaf8] sm:$0xff]
        %v680 = vld [vmem:[#allocation5 + $0xb00] sm:$0xff]
        %v681 = vld [vmem:[#allocation5 + $0xb08] sm:$0xff]
        %v682 = vld [vmem:[#allocation5 + $0xb10] sm:$0xff]
        %v683 = vld [vmem:[#allocation5 + $0xb18] sm:$0xff]
        %v684 = vld [vmem:[#allocation5 + $0xb20] sm:$0xff]
        %v685 = vld [vmem:[#allocation5 + $0xb28] sm:$0xff]
        %v686 = vld [vmem:[#allocation5 + $0xb30] sm:$0xff]
        %v687 = vld [vmem:[#allocation5 + $0xb38] sm:$0xff]
        %v688 = vld [vmem:[#allocation5 + $0xb40] sm:$0xff]
        %v689 = vld [vmem:[#allocation5 + $0xb48] sm:$0xff]
        %v690 = vld [vmem:[#allocation5 + $0xb50] sm:$0xff]
        %v691 = vld [vmem:[#allocation5 + $0xb58] sm:$0xff]
        %v692 = vld [vmem:[#allocation5 + $0xb60] sm:$0xff]
        %v693 = vld [vmem:[#allocation5 + $0xb68] sm:$0xff]
        %v694 = vld [vmem:[#allocation5 + $0xb70] sm:$0xff]
        %v695 = vld [vmem:[#allocation5 + $0xb78] sm:$0xff]
        %v696 = vld [vmem:[#allocation5 + $0xb80] sm:$0xff]
        %v697 = vld [vmem:[#allocation5 + $0xb88] sm:$0xff]
        %v698 = vld [vmem:[#allocation5 + $0xb90] sm:$0xff]
        %v699 = vld [vmem:[#allocation5 + $0xb98] sm:$0xff]
        %v700 = vld [vmem:[#allocation5 + $0xba0] sm:$0xff]
        %v701 = vld [vmem:[#allocation5 + $0xba8] sm:$0xff]
        %v702 = vld [vmem:[#allocation5 + $0xbb0] sm:$0xff]
        %v703 = vld [vmem:[#allocation5 + $0xbb8] sm:$0xff]
        %v704 = vld [vmem:[#allocation5 + $0xbc0] sm:$0xff]
        %v705 = vld [vmem:[#allocation5 + $0xbc8] sm:$0xff]
        %v706 = vld [vmem:[#allocation5 + $0xbd0] sm:$0xff]
        %v707 = vld [vmem:[#allocation5 + $0xbd8] sm:$0xff]
        %v708 = vld [vmem:[#allocation5 + $0xbe0] sm:$0xff]
        %v709 = vld [vmem:[#allocation5 + $0xbe8] sm:$0xff]
        %v710 = vld [vmem:[#allocation5 + $0xbf0] sm:$0xff]
        %v711 = vld [vmem:[#allocation5 + $0xbf8] sm:$0xff]
        %v712 = vld [vmem:[#allocation5 + $0xc00] sm:$0xff]
        %v713 = vld [vmem:[#allocation5 + $0xc08] sm:$0xff]
        %v714 = vld [vmem:[#allocation5 + $0xc10] sm:$0xff]
        %v715 = vld [vmem:[#allocation5 + $0xc18] sm:$0xff]
        %v716 = vld [vmem:[#allocation5 + $0xc20] sm:$0xff]
        %v717 = vld [vmem:[#allocation5 + $0xc28] sm:$0xff]
        %v718 = vld [vmem:[#allocation5 + $0xc30] sm:$0xff]
        %v719 = vld [vmem:[#allocation5 + $0xc38] sm:$0xff]
        %v720 = vld [vmem:[#allocation5 + $0xc40] sm:$0xff]
        %v721 = vld [vmem:[#allocation5 + $0xc48] sm:$0xff]
        %v722 = vld [vmem:[#allocation5 + $0xc50] sm:$0xff]
        %v723 = vld [vmem:[#allocation5 + $0xc58] sm:$0xff]
        %v724 = vld [vmem:[#allocation5 + $0xc60] sm:$0xff]
        %v725 = vld [vmem:[#allocation5 + $0xc68] sm:$0xff]
        %v726 = vld [vmem:[#allocation5 + $0xc70] sm:$0xff]
        %v727 = vld [vmem:[#allocation5 + $0xc78] sm:$0xff]
        %v728 = vld [vmem:[#allocation5 + $0xc80] sm:$0xff]
        %v729 = vld [vmem:[#allocation5 + $0xc88] sm:$0xff]
        %v730 = vld [vmem:[#allocation5 + $0xc90] sm:$0xff]
        %v731 = vld [vmem:[#allocation5 + $0xc98] sm:$0xff]
        %v732 = vld [vmem:[#allocation5 + $0xca0] sm:$0xff]
        %v733 = vld [vmem:[#allocation5 + $0xca8] sm:$0xff]
        %v734 = vld [vmem:[#allocation5 + $0xcb0] sm:$0xff]
        %v735 = vld [vmem:[#allocation5 + $0xcb8] sm:$0xff]
        %v736 = vld [vmem:[#allocation5 + $0xcc0] sm:$0xff]
        %v737 = vld [vmem:[#allocation5 + $0xcc8] sm:$0xff]
        %v738 = vld [vmem:[#allocation5 + $0xcd0] sm:$0xff]
        %v739 = vld [vmem:[#allocation5 + $0xcd8] sm:$0xff]
        %v740 = vld [vmem:[#allocation5 + $0xce0] sm:$0xff]
        %v741 = vld [vmem:[#allocation5 + $0xce8] sm:$0xff]
        %v742 = vld [vmem:[#allocation5 + $0xcf0] sm:$0xff]
        %v743 = vld [vmem:[#allocation5 + $0xcf8] sm:$0xff]
        %v744 = vld [vmem:[#allocation5 + $0xd00] sm:$0xff]
        %v745 = vld [vmem:[#allocation5 + $0xd08] sm:$0xff]
        %v746 = vld [vmem:[#allocation5 + $0xd10] sm:$0xff]
        %v747 = vld [vmem:[#allocation5 + $0xd18] sm:$0xff]
        %v748 = vld [vmem:[#allocation5 + $0xd20] sm:$0xff]
        %v749 = vld [vmem:[#allocation5 + $0xd28] sm:$0xff]
        %v750 = vld [vmem:[#allocation5 + $0xd30] sm:$0xff]
        %v751 = vld [vmem:[#allocation5 + $0xd38] sm:$0xff]
        %v752 = vld [vmem:[#allocation5 + $0xd40] sm:$0xff]
        %v753 = vld [vmem:[#allocation5 + $0xd48] sm:$0xff]
        %v754 = vld [vmem:[#allocation5 + $0xd50] sm:$0xff]
        %v755 = vld [vmem:[#allocation5 + $0xd58] sm:$0xff]
        %v756 = vld [vmem:[#allocation5 + $0xd60] sm:$0xff]
        %v757 = vld [vmem:[#allocation5 + $0xd68] sm:$0xff]
        %v758 = vld [vmem:[#allocation5 + $0xd70] sm:$0xff]
        %v759 = vld [vmem:[#allocation5 + $0xd78] sm:$0xff]
        %v760 = vld [vmem:[#allocation5 + $0xd80] sm:$0xff]
        %v761 = vld [vmem:[#allocation5 + $0xd88] sm:$0xff]
        %v762 = vld [vmem:[#allocation5 + $0xd90] sm:$0xff]
        %v763 = vld [vmem:[#allocation5 + $0xd98] sm:$0xff]
        %v764 = vld [vmem:[#allocation5 + $0xda0] sm:$0xff]
        %v765 = vld [vmem:[#allocation5 + $0xda8] sm:$0xff]
        %v766 = vld [vmem:[#allocation5 + $0xdb0] sm:$0xff]
        %v767 = vld [vmem:[#allocation5 + $0xdb8] sm:$0xff]
        %v768 = vld [vmem:[#allocation5 + $0xdc0] sm:$0xff]
        %v769 = vld [vmem:[#allocation5 + $0xdc8] sm:$0xff]
        %v770 = vld [vmem:[#allocation5 + $0xdd0] sm:$0xff]
        %v771 = vld [vmem:[#allocation5 + $0xdd8] sm:$0xff]
        %v772 = vld [vmem:[#allocation5 + $0xde0] sm:$0xff]
        %v773 = vld [vmem:[#allocation5 + $0xde8] sm:$0xff]
        %v774 = vld [vmem:[#allocation5 + $0xdf0] sm:$0xff]
        %v775 = vld [vmem:[#allocation5 + $0xdf8] sm:$0xff]
        %v776 = vld [vmem:[#allocation5 + $0xe00] sm:$0xff]
        %v777 = vld [vmem:[#allocation5 + $0xe08] sm:$0xff]
        %v778 = vld [vmem:[#allocation5 + $0xe10] sm:$0xff]
        %v779 = vld [vmem:[#allocation5 + $0xe18] sm:$0xff]
        %v780 = vld [vmem:[#allocation5 + $0xe20] sm:$0xff]
        %v781 = vld [vmem:[#allocation5 + $0xe28] sm:$0xff]
        %v782 = vld [vmem:[#allocation5 + $0xe30] sm:$0xff]
        %v783 = vld [vmem:[#allocation5 + $0xe38] sm:$0xff]
        %v784 = vld [vmem:[#allocation5 + $0xe40] sm:$0xff]
        %v785 = vld [vmem:[#allocation5 + $0xe48] sm:$0xff]
        %v786 = vld [vmem:[#allocation5 + $0xe50] sm:$0xff]
        %v787 = vld [vmem:[#allocation5 + $0xe58] sm:$0xff]
        %v788 = vld [vmem:[#allocation5 + $0xe60] sm:$0xff]
        %v789 = vld [vmem:[#allocation5 + $0xe68] sm:$0xff]
        %v790 = vld [vmem:[#allocation5 + $0xe70] sm:$0xff]
        %v791 = vld [vmem:[#allocation5 + $0xe78] sm:$0xff]
        %v792 = vld [vmem:[#allocation5 + $0xe80] sm:$0xff]
        %v793 = vld [vmem:[#allocation5 + $0xe88] sm:$0xff]
        %v794 = vld [vmem:[#allocation5 + $0xe90] sm:$0xff]
        %v795 = vld [vmem:[#allocation5 + $0xe98] sm:$0xff]
        %v796 = vld [vmem:[#allocation5 + $0xea0] sm:$0xff]
        %v797 = vld [vmem:[#allocation5 + $0xea8] sm:$0xff]
        %v798 = vld [vmem:[#allocation5 + $0xeb0] sm:$0xff]
        %v799 = vld [vmem:[#allocation5 + $0xeb8] sm:$0xff]
        %v800 = vld [vmem:[#allocation5 + $0xec0] sm:$0xff]
        %v801 = vld [vmem:[#allocation5 + $0xec8] sm:$0xff]
        %v802 = vld [vmem:[#allocation5 + $0xed0] sm:$0xff]
        %v803 = vld [vmem:[#allocation5 + $0xed8] sm:$0xff]
        %v804 = vld [vmem:[#allocation5 + $0xee0] sm:$0xff]
        %v805 = vld [vmem:[#allocation5 + $0xee8] sm:$0xff]
        %v806 = vld [vmem:[#allocation5 + $0xef0] sm:$0xff]
        %v807 = vld [vmem:[#allocation5 + $0xef8] sm:$0xff]
        %v808 = vld [vmem:[#allocation5 + $0xf00] sm:$0xff]
        %v809 = vld [vmem:[#allocation5 + $0xf08] sm:$0xff]
        %v810 = vld [vmem:[#allocation5 + $0xf10] sm:$0xff]
        %v811 = vld [vmem:[#allocation5 + $0xf18] sm:$0xff]
        %v812 = vld [vmem:[#allocation5 + $0xf20] sm:$0xff]
        %v813 = vld [vmem:[#allocation5 + $0xf28] sm:$0xff]
        %v814 = vld [vmem:[#allocation5 + $0xf30] sm:$0xff]
        %v815 = vld [vmem:[#allocation5 + $0xf38] sm:$0xff]
        %v816 = vld [vmem:[#allocation5 + $0xf40] sm:$0xff]
        %v817 = vld [vmem:[#allocation5 + $0xf48] sm:$0xff]
        %v818 = vld [vmem:[#allocation5 + $0xf50] sm:$0xff]
        %v819 = vld [vmem:[#allocation5 + $0xf58] sm:$0xff]
        %v820 = vld [vmem:[#allocation5 + $0xf60] sm:$0xff]
        %v821 = vld [vmem:[#allocation5 + $0xf68] sm:$0xff]
        %v822 = vld [vmem:[#allocation5 + $0xf70] sm:$0xff]
        %v823 = vld [vmem:[#allocation5 + $0xf78] sm:$0xff]
        %v824 = vld [vmem:[#allocation5 + $0xf80] sm:$0xff]
        %v825 = vld [vmem:[#allocation5 + $0xf88] sm:$0xff]
        %v826 = vld [vmem:[#allocation5 + $0xf90] sm:$0xff]
        %v827 = vld [vmem:[#allocation5 + $0xf98] sm:$0xff]
        %v828 = vld [vmem:[#allocation5 + $0xfa0] sm:$0xff]
        %v829 = vld [vmem:[#allocation5 + $0xfa8] sm:$0xff]
        %v830 = vld [vmem:[#allocation5 + $0xfb0] sm:$0xff]
        %v831 = vld [vmem:[#allocation5 + $0xfb8] sm:$0xff]
        %v832 = vld [vmem:[#allocation5 + $0xfc0] sm:$0xff]
        %v833 = vld [vmem:[#allocation5 + $0xfc8] sm:$0xff]
        %v834 = vld [vmem:[#allocation5 + $0xfd0] sm:$0xff]
        %v835 = vld [vmem:[#allocation5 + $0xfd8] sm:$0xff]
        %v836 = vld [vmem:[#allocation5 + $0xfe0] sm:$0xff]
        %v837 = vld [vmem:[#allocation5 + $0xfe8] sm:$0xff]
        %v838 = vld [vmem:[#allocation5 + $0xff0] sm:$0xff]
        %v839 = vld [vmem:[#allocation5 + $0xff8] sm:$0xff]
        %v840 = vld [vmem:[#allocation7] sm:$0xf]
        %v842 = vlaneseq
        %v843 = vshrl.u32 %v842, 7
        %v844 = vsub.s32 0, %v843
        %v845 = vrot.slane %v840, %v844
        %v846 = vlaneseq
        %v847 = vshrl.u32 %v846, 7
        %v848 = vsub.s32 1, %v847
        %v849 = vrot.slane %v840, %v848
        %v850 = vlaneseq
        %v851 = vshrl.u32 %v850, 7
        %v852 = vsub.s32 2, %v851
        %v853 = vrot.slane %v840, %v852
        %v854 = vlaneseq
        %v855 = vshrl.u32 %v854, 7
        %v856 = vsub.s32 3, %v855
        %v857 = vrot.slane %v840, %v856
        %v1374 = vunpack.c.l.b16 %v328
        %v1375 = vunpack.c.h.b16 %v328
        %v1376 = vunpack.c.l.b16 %v329
        %v1377 = vunpack.c.h.b16 %v329
        %v1378 = vunpack.c.l.b16 %v330
        %v1379 = vunpack.c.h.b16 %v330
        %v1380 = vunpack.c.l.b16 %v331
        %v1381 = vunpack.c.h.b16 %v331
        %v1382 = vunpack.c.l.b16 %v332
        %v1383 = vunpack.c.h.b16 %v332
        %v1384 = vunpack.c.l.b16 %v333
        %v1385 = vunpack.c.h.b16 %v333
        %v1386 = vunpack.c.l.b16 %v334
        %v1387 = vunpack.c.h.b16 %v334
        %v1388 = vunpack.c.l.b16 %v335
        %v1389 = vunpack.c.h.b16 %v335
        %v1390 = vunpack.c.l.b16 %v336
        %v1391 = vunpack.c.h.b16 %v336
        %v1392 = vunpack.c.l.b16 %v337
        %v1393 = vunpack.c.h.b16 %v337
        %v1394 = vunpack.c.l.b16 %v338
        %v1395 = vunpack.c.h.b16 %v338
        %v1396 = vunpack.c.l.b16 %v339
        %v1397 = vunpack.c.h.b16 %v339
        %v1398 = vunpack.c.l.b16 %v340
        %v1399 = vunpack.c.h.b16 %v340
        %v1400 = vunpack.c.l.b16 %v341
        %v1401 = vunpack.c.h.b16 %v341
        %v1402 = vunpack.c.l.b16 %v342
        %v1403 = vunpack.c.h.b16 %v342
        %v1404 = vunpack.c.l.b16 %v343
        %v1405 = vunpack.c.h.b16 %v343
        %v1406 = vunpack.c.l.b16 %v344
        %v1407 = vunpack.c.h.b16 %v344
        %v1408 = vunpack.c.l.b16 %v345
        %v1409 = vunpack.c.h.b16 %v345
        %v1410 = vunpack.c.l.b16 %v346
        %v1411 = vunpack.c.h.b16 %v346
        %v1412 = vunpack.c.l.b16 %v347
        %v1413 = vunpack.c.h.b16 %v347
        %v1414 = vunpack.c.l.b16 %v348
        %v1415 = vunpack.c.h.b16 %v348
        %v1416 = vunpack.c.l.b16 %v349
        %v1417 = vunpack.c.h.b16 %v349
        %v1418 = vunpack.c.l.b16 %v350
        %v1419 = vunpack.c.h.b16 %v350
        %v1420 = vunpack.c.l.b16 %v351
        %v1421 = vunpack.c.h.b16 %v351
        %v1422 = vunpack.c.l.b16 %v352
        %v1423 = vunpack.c.h.b16 %v352
        %v1424 = vunpack.c.l.b16 %v353
        %v1425 = vunpack.c.h.b16 %v353
        %v1426 = vunpack.c.l.b16 %v354
        %v1427 = vunpack.c.h.b16 %v354
        %v1428 = vunpack.c.l.b16 %v355
        %v1429 = vunpack.c.h.b16 %v355
        %v1430 = vunpack.c.l.b16 %v356
        %v1431 = vunpack.c.h.b16 %v356
        %v1432 = vunpack.c.l.b16 %v357
        %v1433 = vunpack.c.h.b16 %v357
        %v1434 = vunpack.c.l.b16 %v358
        %v1435 = vunpack.c.h.b16 %v358
        %v1436 = vunpack.c.l.b16 %v359
        %v1437 = vunpack.c.h.b16 %v359
        %v1438 = vunpack.c.l.b16 %v360
        %v1439 = vunpack.c.h.b16 %v360
        %v1440 = vunpack.c.l.b16 %v361
        %v1441 = vunpack.c.h.b16 %v361
        %v1442 = vunpack.c.l.b16 %v362
        %v1443 = vunpack.c.h.b16 %v362
        %v1444 = vunpack.c.l.b16 %v363
        %v1445 = vunpack.c.h.b16 %v363
        %v1446 = vunpack.c.l.b16 %v364
        %v1447 = vunpack.c.h.b16 %v364
        %v1448 = vunpack.c.l.b16 %v365
        %v1449 = vunpack.c.h.b16 %v365
        %v1450 = vunpack.c.l.b16 %v366
        %v1451 = vunpack.c.h.b16 %v366
        %v1452 = vunpack.c.l.b16 %v367
        %v1453 = vunpack.c.h.b16 %v367
        %v1454 = vunpack.c.l.b16 %v368
        %v1455 = vunpack.c.h.b16 %v368
        %v1456 = vunpack.c.l.b16 %v369
        %v1457 = vunpack.c.h.b16 %v369
        %v1458 = vunpack.c.l.b16 %v370
        %v1459 = vunpack.c.h.b16 %v370
        %v1460 = vunpack.c.l.b16 %v371
        %v1461 = vunpack.c.h.b16 %v371
        %v1462 = vunpack.c.l.b16 %v372
        %v1463 = vunpack.c.h.b16 %v372
        %v1464 = vunpack.c.l.b16 %v373
        %v1465 = vunpack.c.h.b16 %v373
        %v1466 = vunpack.c.l.b16 %v374
        %v1467 = vunpack.c.h.b16 %v374
        %v1468 = vunpack.c.l.b16 %v375
        %v1469 = vunpack.c.h.b16 %v375
        %v1470 = vunpack.c.l.b16 %v376
        %v1471 = vunpack.c.h.b16 %v376
        %v1472 = vunpack.c.l.b16 %v377
        %v1473 = vunpack.c.h.b16 %v377
        %v1474 = vunpack.c.l.b16 %v378
        %v1475 = vunpack.c.h.b16 %v378
        %v1476 = vunpack.c.l.b16 %v379
        %v1477 = vunpack.c.h.b16 %v379
        %v1478 = vunpack.c.l.b16 %v380
        %v1479 = vunpack.c.h.b16 %v380
        %v1480 = vunpack.c.l.b16 %v381
        %v1481 = vunpack.c.h.b16 %v381
        %v1482 = vunpack.c.l.b16 %v382
        %v1483 = vunpack.c.h.b16 %v382
        %v1484 = vunpack.c.l.b16 %v383
        %v1485 = vunpack.c.h.b16 %v383
        %v1486 = vunpack.c.l.b16 %v384
        %v1487 = vunpack.c.h.b16 %v384
        %v1488 = vunpack.c.l.b16 %v385
        %v1489 = vunpack.c.h.b16 %v385
        %v1490 = vunpack.c.l.b16 %v386
        %v1491 = vunpack.c.h.b16 %v386
        %v1492 = vunpack.c.l.b16 %v387
        %v1493 = vunpack.c.h.b16 %v387
        %v1494 = vunpack.c.l.b16 %v388
        %v1495 = vunpack.c.h.b16 %v388
        %v1496 = vunpack.c.l.b16 %v389
        %v1497 = vunpack.c.h.b16 %v389
        %v1498 = vunpack.c.l.b16 %v390
        %v1499 = vunpack.c.h.b16 %v390
        %v1500 = vunpack.c.l.b16 %v391
        %v1501 = vunpack.c.h.b16 %v391
        %v1502 = vunpack.c.l.b16 %v392
        %v1503 = vunpack.c.h.b16 %v392
        %v1504 = vunpack.c.l.b16 %v393
        %v1505 = vunpack.c.h.b16 %v393
        %v1506 = vunpack.c.l.b16 %v394
        %v1507 = vunpack.c.h.b16 %v394
        %v1508 = vunpack.c.l.b16 %v395
        %v1509 = vunpack.c.h.b16 %v395
        %v1510 = vunpack.c.l.b16 %v396
        %v1511 = vunpack.c.h.b16 %v396
        %v1512 = vunpack.c.l.b16 %v397
        %v1513 = vunpack.c.h.b16 %v397
        %v1514 = vunpack.c.l.b16 %v398
        %v1515 = vunpack.c.h.b16 %v398
        %v1516 = vunpack.c.l.b16 %v399
        %v1517 = vunpack.c.h.b16 %v399
        %v1518 = vunpack.c.l.b16 %v400
        %v1519 = vunpack.c.h.b16 %v400
        %v1520 = vunpack.c.l.b16 %v401
        %v1521 = vunpack.c.h.b16 %v401
        %v1522 = vunpack.c.l.b16 %v402
        %v1523 = vunpack.c.h.b16 %v402
        %v1524 = vunpack.c.l.b16 %v403
        %v1525 = vunpack.c.h.b16 %v403
        %v1526 = vunpack.c.l.b16 %v404
        %v1527 = vunpack.c.h.b16 %v404
        %v1528 = vunpack.c.l.b16 %v405
        %v1529 = vunpack.c.h.b16 %v405
        %v1530 = vunpack.c.l.b16 %v406
        %v1531 = vunpack.c.h.b16 %v406
        %v1532 = vunpack.c.l.b16 %v407
        %v1533 = vunpack.c.h.b16 %v407
        %v1534 = vunpack.c.l.b16 %v408
        %v1535 = vunpack.c.h.b16 %v408
        %v1536 = vunpack.c.l.b16 %v409
        %v1537 = vunpack.c.h.b16 %v409
        %v1538 = vunpack.c.l.b16 %v410
        %v1539 = vunpack.c.h.b16 %v410
        %v1540 = vunpack.c.l.b16 %v411
        %v1541 = vunpack.c.h.b16 %v411
        %v1542 = vunpack.c.l.b16 %v412
        %v1543 = vunpack.c.h.b16 %v412
        %v1544 = vunpack.c.l.b16 %v413
        %v1545 = vunpack.c.h.b16 %v413
        %v1546 = vunpack.c.l.b16 %v414
        %v1547 = vunpack.c.h.b16 %v414
        %v1548 = vunpack.c.l.b16 %v415
        %v1549 = vunpack.c.h.b16 %v415
        %v1550 = vunpack.c.l.b16 %v416
        %v1551 = vunpack.c.h.b16 %v416
        %v1552 = vunpack.c.l.b16 %v417
        %v1553 = vunpack.c.h.b16 %v417
        %v1554 = vunpack.c.l.b16 %v418
        %v1555 = vunpack.c.h.b16 %v418
        %v1556 = vunpack.c.l.b16 %v419
        %v1557 = vunpack.c.h.b16 %v419
        %v1558 = vunpack.c.l.b16 %v420
        %v1559 = vunpack.c.h.b16 %v420
        %v1560 = vunpack.c.l.b16 %v421
        %v1561 = vunpack.c.h.b16 %v421
        %v1562 = vunpack.c.l.b16 %v422
        %v1563 = vunpack.c.h.b16 %v422
        %v1564 = vunpack.c.l.b16 %v423
        %v1565 = vunpack.c.h.b16 %v423
        %v1566 = vunpack.c.l.b16 %v424
        %v1567 = vunpack.c.h.b16 %v424
        %v1568 = vunpack.c.l.b16 %v425
        %v1569 = vunpack.c.h.b16 %v425
        %v1570 = vunpack.c.l.b16 %v426
        %v1571 = vunpack.c.h.b16 %v426
        %v1572 = vunpack.c.l.b16 %v427
        %v1573 = vunpack.c.h.b16 %v427
        %v1574 = vunpack.c.l.b16 %v428
        %v1575 = vunpack.c.h.b16 %v428
        %v1576 = vunpack.c.l.b16 %v429
        %v1577 = vunpack.c.h.b16 %v429
        %v1578 = vunpack.c.l.b16 %v430
        %v1579 = vunpack.c.h.b16 %v430
        %v1580 = vunpack.c.l.b16 %v431
        %v1581 = vunpack.c.h.b16 %v431
        %v1582 = vunpack.c.l.b16 %v432
        %v1583 = vunpack.c.h.b16 %v432
        %v1584 = vunpack.c.l.b16 %v433
        %v1585 = vunpack.c.h.b16 %v433
        %v1586 = vunpack.c.l.b16 %v434
        %v1587 = vunpack.c.h.b16 %v434
        %v1588 = vunpack.c.l.b16 %v435
        %v1589 = vunpack.c.h.b16 %v435
        %v1590 = vunpack.c.l.b16 %v436
        %v1591 = vunpack.c.h.b16 %v436
        %v1592 = vunpack.c.l.b16 %v437
        %v1593 = vunpack.c.h.b16 %v437
        %v1594 = vunpack.c.l.b16 %v438
        %v1595 = vunpack.c.h.b16 %v438
        %v1596 = vunpack.c.l.b16 %v439
        %v1597 = vunpack.c.h.b16 %v439
        %v1598 = vunpack.c.l.b16 %v440
        %v1599 = vunpack.c.h.b16 %v440
        %v1600 = vunpack.c.l.b16 %v441
        %v1601 = vunpack.c.h.b16 %v441
        %v1602 = vunpack.c.l.b16 %v442
        %v1603 = vunpack.c.h.b16 %v442
        %v1604 = vunpack.c.l.b16 %v443
        %v1605 = vunpack.c.h.b16 %v443
        %v1606 = vunpack.c.l.b16 %v444
        %v1607 = vunpack.c.h.b16 %v444
        %v1608 = vunpack.c.l.b16 %v445
        %v1609 = vunpack.c.h.b16 %v445
        %v1610 = vunpack.c.l.b16 %v446
        %v1611 = vunpack.c.h.b16 %v446
        %v1612 = vunpack.c.l.b16 %v447
        %v1613 = vunpack.c.h.b16 %v447
        %v1614 = vunpack.c.l.b16 %v448
        %v1615 = vunpack.c.h.b16 %v448
        %v1616 = vunpack.c.l.b16 %v449
        %v1617 = vunpack.c.h.b16 %v449
        %v1618 = vunpack.c.l.b16 %v450
        %v1619 = vunpack.c.h.b16 %v450
        %v1620 = vunpack.c.l.b16 %v451
        %v1621 = vunpack.c.h.b16 %v451
        %v1622 = vunpack.c.l.b16 %v452
        %v1623 = vunpack.c.h.b16 %v452
        %v1624 = vunpack.c.l.b16 %v453
        %v1625 = vunpack.c.h.b16 %v453
        %v1626 = vunpack.c.l.b16 %v454
        %v1627 = vunpack.c.h.b16 %v454
        %v1628 = vunpack.c.l.b16 %v455
        %v1629 = vunpack.c.h.b16 %v455
        %v1630 = vunpack.c.l.b16 %v456
        %v1631 = vunpack.c.h.b16 %v456
        %v1632 = vunpack.c.l.b16 %v457
        %v1633 = vunpack.c.h.b16 %v457
        %v1634 = vunpack.c.l.b16 %v458
        %v1635 = vunpack.c.h.b16 %v458
        %v1636 = vunpack.c.l.b16 %v459
        %v1637 = vunpack.c.h.b16 %v459
        %v1638 = vunpack.c.l.b16 %v460
        %v1639 = vunpack.c.h.b16 %v460
        %v1640 = vunpack.c.l.b16 %v461
        %v1641 = vunpack.c.h.b16 %v461
        %v1642 = vunpack.c.l.b16 %v462
        %v1643 = vunpack.c.h.b16 %v462
        %v1644 = vunpack.c.l.b16 %v463
        %v1645 = vunpack.c.h.b16 %v463
        %v1646 = vunpack.c.l.b16 %v464
        %v1647 = vunpack.c.h.b16 %v464
        %v1648 = vunpack.c.l.b16 %v465
        %v1649 = vunpack.c.h.b16 %v465
        %v1650 = vunpack.c.l.b16 %v466
        %v1651 = vunpack.c.h.b16 %v466
        %v1652 = vunpack.c.l.b16 %v467
        %v1653 = vunpack.c.h.b16 %v467
        %v1654 = vunpack.c.l.b16 %v468
        %v1655 = vunpack.c.h.b16 %v468
        %v1656 = vunpack.c.l.b16 %v469
        %v1657 = vunpack.c.h.b16 %v469
        %v1658 = vunpack.c.l.b16 %v470
        %v1659 = vunpack.c.h.b16 %v470
        %v1660 = vunpack.c.l.b16 %v471
        %v1661 = vunpack.c.h.b16 %v471
        %v1662 = vunpack.c.l.b16 %v472
        %v1663 = vunpack.c.h.b16 %v472
        %v1664 = vunpack.c.l.b16 %v473
        %v1665 = vunpack.c.h.b16 %v473
        %v1666 = vunpack.c.l.b16 %v474
        %v1667 = vunpack.c.h.b16 %v474
        %v1668 = vunpack.c.l.b16 %v475
        %v1669 = vunpack.c.h.b16 %v475
        %v1670 = vunpack.c.l.b16 %v476
        %v1671 = vunpack.c.h.b16 %v476
        %v1672 = vunpack.c.l.b16 %v477
        %v1673 = vunpack.c.h.b16 %v477
        %v1674 = vunpack.c.l.b16 %v478
        %v1675 = vunpack.c.h.b16 %v478
        %v1676 = vunpack.c.l.b16 %v479
        %v1677 = vunpack.c.h.b16 %v479
        %v1678 = vunpack.c.l.b16 %v480
        %v1679 = vunpack.c.h.b16 %v480
        %v1680 = vunpack.c.l.b16 %v481
        %v1681 = vunpack.c.h.b16 %v481
        %v1682 = vunpack.c.l.b16 %v482
        %v1683 = vunpack.c.h.b16 %v482
        %v1684 = vunpack.c.l.b16 %v483
        %v1685 = vunpack.c.h.b16 %v483
        %v1686 = vunpack.c.l.b16 %v484
        %v1687 = vunpack.c.h.b16 %v484
        %v1688 = vunpack.c.l.b16 %v485
        %v1689 = vunpack.c.h.b16 %v485
        %v1690 = vunpack.c.l.b16 %v486
        %v1691 = vunpack.c.h.b16 %v486
        %v1692 = vunpack.c.l.b16 %v487
        %v1693 = vunpack.c.h.b16 %v487
        %v1694 = vunpack.c.l.b16 %v488
        %v1695 = vunpack.c.h.b16 %v488
        %v1696 = vunpack.c.l.b16 %v489
        %v1697 = vunpack.c.h.b16 %v489
        %v1698 = vunpack.c.l.b16 %v490
        %v1699 = vunpack.c.h.b16 %v490
        %v1700 = vunpack.c.l.b16 %v491
        %v1701 = vunpack.c.h.b16 %v491
        %v1702 = vunpack.c.l.b16 %v492
        %v1703 = vunpack.c.h.b16 %v492
        %v1704 = vunpack.c.l.b16 %v493
        %v1705 = vunpack.c.h.b16 %v493
        %v1706 = vunpack.c.l.b16 %v494
        %v1707 = vunpack.c.h.b16 %v494
        %v1708 = vunpack.c.l.b16 %v495
        %v1709 = vunpack.c.h.b16 %v495
        %v1710 = vunpack.c.l.b16 %v496
        %v1711 = vunpack.c.h.b16 %v496
        %v1712 = vunpack.c.l.b16 %v497
        %v1713 = vunpack.c.h.b16 %v497
        %v1714 = vunpack.c.l.b16 %v498
        %v1715 = vunpack.c.h.b16 %v498
        %v1716 = vunpack.c.l.b16 %v499
        %v1717 = vunpack.c.h.b16 %v499
        %v1718 = vunpack.c.l.b16 %v500
        %v1719 = vunpack.c.h.b16 %v500
        %v1720 = vunpack.c.l.b16 %v501
        %v1721 = vunpack.c.h.b16 %v501
        %v1722 = vunpack.c.l.b16 %v502
        %v1723 = vunpack.c.h.b16 %v502
        %v1724 = vunpack.c.l.b16 %v503
        %v1725 = vunpack.c.h.b16 %v503
        %v1726 = vunpack.c.l.b16 %v504
        %v1727 = vunpack.c.h.b16 %v504
        %v1728 = vunpack.c.l.b16 %v505
        %v1729 = vunpack.c.h.b16 %v505
        %v1730 = vunpack.c.l.b16 %v506
        %v1731 = vunpack.c.h.b16 %v506
        %v1732 = vunpack.c.l.b16 %v507
        %v1733 = vunpack.c.h.b16 %v507
        %v1734 = vunpack.c.l.b16 %v508
        %v1735 = vunpack.c.h.b16 %v508
        %v1736 = vunpack.c.l.b16 %v509
        %v1737 = vunpack.c.h.b16 %v509
        %v1738 = vunpack.c.l.b16 %v510
        %v1739 = vunpack.c.h.b16 %v510
        %v1740 = vunpack.c.l.b16 %v511
        %v1741 = vunpack.c.h.b16 %v511
        %v1742 = vunpack.c.l.b16 %v512
        %v1743 = vunpack.c.h.b16 %v512
        %v1744 = vunpack.c.l.b16 %v513
        %v1745 = vunpack.c.h.b16 %v513
        %v1746 = vunpack.c.l.b16 %v514
        %v1747 = vunpack.c.h.b16 %v514
        %v1748 = vunpack.c.l.b16 %v515
        %v1749 = vunpack.c.h.b16 %v515
        %v1750 = vunpack.c.l.b16 %v516
        %v1751 = vunpack.c.h.b16 %v516
        %v1752 = vunpack.c.l.b16 %v517
        %v1753 = vunpack.c.h.b16 %v517
        %v1754 = vunpack.c.l.b16 %v518
        %v1755 = vunpack.c.h.b16 %v518
        %v1756 = vunpack.c.l.b16 %v519
        %v1757 = vunpack.c.h.b16 %v519
        %v1758 = vunpack.c.l.b16 %v520
        %v1759 = vunpack.c.h.b16 %v520
        %v1760 = vunpack.c.l.b16 %v521
        %v1761 = vunpack.c.h.b16 %v521
        %v1762 = vunpack.c.l.b16 %v522
        %v1763 = vunpack.c.h.b16 %v522
        %v1764 = vunpack.c.l.b16 %v523
        %v1765 = vunpack.c.h.b16 %v523
        %v1766 = vunpack.c.l.b16 %v524
        %v1767 = vunpack.c.h.b16 %v524
        %v1768 = vunpack.c.l.b16 %v525
        %v1769 = vunpack.c.h.b16 %v525
        %v1770 = vunpack.c.l.b16 %v526
        %v1771 = vunpack.c.h.b16 %v526
        %v1772 = vunpack.c.l.b16 %v527
        %v1773 = vunpack.c.h.b16 %v527
        %v1774 = vunpack.c.l.b16 %v528
        %v1775 = vunpack.c.h.b16 %v528
        %v1776 = vunpack.c.l.b16 %v529
        %v1777 = vunpack.c.h.b16 %v529
        %v1778 = vunpack.c.l.b16 %v530
        %v1779 = vunpack.c.h.b16 %v530
        %v1780 = vunpack.c.l.b16 %v531
        %v1781 = vunpack.c.h.b16 %v531
        %v1782 = vunpack.c.l.b16 %v532
        %v1783 = vunpack.c.h.b16 %v532
        %v1784 = vunpack.c.l.b16 %v533
        %v1785 = vunpack.c.h.b16 %v533
        %v1786 = vunpack.c.l.b16 %v534
        %v1787 = vunpack.c.h.b16 %v534
        %v1788 = vunpack.c.l.b16 %v535
        %v1789 = vunpack.c.h.b16 %v535
        %v1790 = vunpack.c.l.b16 %v536
        %v1791 = vunpack.c.h.b16 %v536
        %v1792 = vunpack.c.l.b16 %v537
        %v1793 = vunpack.c.h.b16 %v537
        %v1794 = vunpack.c.l.b16 %v538
        %v1795 = vunpack.c.h.b16 %v538
        %v1796 = vunpack.c.l.b16 %v539
        %v1797 = vunpack.c.h.b16 %v539
        %v1798 = vunpack.c.l.b16 %v540
        %v1799 = vunpack.c.h.b16 %v540
        %v1800 = vunpack.c.l.b16 %v541
        %v1801 = vunpack.c.h.b16 %v541
        %v1802 = vunpack.c.l.b16 %v542
        %v1803 = vunpack.c.h.b16 %v542
        %v1804 = vunpack.c.l.b16 %v543
        %v1805 = vunpack.c.h.b16 %v543
        %v1806 = vunpack.c.l.b16 %v544
        %v1807 = vunpack.c.h.b16 %v544
        %v1808 = vunpack.c.l.b16 %v545
        %v1809 = vunpack.c.h.b16 %v545
        %v1810 = vunpack.c.l.b16 %v546
        %v1811 = vunpack.c.h.b16 %v546
        %v1812 = vunpack.c.l.b16 %v547
        %v1813 = vunpack.c.h.b16 %v547
        %v1814 = vunpack.c.l.b16 %v548
        %v1815 = vunpack.c.h.b16 %v548
        %v1816 = vunpack.c.l.b16 %v549
        %v1817 = vunpack.c.h.b16 %v549
        %v1818 = vunpack.c.l.b16 %v550
        %v1819 = vunpack.c.h.b16 %v550
        %v1820 = vunpack.c.l.b16 %v551
        %v1821 = vunpack.c.h.b16 %v551
        %v1822 = vunpack.c.l.b16 %v552
        %v1823 = vunpack.c.h.b16 %v552
        %v1824 = vunpack.c.l.b16 %v553
        %v1825 = vunpack.c.h.b16 %v553
        %v1826 = vunpack.c.l.b16 %v554
        %v1827 = vunpack.c.h.b16 %v554
        %v1828 = vunpack.c.l.b16 %v555
        %v1829 = vunpack.c.h.b16 %v555
        %v1830 = vunpack.c.l.b16 %v556
        %v1831 = vunpack.c.h.b16 %v556
        %v1832 = vunpack.c.l.b16 %v557
        %v1833 = vunpack.c.h.b16 %v557
        %v1834 = vunpack.c.l.b16 %v558
        %v1835 = vunpack.c.h.b16 %v558
        %v1836 = vunpack.c.l.b16 %v559
        %v1837 = vunpack.c.h.b16 %v559
        %v1838 = vunpack.c.l.b16 %v560
        %v1839 = vunpack.c.h.b16 %v560
        %v1840 = vunpack.c.l.b16 %v561
        %v1841 = vunpack.c.h.b16 %v561
        %v1842 = vunpack.c.l.b16 %v562
        %v1843 = vunpack.c.h.b16 %v562
        %v1844 = vunpack.c.l.b16 %v563
        %v1845 = vunpack.c.h.b16 %v563
        %v1846 = vunpack.c.l.b16 %v564
        %v1847 = vunpack.c.h.b16 %v564
        %v1848 = vunpack.c.l.b16 %v565
        %v1849 = vunpack.c.h.b16 %v565
        %v1850 = vunpack.c.l.b16 %v566
        %v1851 = vunpack.c.h.b16 %v566
        %v1852 = vunpack.c.l.b16 %v567
        %v1853 = vunpack.c.h.b16 %v567
        %v1854 = vunpack.c.l.b16 %v568
        %v1855 = vunpack.c.h.b16 %v568
        %v1856 = vunpack.c.l.b16 %v569
        %v1857 = vunpack.c.h.b16 %v569
        %v1858 = vunpack.c.l.b16 %v570
        %v1859 = vunpack.c.h.b16 %v570
        %v1860 = vunpack.c.l.b16 %v571
        %v1861 = vunpack.c.h.b16 %v571
        %v1862 = vunpack.c.l.b16 %v572
        %v1863 = vunpack.c.h.b16 %v572
        %v1864 = vunpack.c.l.b16 %v573
        %v1865 = vunpack.c.h.b16 %v573
        %v1866 = vunpack.c.l.b16 %v574
        %v1867 = vunpack.c.h.b16 %v574
        %v1868 = vunpack.c.l.b16 %v575
        %v1869 = vunpack.c.h.b16 %v575
        %v1870 = vunpack.c.l.b16 %v576
        %v1871 = vunpack.c.h.b16 %v576
        %v1872 = vunpack.c.l.b16 %v577
        %v1873 = vunpack.c.h.b16 %v577
        %v1874 = vunpack.c.l.b16 %v578
        %v1875 = vunpack.c.h.b16 %v578
        %v1876 = vunpack.c.l.b16 %v579
        %v1877 = vunpack.c.h.b16 %v579
        %v1878 = vunpack.c.l.b16 %v580
        %v1879 = vunpack.c.h.b16 %v580
        %v1880 = vunpack.c.l.b16 %v581
        %v1881 = vunpack.c.h.b16 %v581
        %v1882 = vunpack.c.l.b16 %v582
        %v1883 = vunpack.c.h.b16 %v582
        %v1884 = vunpack.c.l.b16 %v583
        %v1885 = vunpack.c.h.b16 %v583
        %v1886 = vunpack.c.l.b16 %v584
        %v1887 = vunpack.c.h.b16 %v584
        %v1888 = vunpack.c.l.b16 %v585
        %v1889 = vunpack.c.h.b16 %v585
        %v1890 = vunpack.c.l.b16 %v586
        %v1891 = vunpack.c.h.b16 %v586
        %v1892 = vunpack.c.l.b16 %v587
        %v1893 = vunpack.c.h.b16 %v587
        %v1894 = vunpack.c.l.b16 %v588
        %v1895 = vunpack.c.h.b16 %v588
        %v1896 = vunpack.c.l.b16 %v589
        %v1897 = vunpack.c.h.b16 %v589
        %v1898 = vunpack.c.l.b16 %v590
        %v1899 = vunpack.c.h.b16 %v590
        %v1900 = vunpack.c.l.b16 %v591
        %v1901 = vunpack.c.h.b16 %v591
        %v1902 = vunpack.c.l.b16 %v592
        %v1903 = vunpack.c.h.b16 %v592
        %v1904 = vunpack.c.l.b16 %v593
        %v1905 = vunpack.c.h.b16 %v593
        %v1906 = vunpack.c.l.b16 %v594
        %v1907 = vunpack.c.h.b16 %v594
        %v1908 = vunpack.c.l.b16 %v595
        %v1909 = vunpack.c.h.b16 %v595
        %v1910 = vunpack.c.l.b16 %v596
        %v1911 = vunpack.c.h.b16 %v596
        %v1912 = vunpack.c.l.b16 %v597
        %v1913 = vunpack.c.h.b16 %v597
        %v1914 = vunpack.c.l.b16 %v598
        %v1915 = vunpack.c.h.b16 %v598
        %v1916 = vunpack.c.l.b16 %v599
        %v1917 = vunpack.c.h.b16 %v599
        %v1918 = vunpack.c.l.b16 %v600
        %v1919 = vunpack.c.h.b16 %v600
        %v1920 = vunpack.c.l.b16 %v601
        %v1921 = vunpack.c.h.b16 %v601
        %v1922 = vunpack.c.l.b16 %v602
        %v1923 = vunpack.c.h.b16 %v602
        %v1924 = vunpack.c.l.b16 %v603
        %v1925 = vunpack.c.h.b16 %v603
        %v1926 = vunpack.c.l.b16 %v604
        %v1927 = vunpack.c.h.b16 %v604
        %v1928 = vunpack.c.l.b16 %v605
        %v1929 = vunpack.c.h.b16 %v605
        %v1930 = vunpack.c.l.b16 %v606
        %v1931 = vunpack.c.h.b16 %v606
        %v1932 = vunpack.c.l.b16 %v607
        %v1933 = vunpack.c.h.b16 %v607
        %v1934 = vunpack.c.l.b16 %v608
        %v1935 = vunpack.c.h.b16 %v608
        %v1936 = vunpack.c.l.b16 %v609
        %v1937 = vunpack.c.h.b16 %v609
        %v1938 = vunpack.c.l.b16 %v610
        %v1939 = vunpack.c.h.b16 %v610
        %v1940 = vunpack.c.l.b16 %v611
        %v1941 = vunpack.c.h.b16 %v611
        %v1942 = vunpack.c.l.b16 %v612
        %v1943 = vunpack.c.h.b16 %v612
        %v1944 = vunpack.c.l.b16 %v613
        %v1945 = vunpack.c.h.b16 %v613
        %v1946 = vunpack.c.l.b16 %v614
        %v1947 = vunpack.c.h.b16 %v614
        %v1948 = vunpack.c.l.b16 %v615
        %v1949 = vunpack.c.h.b16 %v615
        %v1950 = vunpack.c.l.b16 %v616
        %v1951 = vunpack.c.h.b16 %v616
        %v1952 = vunpack.c.l.b16 %v617
        %v1953 = vunpack.c.h.b16 %v617
        %v1954 = vunpack.c.l.b16 %v618
        %v1955 = vunpack.c.h.b16 %v618
        %v1956 = vunpack.c.l.b16 %v619
        %v1957 = vunpack.c.h.b16 %v619
        %v1958 = vunpack.c.l.b16 %v620
        %v1959 = vunpack.c.h.b16 %v620
        %v1960 = vunpack.c.l.b16 %v621
        %v1961 = vunpack.c.h.b16 %v621
        %v1962 = vunpack.c.l.b16 %v622
        %v1963 = vunpack.c.h.b16 %v622
        %v1964 = vunpack.c.l.b16 %v623
        %v1965 = vunpack.c.h.b16 %v623
        %v1966 = vunpack.c.l.b16 %v624
        %v1967 = vunpack.c.h.b16 %v624
        %v1968 = vunpack.c.l.b16 %v625
        %v1969 = vunpack.c.h.b16 %v625
        %v1970 = vunpack.c.l.b16 %v626
        %v1971 = vunpack.c.h.b16 %v626
        %v1972 = vunpack.c.l.b16 %v627
        %v1973 = vunpack.c.h.b16 %v627
        %v1974 = vunpack.c.l.b16 %v628
        %v1975 = vunpack.c.h.b16 %v628
        %v1976 = vunpack.c.l.b16 %v629
        %v1977 = vunpack.c.h.b16 %v629
        %v1978 = vunpack.c.l.b16 %v630
        %v1979 = vunpack.c.h.b16 %v630
        %v1980 = vunpack.c.l.b16 %v631
        %v1981 = vunpack.c.h.b16 %v631
        %v1982 = vunpack.c.l.b16 %v632
        %v1983 = vunpack.c.h.b16 %v632
        %v1984 = vunpack.c.l.b16 %v633
        %v1985 = vunpack.c.h.b16 %v633
        %v1986 = vunpack.c.l.b16 %v634
        %v1987 = vunpack.c.h.b16 %v634
        %v1988 = vunpack.c.l.b16 %v635
        %v1989 = vunpack.c.h.b16 %v635
        %v1990 = vunpack.c.l.b16 %v636
        %v1991 = vunpack.c.h.b16 %v636
        %v1992 = vunpack.c.l.b16 %v637
        %v1993 = vunpack.c.h.b16 %v637
        %v1994 = vunpack.c.l.b16 %v638
        %v1995 = vunpack.c.h.b16 %v638
        %v1996 = vunpack.c.l.b16 %v639
        %v1997 = vunpack.c.h.b16 %v639
        %v1998 = vunpack.c.l.b16 %v640
        %v1999 = vunpack.c.h.b16 %v640
        %v2000 = vunpack.c.l.b16 %v641
        %v2001 = vunpack.c.h.b16 %v641
        %v2002 = vunpack.c.l.b16 %v642
        %v2003 = vunpack.c.h.b16 %v642
        %v2004 = vunpack.c.l.b16 %v643
        %v2005 = vunpack.c.h.b16 %v643
        %v2006 = vunpack.c.l.b16 %v644
        %v2007 = vunpack.c.h.b16 %v644
        %v2008 = vunpack.c.l.b16 %v645
        %v2009 = vunpack.c.h.b16 %v645
        %v2010 = vunpack.c.l.b16 %v646
        %v2011 = vunpack.c.h.b16 %v646
        %v2012 = vunpack.c.l.b16 %v647
        %v2013 = vunpack.c.h.b16 %v647
        %v2014 = vunpack.c.l.b16 %v648
        %v2015 = vunpack.c.h.b16 %v648
        %v2016 = vunpack.c.l.b16 %v649
        %v2017 = vunpack.c.h.b16 %v649
        %v2018 = vunpack.c.l.b16 %v650
        %v2019 = vunpack.c.h.b16 %v650
        %v2020 = vunpack.c.l.b16 %v651
        %v2021 = vunpack.c.h.b16 %v651
        %v2022 = vunpack.c.l.b16 %v652
        %v2023 = vunpack.c.h.b16 %v652
        %v2024 = vunpack.c.l.b16 %v653
        %v2025 = vunpack.c.h.b16 %v653
        %v2026 = vunpack.c.l.b16 %v654
        %v2027 = vunpack.c.h.b16 %v654
        %v2028 = vunpack.c.l.b16 %v655
        %v2029 = vunpack.c.h.b16 %v655
        %v2030 = vunpack.c.l.b16 %v656
        %v2031 = vunpack.c.h.b16 %v656
        %v2032 = vunpack.c.l.b16 %v657
        %v2033 = vunpack.c.h.b16 %v657
        %v2034 = vunpack.c.l.b16 %v658
        %v2035 = vunpack.c.h.b16 %v658
        %v2036 = vunpack.c.l.b16 %v659
        %v2037 = vunpack.c.h.b16 %v659
        %v2038 = vunpack.c.l.b16 %v660
        %v2039 = vunpack.c.h.b16 %v660
        %v2040 = vunpack.c.l.b16 %v661
        %v2041 = vunpack.c.h.b16 %v661
        %v2042 = vunpack.c.l.b16 %v662
        %v2043 = vunpack.c.h.b16 %v662
        %v2044 = vunpack.c.l.b16 %v663
        %v2045 = vunpack.c.h.b16 %v663
        %v2046 = vunpack.c.l.b16 %v664
        %v2047 = vunpack.c.h.b16 %v664
        %v2048 = vunpack.c.l.b16 %v665
        %v2049 = vunpack.c.h.b16 %v665
        %v2050 = vunpack.c.l.b16 %v666
        %v2051 = vunpack.c.h.b16 %v666
        %v2052 = vunpack.c.l.b16 %v667
        %v2053 = vunpack.c.h.b16 %v667
        %v2054 = vunpack.c.l.b16 %v668
        %v2055 = vunpack.c.h.b16 %v668
        %v2056 = vunpack.c.l.b16 %v669
        %v2057 = vunpack.c.h.b16 %v669
        %v2058 = vunpack.c.l.b16 %v670
        %v2059 = vunpack.c.h.b16 %v670
        %v2060 = vunpack.c.l.b16 %v671
        %v2061 = vunpack.c.h.b16 %v671
        %v2062 = vunpack.c.l.b16 %v672
        %v2063 = vunpack.c.h.b16 %v672
        %v2064 = vunpack.c.l.b16 %v673
        %v2065 = vunpack.c.h.b16 %v673
        %v2066 = vunpack.c.l.b16 %v674
        %v2067 = vunpack.c.h.b16 %v674
        %v2068 = vunpack.c.l.b16 %v675
        %v2069 = vunpack.c.h.b16 %v675
        %v2070 = vunpack.c.l.b16 %v676
        %v2071 = vunpack.c.h.b16 %v676
        %v2072 = vunpack.c.l.b16 %v677
        %v2073 = vunpack.c.h.b16 %v677
        %v2074 = vunpack.c.l.b16 %v678
        %v2075 = vunpack.c.h.b16 %v678
        %v2076 = vunpack.c.l.b16 %v679
        %v2077 = vunpack.c.h.b16 %v679
        %v2078 = vunpack.c.l.b16 %v680
        %v2079 = vunpack.c.h.b16 %v680
        %v2080 = vunpack.c.l.b16 %v681
        %v2081 = vunpack.c.h.b16 %v681
        %v2082 = vunpack.c.l.b16 %v682
        %v2083 = vunpack.c.h.b16 %v682
        %v2084 = vunpack.c.l.b16 %v683
        %v2085 = vunpack.c.h.b16 %v683
        %v2086 = vunpack.c.l.b16 %v684
        %v2087 = vunpack.c.h.b16 %v684
        %v2088 = vunpack.c.l.b16 %v685
        %v2089 = vunpack.c.h.b16 %v685
        %v2090 = vunpack.c.l.b16 %v686
        %v2091 = vunpack.c.h.b16 %v686
        %v2092 = vunpack.c.l.b16 %v687
        %v2093 = vunpack.c.h.b16 %v687
        %v2094 = vunpack.c.l.b16 %v688
        %v2095 = vunpack.c.h.b16 %v688
        %v2096 = vunpack.c.l.b16 %v689
        %v2097 = vunpack.c.h.b16 %v689
        %v2098 = vunpack.c.l.b16 %v690
        %v2099 = vunpack.c.h.b16 %v690
        %v2100 = vunpack.c.l.b16 %v691
        %v2101 = vunpack.c.h.b16 %v691
        %v2102 = vunpack.c.l.b16 %v692
        %v2103 = vunpack.c.h.b16 %v692
        %v2104 = vunpack.c.l.b16 %v693
        %v2105 = vunpack.c.h.b16 %v693
        %v2106 = vunpack.c.l.b16 %v694
        %v2107 = vunpack.c.h.b16 %v694
        %v2108 = vunpack.c.l.b16 %v695
        %v2109 = vunpack.c.h.b16 %v695
        %v2110 = vunpack.c.l.b16 %v696
        %v2111 = vunpack.c.h.b16 %v696
        %v2112 = vunpack.c.l.b16 %v697
        %v2113 = vunpack.c.h.b16 %v697
        %v2114 = vunpack.c.l.b16 %v698
        %v2115 = vunpack.c.h.b16 %v698
        %v2116 = vunpack.c.l.b16 %v699
        %v2117 = vunpack.c.h.b16 %v699
        %v2118 = vunpack.c.l.b16 %v700
        %v2119 = vunpack.c.h.b16 %v700
        %v2120 = vunpack.c.l.b16 %v701
        %v2121 = vunpack.c.h.b16 %v701
        %v2122 = vunpack.c.l.b16 %v702
        %v2123 = vunpack.c.h.b16 %v702
        %v2124 = vunpack.c.l.b16 %v703
        %v2125 = vunpack.c.h.b16 %v703
        %v2126 = vunpack.c.l.b16 %v704
        %v2127 = vunpack.c.h.b16 %v704
        %v2128 = vunpack.c.l.b16 %v705
        %v2129 = vunpack.c.h.b16 %v705
        %v2130 = vunpack.c.l.b16 %v706
        %v2131 = vunpack.c.h.b16 %v706
        %v2132 = vunpack.c.l.b16 %v707
        %v2133 = vunpack.c.h.b16 %v707
        %v2134 = vunpack.c.l.b16 %v708
        %v2135 = vunpack.c.h.b16 %v708
        %v2136 = vunpack.c.l.b16 %v709
        %v2137 = vunpack.c.h.b16 %v709
        %v2138 = vunpack.c.l.b16 %v710
        %v2139 = vunpack.c.h.b16 %v710
        %v2140 = vunpack.c.l.b16 %v711
        %v2141 = vunpack.c.h.b16 %v711
        %v2142 = vunpack.c.l.b16 %v712
        %v2143 = vunpack.c.h.b16 %v712
        %v2144 = vunpack.c.l.b16 %v713
        %v2145 = vunpack.c.h.b16 %v713
        %v2146 = vunpack.c.l.b16 %v714
        %v2147 = vunpack.c.h.b16 %v714
        %v2148 = vunpack.c.l.b16 %v715
        %v2149 = vunpack.c.h.b16 %v715
        %v2150 = vunpack.c.l.b16 %v716
        %v2151 = vunpack.c.h.b16 %v716
        %v2152 = vunpack.c.l.b16 %v717
        %v2153 = vunpack.c.h.b16 %v717
        %v2154 = vunpack.c.l.b16 %v718
        %v2155 = vunpack.c.h.b16 %v718
        %v2156 = vunpack.c.l.b16 %v719
        %v2157 = vunpack.c.h.b16 %v719
        %v2158 = vunpack.c.l.b16 %v720
        %v2159 = vunpack.c.h.b16 %v720
        %v2160 = vunpack.c.l.b16 %v721
        %v2161 = vunpack.c.h.b16 %v721
        %v2162 = vunpack.c.l.b16 %v722
        %v2163 = vunpack.c.h.b16 %v722
        %v2164 = vunpack.c.l.b16 %v723
        %v2165 = vunpack.c.h.b16 %v723
        %v2166 = vunpack.c.l.b16 %v724
        %v2167 = vunpack.c.h.b16 %v724
        %v2168 = vunpack.c.l.b16 %v725
        %v2169 = vunpack.c.h.b16 %v725
        %v2170 = vunpack.c.l.b16 %v726
        %v2171 = vunpack.c.h.b16 %v726
        %v2172 = vunpack.c.l.b16 %v727
        %v2173 = vunpack.c.h.b16 %v727
        %v2174 = vunpack.c.l.b16 %v728
        %v2175 = vunpack.c.h.b16 %v728
        %v2176 = vunpack.c.l.b16 %v729
        %v2177 = vunpack.c.h.b16 %v729
        %v2178 = vunpack.c.l.b16 %v730
        %v2179 = vunpack.c.h.b16 %v730
        %v2180 = vunpack.c.l.b16 %v731
        %v2181 = vunpack.c.h.b16 %v731
        %v2182 = vunpack.c.l.b16 %v732
        %v2183 = vunpack.c.h.b16 %v732
        %v2184 = vunpack.c.l.b16 %v733
        %v2185 = vunpack.c.h.b16 %v733
        %v2186 = vunpack.c.l.b16 %v734
        %v2187 = vunpack.c.h.b16 %v734
        %v2188 = vunpack.c.l.b16 %v735
        %v2189 = vunpack.c.h.b16 %v735
        %v2190 = vunpack.c.l.b16 %v736
        %v2191 = vunpack.c.h.b16 %v736
        %v2192 = vunpack.c.l.b16 %v737
        %v2193 = vunpack.c.h.b16 %v737
        %v2194 = vunpack.c.l.b16 %v738
        %v2195 = vunpack.c.h.b16 %v738
        %v2196 = vunpack.c.l.b16 %v739
        %v2197 = vunpack.c.h.b16 %v739
        %v2198 = vunpack.c.l.b16 %v740
        %v2199 = vunpack.c.h.b16 %v740
        %v2200 = vunpack.c.l.b16 %v741
        %v2201 = vunpack.c.h.b16 %v741
        %v2202 = vunpack.c.l.b16 %v742
        %v2203 = vunpack.c.h.b16 %v742
        %v2204 = vunpack.c.l.b16 %v743
        %v2205 = vunpack.c.h.b16 %v743
        %v2206 = vunpack.c.l.b16 %v744
        %v2207 = vunpack.c.h.b16 %v744
        %v2208 = vunpack.c.l.b16 %v745
        %v2209 = vunpack.c.h.b16 %v745
        %v2210 = vunpack.c.l.b16 %v746
        %v2211 = vunpack.c.h.b16 %v746
        %v2212 = vunpack.c.l.b16 %v747
        %v2213 = vunpack.c.h.b16 %v747
        %v2214 = vunpack.c.l.b16 %v748
        %v2215 = vunpack.c.h.b16 %v748
        %v2216 = vunpack.c.l.b16 %v749
        %v2217 = vunpack.c.h.b16 %v749
        %v2218 = vunpack.c.l.b16 %v750
        %v2219 = vunpack.c.h.b16 %v750
        %v2220 = vunpack.c.l.b16 %v751
        %v2221 = vunpack.c.h.b16 %v751
        %v2222 = vunpack.c.l.b16 %v752
        %v2223 = vunpack.c.h.b16 %v752
        %v2224 = vunpack.c.l.b16 %v753
        %v2225 = vunpack.c.h.b16 %v753
        %v2226 = vunpack.c.l.b16 %v754
        %v2227 = vunpack.c.h.b16 %v754
        %v2228 = vunpack.c.l.b16 %v755
        %v2229 = vunpack.c.h.b16 %v755
        %v2230 = vunpack.c.l.b16 %v756
        %v2231 = vunpack.c.h.b16 %v756
        %v2232 = vunpack.c.l.b16 %v757
        %v2233 = vunpack.c.h.b16 %v757
        %v2234 = vunpack.c.l.b16 %v758
        %v2235 = vunpack.c.h.b16 %v758
        %v2236 = vunpack.c.l.b16 %v759
        %v2237 = vunpack.c.h.b16 %v759
        %v2238 = vunpack.c.l.b16 %v760
        %v2239 = vunpack.c.h.b16 %v760
        %v2240 = vunpack.c.l.b16 %v761
        %v2241 = vunpack.c.h.b16 %v761
        %v2242 = vunpack.c.l.b16 %v762
        %v2243 = vunpack.c.h.b16 %v762
        %v2244 = vunpack.c.l.b16 %v763
        %v2245 = vunpack.c.h.b16 %v763
        %v2246 = vunpack.c.l.b16 %v764
        %v2247 = vunpack.c.h.b16 %v764
        %v2248 = vunpack.c.l.b16 %v765
        %v2249 = vunpack.c.h.b16 %v765
        %v2250 = vunpack.c.l.b16 %v766
        %v2251 = vunpack.c.h.b16 %v766
        %v2252 = vunpack.c.l.b16 %v767
        %v2253 = vunpack.c.h.b16 %v767
        %v2254 = vunpack.c.l.b16 %v768
        %v2255 = vunpack.c.h.b16 %v768
        %v2256 = vunpack.c.l.b16 %v769
        %v2257 = vunpack.c.h.b16 %v769
        %v2258 = vunpack.c.l.b16 %v770
        %v2259 = vunpack.c.h.b16 %v770
        %v2260 = vunpack.c.l.b16 %v771
        %v2261 = vunpack.c.h.b16 %v771
        %v2262 = vunpack.c.l.b16 %v772
        %v2263 = vunpack.c.h.b16 %v772
        %v2264 = vunpack.c.l.b16 %v773
        %v2265 = vunpack.c.h.b16 %v773
        %v2266 = vunpack.c.l.b16 %v774
        %v2267 = vunpack.c.h.b16 %v774
        %v2268 = vunpack.c.l.b16 %v775
        %v2269 = vunpack.c.h.b16 %v775
        %v2270 = vunpack.c.l.b16 %v776
        %v2271 = vunpack.c.h.b16 %v776
        %v2272 = vunpack.c.l.b16 %v777
        %v2273 = vunpack.c.h.b16 %v777
        %v2274 = vunpack.c.l.b16 %v778
        %v2275 = vunpack.c.h.b16 %v778
        %v2276 = vunpack.c.l.b16 %v779
        %v2277 = vunpack.c.h.b16 %v779
        %v2278 = vunpack.c.l.b16 %v780
        %v2279 = vunpack.c.h.b16 %v780
        %v2280 = vunpack.c.l.b16 %v781
        %v2281 = vunpack.c.h.b16 %v781
        %v2282 = vunpack.c.l.b16 %v782
        %v2283 = vunpack.c.h.b16 %v782
        %v2284 = vunpack.c.l.b16 %v783
        %v2285 = vunpack.c.h.b16 %v783
        %v2286 = vunpack.c.l.b16 %v784
        %v2287 = vunpack.c.h.b16 %v784
        %v2288 = vunpack.c.l.b16 %v785
        %v2289 = vunpack.c.h.b16 %v785
        %v2290 = vunpack.c.l.b16 %v786
        %v2291 = vunpack.c.h.b16 %v786
        %v2292 = vunpack.c.l.b16 %v787
        %v2293 = vunpack.c.h.b16 %v787
        %v2294 = vunpack.c.l.b16 %v788
        %v2295 = vunpack.c.h.b16 %v788
        %v2296 = vunpack.c.l.b16 %v789
        %v2297 = vunpack.c.h.b16 %v789
        %v2298 = vunpack.c.l.b16 %v790
        %v2299 = vunpack.c.h.b16 %v790
        %v2300 = vunpack.c.l.b16 %v791
        %v2301 = vunpack.c.h.b16 %v791
        %v2302 = vunpack.c.l.b16 %v792
        %v2303 = vunpack.c.h.b16 %v792
        %v2304 = vunpack.c.l.b16 %v793
        %v2305 = vunpack.c.h.b16 %v793
        %v2306 = vunpack.c.l.b16 %v794
        %v2307 = vunpack.c.h.b16 %v794
        %v2308 = vunpack.c.l.b16 %v795
        %v2309 = vunpack.c.h.b16 %v795
        %v2310 = vunpack.c.l.b16 %v796
        %v2311 = vunpack.c.h.b16 %v796
        %v2312 = vunpack.c.l.b16 %v797
        %v2313 = vunpack.c.h.b16 %v797
        %v2314 = vunpack.c.l.b16 %v798
        %v2315 = vunpack.c.h.b16 %v798
        %v2316 = vunpack.c.l.b16 %v799
        %v2317 = vunpack.c.h.b16 %v799
        %v2318 = vunpack.c.l.b16 %v800
        %v2319 = vunpack.c.h.b16 %v800
        %v2320 = vunpack.c.l.b16 %v801
        %v2321 = vunpack.c.h.b16 %v801
        %v2322 = vunpack.c.l.b16 %v802
        %v2323 = vunpack.c.h.b16 %v802
        %v2324 = vunpack.c.l.b16 %v803
        %v2325 = vunpack.c.h.b16 %v803
        %v2326 = vunpack.c.l.b16 %v804
        %v2327 = vunpack.c.h.b16 %v804
        %v2328 = vunpack.c.l.b16 %v805
        %v2329 = vunpack.c.h.b16 %v805
        %v2330 = vunpack.c.l.b16 %v806
        %v2331 = vunpack.c.h.b16 %v806
        %v2332 = vunpack.c.l.b16 %v807
        %v2333 = vunpack.c.h.b16 %v807
        %v2334 = vunpack.c.l.b16 %v808
        %v2335 = vunpack.c.h.b16 %v808
        %v2336 = vunpack.c.l.b16 %v809
        %v2337 = vunpack.c.h.b16 %v809
        %v2338 = vunpack.c.l.b16 %v810
        %v2339 = vunpack.c.h.b16 %v810
        %v2340 = vunpack.c.l.b16 %v811
        %v2341 = vunpack.c.h.b16 %v811
        %v2342 = vunpack.c.l.b16 %v812
        %v2343 = vunpack.c.h.b16 %v812
        %v2344 = vunpack.c.l.b16 %v813
        %v2345 = vunpack.c.h.b16 %v813
        %v2346 = vunpack.c.l.b16 %v814
        %v2347 = vunpack.c.h.b16 %v814
        %v2348 = vunpack.c.l.b16 %v815
        %v2349 = vunpack.c.h.b16 %v815
        %v2350 = vunpack.c.l.b16 %v816
        %v2351 = vunpack.c.h.b16 %v816
        %v2352 = vunpack.c.l.b16 %v817
        %v2353 = vunpack.c.h.b16 %v817
        %v2354 = vunpack.c.l.b16 %v818
        %v2355 = vunpack.c.h.b16 %v818
        %v2356 = vunpack.c.l.b16 %v819
        %v2357 = vunpack.c.h.b16 %v819
        %v2358 = vunpack.c.l.b16 %v820
        %v2359 = vunpack.c.h.b16 %v820
        %v2360 = vunpack.c.l.b16 %v821
        %v2361 = vunpack.c.h.b16 %v821
        %v2362 = vunpack.c.l.b16 %v822
        %v2363 = vunpack.c.h.b16 %v822
        %v2364 = vunpack.c.l.b16 %v823
        %v2365 = vunpack.c.h.b16 %v823
        %v2366 = vunpack.c.l.b16 %v824
        %v2367 = vunpack.c.h.b16 %v824
        %v2368 = vunpack.c.l.b16 %v825
        %v2369 = vunpack.c.h.b16 %v825
        %v2370 = vunpack.c.l.b16 %v826
        %v2371 = vunpack.c.h.b16 %v826
        %v2372 = vunpack.c.l.b16 %v827
        %v2373 = vunpack.c.h.b16 %v827
        %v2374 = vunpack.c.l.b16 %v828
        %v2375 = vunpack.c.h.b16 %v828
        %v2376 = vunpack.c.l.b16 %v829
        %v2377 = vunpack.c.h.b16 %v829
        %v2378 = vunpack.c.l.b16 %v830
        %v2379 = vunpack.c.h.b16 %v830
        %v2380 = vunpack.c.l.b16 %v831
        %v2381 = vunpack.c.h.b16 %v831
        %v2382 = vunpack.c.l.b16 %v832
        %v2383 = vunpack.c.h.b16 %v832
        %v2384 = vunpack.c.l.b16 %v833
        %v2385 = vunpack.c.h.b16 %v833
        %v2386 = vunpack.c.l.b16 %v834
        %v2387 = vunpack.c.h.b16 %v834
        %v2388 = vunpack.c.l.b16 %v835
        %v2389 = vunpack.c.h.b16 %v835
        %v2390 = vunpack.c.l.b16 %v836
        %v2391 = vunpack.c.h.b16 %v836
        %v2392 = vunpack.c.l.b16 %v837
        %v2393 = vunpack.c.h.b16 %v837
        %v2394 = vunpack.c.l.b16 %v838
        %v2395 = vunpack.c.h.b16 %v838
        %v2396 = vunpack.c.l.b16 %v839
        %v2397 = vunpack.c.h.b16 %v839
        %v2398 = vpack.c.b16 %v1378, %v1374
        %v2399 = vpack.c.b16 %v1379, %v1375
        %v2400 = vpack.c.b16 %v1380, %v1376
        %v2401 = vpack.c.b16 %v1381, %v1377
        %v2402 = vpack.c.b16 %v1386, %v1382
        %v2403 = vpack.c.b16 %v1387, %v1383
        %v2404 = vpack.c.b16 %v1388, %v1384
        %v2405 = vpack.c.b16 %v1389, %v1385
        %v2406 = vpack.c.b16 %v1394, %v1390
        %v2407 = vpack.c.b16 %v1395, %v1391
        %v2408 = vpack.c.b16 %v1396, %v1392
        %v2409 = vpack.c.b16 %v1397, %v1393
        %v2410 = vpack.c.b16 %v1402, %v1398
        %v2411 = vpack.c.b16 %v1403, %v1399
        %v2412 = vpack.c.b16 %v1404, %v1400
        %v2413 = vpack.c.b16 %v1405, %v1401
        %v2414 = vpack.c.b16 %v1410, %v1406
        %v2415 = vpack.c.b16 %v1411, %v1407
        %v2416 = vpack.c.b16 %v1412, %v1408
        %v2417 = vpack.c.b16 %v1413, %v1409
        %v2418 = vpack.c.b16 %v1418, %v1414
        %v2419 = vpack.c.b16 %v1419, %v1415
        %v2420 = vpack.c.b16 %v1420, %v1416
        %v2421 = vpack.c.b16 %v1421, %v1417
        %v2422 = vpack.c.b16 %v1426, %v1422
        %v2423 = vpack.c.b16 %v1427, %v1423
        %v2424 = vpack.c.b16 %v1428, %v1424
        %v2425 = vpack.c.b16 %v1429, %v1425
        %v2426 = vpack.c.b16 %v1434, %v1430
        %v2427 = vpack.c.b16 %v1435, %v1431
        %v2428 = vpack.c.b16 %v1436, %v1432
        %v2429 = vpack.c.b16 %v1437, %v1433
        %v2430 = vpack.c.b16 %v1442, %v1438
        %v2431 = vpack.c.b16 %v1443, %v1439
        %v2432 = vpack.c.b16 %v1444, %v1440
        %v2433 = vpack.c.b16 %v1445, %v1441
        %v2434 = vpack.c.b16 %v1450, %v1446
        %v2435 = vpack.c.b16 %v1451, %v1447
        %v2436 = vpack.c.b16 %v1452, %v1448
        %v2437 = vpack.c.b16 %v1453, %v1449
        %v2438 = vpack.c.b16 %v1458, %v1454
        %v2439 = vpack.c.b16 %v1459, %v1455
        %v2440 = vpack.c.b16 %v1460, %v1456
        %v2441 = vpack.c.b16 %v1461, %v1457
        %v2442 = vpack.c.b16 %v1466, %v1462
        %v2443 = vpack.c.b16 %v1467, %v1463
        %v2444 = vpack.c.b16 %v1468, %v1464
        %v2445 = vpack.c.b16 %v1469, %v1465
        %v2446 = vpack.c.b16 %v1474, %v1470
        %v2447 = vpack.c.b16 %v1475, %v1471
        %v2448 = vpack.c.b16 %v1476, %v1472
        %v2449 = vpack.c.b16 %v1477, %v1473
        %v2450 = vpack.c.b16 %v1482, %v1478
        %v2451 = vpack.c.b16 %v1483, %v1479
        %v2452 = vpack.c.b16 %v1484, %v1480
        %v2453 = vpack.c.b16 %v1485, %v1481
        %v2454 = vpack.c.b16 %v1490, %v1486
        %v2455 = vpack.c.b16 %v1491, %v1487
        %v2456 = vpack.c.b16 %v1492, %v1488
        %v2457 = vpack.c.b16 %v1493, %v1489
        %v2458 = vpack.c.b16 %v1498, %v1494
        %v2459 = vpack.c.b16 %v1499, %v1495
        %v2460 = vpack.c.b16 %v1500, %v1496
        %v2461 = vpack.c.b16 %v1501, %v1497
        %v2462 = vpack.c.b16 %v1506, %v1502
        %v2463 = vpack.c.b16 %v1507, %v1503
        %v2464 = vpack.c.b16 %v1508, %v1504
        %v2465 = vpack.c.b16 %v1509, %v1505
        %v2466 = vpack.c.b16 %v1514, %v1510
        %v2467 = vpack.c.b16 %v1515, %v1511
        %v2468 = vpack.c.b16 %v1516, %v1512
        %v2469 = vpack.c.b16 %v1517, %v1513
        %v2470 = vpack.c.b16 %v1522, %v1518
        %v2471 = vpack.c.b16 %v1523, %v1519
        %v2472 = vpack.c.b16 %v1524, %v1520
        %v2473 = vpack.c.b16 %v1525, %v1521
        %v2474 = vpack.c.b16 %v1530, %v1526
        %v2475 = vpack.c.b16 %v1531, %v1527
        %v2476 = vpack.c.b16 %v1532, %v1528
        %v2477 = vpack.c.b16 %v1533, %v1529
        %v2478 = vpack.c.b16 %v1538, %v1534
        %v2479 = vpack.c.b16 %v1539, %v1535
        %v2480 = vpack.c.b16 %v1540, %v1536
        %v2481 = vpack.c.b16 %v1541, %v1537
        %v2482 = vpack.c.b16 %v1546, %v1542
        %v2483 = vpack.c.b16 %v1547, %v1543
        %v2484 = vpack.c.b16 %v1548, %v1544
        %v2485 = vpack.c.b16 %v1549, %v1545
        %v2486 = vpack.c.b16 %v1554, %v1550
        %v2487 = vpack.c.b16 %v1555, %v1551
        %v2488 = vpack.c.b16 %v1556, %v1552
        %v2489 = vpack.c.b16 %v1557, %v1553
        %v2490 = vpack.c.b16 %v1562, %v1558
        %v2491 = vpack.c.b16 %v1563, %v1559
        %v2492 = vpack.c.b16 %v1564, %v1560
        %v2493 = vpack.c.b16 %v1565, %v1561
        %v2494 = vpack.c.b16 %v1570, %v1566
        %v2495 = vpack.c.b16 %v1571, %v1567
        %v2496 = vpack.c.b16 %v1572, %v1568
        %v2497 = vpack.c.b16 %v1573, %v1569
        %v2498 = vpack.c.b16 %v1578, %v1574
        %v2499 = vpack.c.b16 %v1579, %v1575
        %v2500 = vpack.c.b16 %v1580, %v1576
        %v2501 = vpack.c.b16 %v1581, %v1577
        %v2502 = vpack.c.b16 %v1586, %v1582
        %v2503 = vpack.c.b16 %v1587, %v1583
        %v2504 = vpack.c.b16 %v1588, %v1584
        %v2505 = vpack.c.b16 %v1589, %v1585
        %v2506 = vpack.c.b16 %v1594, %v1590
        %v2507 = vpack.c.b16 %v1595, %v1591
        %v2508 = vpack.c.b16 %v1596, %v1592
        %v2509 = vpack.c.b16 %v1597, %v1593
        %v2510 = vpack.c.b16 %v1602, %v1598
        %v2511 = vpack.c.b16 %v1603, %v1599
        %v2512 = vpack.c.b16 %v1604, %v1600
        %v2513 = vpack.c.b16 %v1605, %v1601
        %v2514 = vpack.c.b16 %v1610, %v1606
        %v2515 = vpack.c.b16 %v1611, %v1607
        %v2516 = vpack.c.b16 %v1612, %v1608
        %v2517 = vpack.c.b16 %v1613, %v1609
        %v2518 = vpack.c.b16 %v1618, %v1614
        %v2519 = vpack.c.b16 %v1619, %v1615
        %v2520 = vpack.c.b16 %v1620, %v1616
        %v2521 = vpack.c.b16 %v1621, %v1617
        %v2522 = vpack.c.b16 %v1626, %v1622
        %v2523 = vpack.c.b16 %v1627, %v1623
        %v2524 = vpack.c.b16 %v1628, %v1624
        %v2525 = vpack.c.b16 %v1629, %v1625
        %v2526 = vpack.c.b16 %v1634, %v1630
        %v2527 = vpack.c.b16 %v1635, %v1631
        %v2528 = vpack.c.b16 %v1636, %v1632
        %v2529 = vpack.c.b16 %v1637, %v1633
        %v2530 = vpack.c.b16 %v1642, %v1638
        %v2531 = vpack.c.b16 %v1643, %v1639
        %v2532 = vpack.c.b16 %v1644, %v1640
        %v2533 = vpack.c.b16 %v1645, %v1641
        %v2534 = vpack.c.b16 %v1650, %v1646
        %v2535 = vpack.c.b16 %v1651, %v1647
        %v2536 = vpack.c.b16 %v1652, %v1648
        %v2537 = vpack.c.b16 %v1653, %v1649
        %v2538 = vpack.c.b16 %v1658, %v1654
        %v2539 = vpack.c.b16 %v1659, %v1655
        %v2540 = vpack.c.b16 %v1660, %v1656
        %v2541 = vpack.c.b16 %v1661, %v1657
        %v2542 = vpack.c.b16 %v1666, %v1662
        %v2543 = vpack.c.b16 %v1667, %v1663
        %v2544 = vpack.c.b16 %v1668, %v1664
        %v2545 = vpack.c.b16 %v1669, %v1665
        %v2546 = vpack.c.b16 %v1674, %v1670
        %v2547 = vpack.c.b16 %v1675, %v1671
        %v2548 = vpack.c.b16 %v1676, %v1672
        %v2549 = vpack.c.b16 %v1677, %v1673
        %v2550 = vpack.c.b16 %v1682, %v1678
        %v2551 = vpack.c.b16 %v1683, %v1679
        %v2552 = vpack.c.b16 %v1684, %v1680
        %v2553 = vpack.c.b16 %v1685, %v1681
        %v2554 = vpack.c.b16 %v1690, %v1686
        %v2555 = vpack.c.b16 %v1691, %v1687
        %v2556 = vpack.c.b16 %v1692, %v1688
        %v2557 = vpack.c.b16 %v1693, %v1689
        %v2558 = vpack.c.b16 %v1698, %v1694
        %v2559 = vpack.c.b16 %v1699, %v1695
        %v2560 = vpack.c.b16 %v1700, %v1696
        %v2561 = vpack.c.b16 %v1701, %v1697
        %v2562 = vpack.c.b16 %v1706, %v1702
        %v2563 = vpack.c.b16 %v1707, %v1703
        %v2564 = vpack.c.b16 %v1708, %v1704
        %v2565 = vpack.c.b16 %v1709, %v1705
        %v2566 = vpack.c.b16 %v1714, %v1710
        %v2567 = vpack.c.b16 %v1715, %v1711
        %v2568 = vpack.c.b16 %v1716, %v1712
        %v2569 = vpack.c.b16 %v1717, %v1713
        %v2570 = vpack.c.b16 %v1722, %v1718
        %v2571 = vpack.c.b16 %v1723, %v1719
        %v2572 = vpack.c.b16 %v1724, %v1720
        %v2573 = vpack.c.b16 %v1725, %v1721
        %v2574 = vpack.c.b16 %v1730, %v1726
        %v2575 = vpack.c.b16 %v1731, %v1727
        %v2576 = vpack.c.b16 %v1732, %v1728
        %v2577 = vpack.c.b16 %v1733, %v1729
        %v2578 = vpack.c.b16 %v1738, %v1734
        %v2579 = vpack.c.b16 %v1739, %v1735
        %v2580 = vpack.c.b16 %v1740, %v1736
        %v2581 = vpack.c.b16 %v1741, %v1737
        %v2582 = vpack.c.b16 %v1746, %v1742
        %v2583 = vpack.c.b16 %v1747, %v1743
        %v2584 = vpack.c.b16 %v1748, %v1744
        %v2585 = vpack.c.b16 %v1749, %v1745
        %v2586 = vpack.c.b16 %v1754, %v1750
        %v2587 = vpack.c.b16 %v1755, %v1751
        %v2588 = vpack.c.b16 %v1756, %v1752
        %v2589 = vpack.c.b16 %v1757, %v1753
        %v2590 = vpack.c.b16 %v1762, %v1758
        %v2591 = vpack.c.b16 %v1763, %v1759
        %v2592 = vpack.c.b16 %v1764, %v1760
        %v2593 = vpack.c.b16 %v1765, %v1761
        %v2594 = vpack.c.b16 %v1770, %v1766
        %v2595 = vpack.c.b16 %v1771, %v1767
        %v2596 = vpack.c.b16 %v1772, %v1768
        %v2597 = vpack.c.b16 %v1773, %v1769
        %v2598 = vpack.c.b16 %v1778, %v1774
        %v2599 = vpack.c.b16 %v1779, %v1775
        %v2600 = vpack.c.b16 %v1780, %v1776
        %v2601 = vpack.c.b16 %v1781, %v1777
        %v2602 = vpack.c.b16 %v1786, %v1782
        %v2603 = vpack.c.b16 %v1787, %v1783
        %v2604 = vpack.c.b16 %v1788, %v1784
        %v2605 = vpack.c.b16 %v1789, %v1785
        %v2606 = vpack.c.b16 %v1794, %v1790
        %v2607 = vpack.c.b16 %v1795, %v1791
        %v2608 = vpack.c.b16 %v1796, %v1792
        %v2609 = vpack.c.b16 %v1797, %v1793
        %v2610 = vpack.c.b16 %v1802, %v1798
        %v2611 = vpack.c.b16 %v1803, %v1799
        %v2612 = vpack.c.b16 %v1804, %v1800
        %v2613 = vpack.c.b16 %v1805, %v1801
        %v2614 = vpack.c.b16 %v1810, %v1806
        %v2615 = vpack.c.b16 %v1811, %v1807
        %v2616 = vpack.c.b16 %v1812, %v1808
        %v2617 = vpack.c.b16 %v1813, %v1809
        %v2618 = vpack.c.b16 %v1818, %v1814
        %v2619 = vpack.c.b16 %v1819, %v1815
        %v2620 = vpack.c.b16 %v1820, %v1816
        %v2621 = vpack.c.b16 %v1821, %v1817
        %v2622 = vpack.c.b16 %v1826, %v1822
        %v2623 = vpack.c.b16 %v1827, %v1823
        %v2624 = vpack.c.b16 %v1828, %v1824
        %v2625 = vpack.c.b16 %v1829, %v1825
        %v2626 = vpack.c.b16 %v1834, %v1830
        %v2627 = vpack.c.b16 %v1835, %v1831
        %v2628 = vpack.c.b16 %v1836, %v1832
        %v2629 = vpack.c.b16 %v1837, %v1833
        %v2630 = vpack.c.b16 %v1842, %v1838
        %v2631 = vpack.c.b16 %v1843, %v1839
        %v2632 = vpack.c.b16 %v1844, %v1840
        %v2633 = vpack.c.b16 %v1845, %v1841
        %v2634 = vpack.c.b16 %v1850, %v1846
        %v2635 = vpack.c.b16 %v1851, %v1847
        %v2636 = vpack.c.b16 %v1852, %v1848
        %v2637 = vpack.c.b16 %v1853, %v1849
        %v2638 = vpack.c.b16 %v1858, %v1854
        %v2639 = vpack.c.b16 %v1859, %v1855
        %v2640 = vpack.c.b16 %v1860, %v1856
        %v2641 = vpack.c.b16 %v1861, %v1857
        %v2642 = vpack.c.b16 %v1866, %v1862
        %v2643 = vpack.c.b16 %v1867, %v1863
        %v2644 = vpack.c.b16 %v1868, %v1864
        %v2645 = vpack.c.b16 %v1869, %v1865
        %v2646 = vpack.c.b16 %v1874, %v1870
        %v2647 = vpack.c.b16 %v1875, %v1871
        %v2648 = vpack.c.b16 %v1876, %v1872
        %v2649 = vpack.c.b16 %v1877, %v1873
        %v2650 = vpack.c.b16 %v1882, %v1878
        %v2651 = vpack.c.b16 %v1883, %v1879
        %v2652 = vpack.c.b16 %v1884, %v1880
        %v2653 = vpack.c.b16 %v1885, %v1881
        %v2654 = vpack.c.b16 %v1890, %v1886
        %v2655 = vpack.c.b16 %v1891, %v1887
        %v2656 = vpack.c.b16 %v1892, %v1888
        %v2657 = vpack.c.b16 %v1893, %v1889
        %v2658 = vpack.c.b16 %v1898, %v1894
        %v2659 = vpack.c.b16 %v1899, %v1895
        %v2660 = vpack.c.b16 %v1900, %v1896
        %v2661 = vpack.c.b16 %v1901, %v1897
        %v2662 = vpack.c.b16 %v1906, %v1902
        %v2663 = vpack.c.b16 %v1907, %v1903
        %v2664 = vpack.c.b16 %v1908, %v1904
        %v2665 = vpack.c.b16 %v1909, %v1905
        %v2666 = vpack.c.b16 %v1914, %v1910
        %v2667 = vpack.c.b16 %v1915, %v1911
        %v2668 = vpack.c.b16 %v1916, %v1912
        %v2669 = vpack.c.b16 %v1917, %v1913
        %v2670 = vpack.c.b16 %v1922, %v1918
        %v2671 = vpack.c.b16 %v1923, %v1919
        %v2672 = vpack.c.b16 %v1924, %v1920
        %v2673 = vpack.c.b16 %v1925, %v1921
        %v2674 = vpack.c.b16 %v1930, %v1926
        %v2675 = vpack.c.b16 %v1931, %v1927
        %v2676 = vpack.c.b16 %v1932, %v1928
        %v2677 = vpack.c.b16 %v1933, %v1929
        %v2678 = vpack.c.b16 %v1938, %v1934
        %v2679 = vpack.c.b16 %v1939, %v1935
        %v2680 = vpack.c.b16 %v1940, %v1936
        %v2681 = vpack.c.b16 %v1941, %v1937
        %v2682 = vpack.c.b16 %v1946, %v1942
        %v2683 = vpack.c.b16 %v1947, %v1943
        %v2684 = vpack.c.b16 %v1948, %v1944
        %v2685 = vpack.c.b16 %v1949, %v1945
        %v2686 = vpack.c.b16 %v1954, %v1950
        %v2687 = vpack.c.b16 %v1955, %v1951
        %v2688 = vpack.c.b16 %v1956, %v1952
        %v2689 = vpack.c.b16 %v1957, %v1953
        %v2690 = vpack.c.b16 %v1962, %v1958
        %v2691 = vpack.c.b16 %v1963, %v1959
        %v2692 = vpack.c.b16 %v1964, %v1960
        %v2693 = vpack.c.b16 %v1965, %v1961
        %v2694 = vpack.c.b16 %v1970, %v1966
        %v2695 = vpack.c.b16 %v1971, %v1967
        %v2696 = vpack.c.b16 %v1972, %v1968
        %v2697 = vpack.c.b16 %v1973, %v1969
        %v2698 = vpack.c.b16 %v1978, %v1974
        %v2699 = vpack.c.b16 %v1979, %v1975
        %v2700 = vpack.c.b16 %v1980, %v1976
        %v2701 = vpack.c.b16 %v1981, %v1977
        %v2702 = vpack.c.b16 %v1986, %v1982
        %v2703 = vpack.c.b16 %v1987, %v1983
        %v2704 = vpack.c.b16 %v1988, %v1984
        %v2705 = vpack.c.b16 %v1989, %v1985
        %v2706 = vpack.c.b16 %v1994, %v1990
        %v2707 = vpack.c.b16 %v1995, %v1991
        %v2708 = vpack.c.b16 %v1996, %v1992
        %v2709 = vpack.c.b16 %v1997, %v1993
        %v2710 = vpack.c.b16 %v2002, %v1998
        %v2711 = vpack.c.b16 %v2003, %v1999
        %v2712 = vpack.c.b16 %v2004, %v2000
        %v2713 = vpack.c.b16 %v2005, %v2001
        %v2714 = vpack.c.b16 %v2010, %v2006
        %v2715 = vpack.c.b16 %v2011, %v2007
        %v2716 = vpack.c.b16 %v2012, %v2008
        %v2717 = vpack.c.b16 %v2013, %v2009
        %v2718 = vpack.c.b16 %v2018, %v2014
        %v2719 = vpack.c.b16 %v2019, %v2015
        %v2720 = vpack.c.b16 %v2020, %v2016
        %v2721 = vpack.c.b16 %v2021, %v2017
        %v2722 = vpack.c.b16 %v2026, %v2022
        %v2723 = vpack.c.b16 %v2027, %v2023
        %v2724 = vpack.c.b16 %v2028, %v2024
        %v2725 = vpack.c.b16 %v2029, %v2025
        %v2726 = vpack.c.b16 %v2034, %v2030
        %v2727 = vpack.c.b16 %v2035, %v2031
        %v2728 = vpack.c.b16 %v2036, %v2032
        %v2729 = vpack.c.b16 %v2037, %v2033
        %v2730 = vpack.c.b16 %v2042, %v2038
        %v2731 = vpack.c.b16 %v2043, %v2039
        %v2732 = vpack.c.b16 %v2044, %v2040
        %v2733 = vpack.c.b16 %v2045, %v2041
        %v2734 = vpack.c.b16 %v2050, %v2046
        %v2735 = vpack.c.b16 %v2051, %v2047
        %v2736 = vpack.c.b16 %v2052, %v2048
        %v2737 = vpack.c.b16 %v2053, %v2049
        %v2738 = vpack.c.b16 %v2058, %v2054
        %v2739 = vpack.c.b16 %v2059, %v2055
        %v2740 = vpack.c.b16 %v2060, %v2056
        %v2741 = vpack.c.b16 %v2061, %v2057
        %v2742 = vpack.c.b16 %v2066, %v2062
        %v2743 = vpack.c.b16 %v2067, %v2063
        %v2744 = vpack.c.b16 %v2068, %v2064
        %v2745 = vpack.c.b16 %v2069, %v2065
        %v2746 = vpack.c.b16 %v2074, %v2070
        %v2747 = vpack.c.b16 %v2075, %v2071
        %v2748 = vpack.c.b16 %v2076, %v2072
        %v2749 = vpack.c.b16 %v2077, %v2073
        %v2750 = vpack.c.b16 %v2082, %v2078
        %v2751 = vpack.c.b16 %v2083, %v2079
        %v2752 = vpack.c.b16 %v2084, %v2080
        %v2753 = vpack.c.b16 %v2085, %v2081
        %v2754 = vpack.c.b16 %v2090, %v2086
        %v2755 = vpack.c.b16 %v2091, %v2087
        %v2756 = vpack.c.b16 %v2092, %v2088
        %v2757 = vpack.c.b16 %v2093, %v2089
        %v2758 = vpack.c.b16 %v2098, %v2094
        %v2759 = vpack.c.b16 %v2099, %v2095
        %v2760 = vpack.c.b16 %v2100, %v2096
        %v2761 = vpack.c.b16 %v2101, %v2097
        %v2762 = vpack.c.b16 %v2106, %v2102
        %v2763 = vpack.c.b16 %v2107, %v2103
        %v2764 = vpack.c.b16 %v2108, %v2104
        %v2765 = vpack.c.b16 %v2109, %v2105
        %v2766 = vpack.c.b16 %v2114, %v2110
        %v2767 = vpack.c.b16 %v2115, %v2111
        %v2768 = vpack.c.b16 %v2116, %v2112
        %v2769 = vpack.c.b16 %v2117, %v2113
        %v2770 = vpack.c.b16 %v2122, %v2118
        %v2771 = vpack.c.b16 %v2123, %v2119
        %v2772 = vpack.c.b16 %v2124, %v2120
        %v2773 = vpack.c.b16 %v2125, %v2121
        %v2774 = vpack.c.b16 %v2130, %v2126
        %v2775 = vpack.c.b16 %v2131, %v2127
        %v2776 = vpack.c.b16 %v2132, %v2128
        %v2777 = vpack.c.b16 %v2133, %v2129
        %v2778 = vpack.c.b16 %v2138, %v2134
        %v2779 = vpack.c.b16 %v2139, %v2135
        %v2780 = vpack.c.b16 %v2140, %v2136
        %v2781 = vpack.c.b16 %v2141, %v2137
        %v2782 = vpack.c.b16 %v2146, %v2142
        %v2783 = vpack.c.b16 %v2147, %v2143
        %v2784 = vpack.c.b16 %v2148, %v2144
        %v2785 = vpack.c.b16 %v2149, %v2145
        %v2786 = vpack.c.b16 %v2154, %v2150
        %v2787 = vpack.c.b16 %v2155, %v2151
        %v2788 = vpack.c.b16 %v2156, %v2152
        %v2789 = vpack.c.b16 %v2157, %v2153
        %v2790 = vpack.c.b16 %v2162, %v2158
        %v2791 = vpack.c.b16 %v2163, %v2159
        %v2792 = vpack.c.b16 %v2164, %v2160
        %v2793 = vpack.c.b16 %v2165, %v2161
        %v2794 = vpack.c.b16 %v2170, %v2166
        %v2795 = vpack.c.b16 %v2171, %v2167
        %v2796 = vpack.c.b16 %v2172, %v2168
        %v2797 = vpack.c.b16 %v2173, %v2169
        %v2798 = vpack.c.b16 %v2178, %v2174
        %v2799 = vpack.c.b16 %v2179, %v2175
        %v2800 = vpack.c.b16 %v2180, %v2176
        %v2801 = vpack.c.b16 %v2181, %v2177
        %v2802 = vpack.c.b16 %v2186, %v2182
        %v2803 = vpack.c.b16 %v2187, %v2183
        %v2804 = vpack.c.b16 %v2188, %v2184
        %v2805 = vpack.c.b16 %v2189, %v2185
        %v2806 = vpack.c.b16 %v2194, %v2190
        %v2807 = vpack.c.b16 %v2195, %v2191
        %v2808 = vpack.c.b16 %v2196, %v2192
        %v2809 = vpack.c.b16 %v2197, %v2193
        %v2810 = vpack.c.b16 %v2202, %v2198
        %v2811 = vpack.c.b16 %v2203, %v2199
        %v2812 = vpack.c.b16 %v2204, %v2200
        %v2813 = vpack.c.b16 %v2205, %v2201
        %v2814 = vpack.c.b16 %v2210, %v2206
        %v2815 = vpack.c.b16 %v2211, %v2207
        %v2816 = vpack.c.b16 %v2212, %v2208
        %v2817 = vpack.c.b16 %v2213, %v2209
        %v2818 = vpack.c.b16 %v2218, %v2214
        %v2819 = vpack.c.b16 %v2219, %v2215
        %v2820 = vpack.c.b16 %v2220, %v2216
        %v2821 = vpack.c.b16 %v2221, %v2217
        %v2822 = vpack.c.b16 %v2226, %v2222
        %v2823 = vpack.c.b16 %v2227, %v2223
        %v2824 = vpack.c.b16 %v2228, %v2224
        %v2825 = vpack.c.b16 %v2229, %v2225
        %v2826 = vpack.c.b16 %v2234, %v2230
        %v2827 = vpack.c.b16 %v2235, %v2231
        %v2828 = vpack.c.b16 %v2236, %v2232
        %v2829 = vpack.c.b16 %v2237, %v2233
        %v2830 = vpack.c.b16 %v2242, %v2238
        %v2831 = vpack.c.b16 %v2243, %v2239
        %v2832 = vpack.c.b16 %v2244, %v2240
        %v2833 = vpack.c.b16 %v2245, %v2241
        %v2834 = vpack.c.b16 %v2250, %v2246
        %v2835 = vpack.c.b16 %v2251, %v2247
        %v2836 = vpack.c.b16 %v2252, %v2248
        %v2837 = vpack.c.b16 %v2253, %v2249
        %v2838 = vpack.c.b16 %v2258, %v2254
        %v2839 = vpack.c.b16 %v2259, %v2255
        %v2840 = vpack.c.b16 %v2260, %v2256
        %v2841 = vpack.c.b16 %v2261, %v2257
        %v2842 = vpack.c.b16 %v2266, %v2262
        %v2843 = vpack.c.b16 %v2267, %v2263
        %v2844 = vpack.c.b16 %v2268, %v2264
        %v2845 = vpack.c.b16 %v2269, %v2265
        %v2846 = vpack.c.b16 %v2274, %v2270
        %v2847 = vpack.c.b16 %v2275, %v2271
        %v2848 = vpack.c.b16 %v2276, %v2272
        %v2849 = vpack.c.b16 %v2277, %v2273
        %v2850 = vpack.c.b16 %v2282, %v2278
        %v2851 = vpack.c.b16 %v2283, %v2279
        %v2852 = vpack.c.b16 %v2284, %v2280
        %v2853 = vpack.c.b16 %v2285, %v2281
        %v2854 = vpack.c.b16 %v2290, %v2286
        %v2855 = vpack.c.b16 %v2291, %v2287
        %v2856 = vpack.c.b16 %v2292, %v2288
        %v2857 = vpack.c.b16 %v2293, %v2289
        %v2858 = vpack.c.b16 %v2298, %v2294
        %v2859 = vpack.c.b16 %v2299, %v2295
        %v2860 = vpack.c.b16 %v2300, %v2296
        %v2861 = vpack.c.b16 %v2301, %v2297
        %v2862 = vpack.c.b16 %v2306, %v2302
        %v2863 = vpack.c.b16 %v2307, %v2303
        %v2864 = vpack.c.b16 %v2308, %v2304
        %v2865 = vpack.c.b16 %v2309, %v2305
        %v2866 = vpack.c.b16 %v2314, %v2310
        %v2867 = vpack.c.b16 %v2315, %v2311
        %v2868 = vpack.c.b16 %v2316, %v2312
        %v2869 = vpack.c.b16 %v2317, %v2313
        %v2870 = vpack.c.b16 %v2322, %v2318
        %v2871 = vpack.c.b16 %v2323, %v2319
        %v2872 = vpack.c.b16 %v2324, %v2320
        %v2873 = vpack.c.b16 %v2325, %v2321
        %v2874 = vpack.c.b16 %v2330, %v2326
        %v2875 = vpack.c.b16 %v2331, %v2327
        %v2876 = vpack.c.b16 %v2332, %v2328
        %v2877 = vpack.c.b16 %v2333, %v2329
        %v2878 = vpack.c.b16 %v2338, %v2334
        %v2879 = vpack.c.b16 %v2339, %v2335
        %v2880 = vpack.c.b16 %v2340, %v2336
        %v2881 = vpack.c.b16 %v2341, %v2337
        %v2882 = vpack.c.b16 %v2346, %v2342
        %v2883 = vpack.c.b16 %v2347, %v2343
        %v2884 = vpack.c.b16 %v2348, %v2344
        %v2885 = vpack.c.b16 %v2349, %v2345
        %v2886 = vpack.c.b16 %v2354, %v2350
        %v2887 = vpack.c.b16 %v2355, %v2351
        %v2888 = vpack.c.b16 %v2356, %v2352
        %v2889 = vpack.c.b16 %v2357, %v2353
        %v2890 = vpack.c.b16 %v2362, %v2358
        %v2891 = vpack.c.b16 %v2363, %v2359
        %v2892 = vpack.c.b16 %v2364, %v2360
        %v2893 = vpack.c.b16 %v2365, %v2361
        %v2894 = vpack.c.b16 %v2370, %v2366
        %v2895 = vpack.c.b16 %v2371, %v2367
        %v2896 = vpack.c.b16 %v2372, %v2368
        %v2897 = vpack.c.b16 %v2373, %v2369
        %v2898 = vpack.c.b16 %v2378, %v2374
        %v2899 = vpack.c.b16 %v2379, %v2375
        %v2900 = vpack.c.b16 %v2380, %v2376
        %v2901 = vpack.c.b16 %v2381, %v2377
        %v2902 = vpack.c.b16 %v2386, %v2382
        %v2903 = vpack.c.b16 %v2387, %v2383
        %v2904 = vpack.c.b16 %v2388, %v2384
        %v2905 = vpack.c.b16 %v2389, %v2385
        %v2906 = vpack.c.b16 %v2394, %v2390
        %v2907 = vpack.c.b16 %v2395, %v2391
        %v2908 = vpack.c.b16 %v2396, %v2392
        %v2909 = vpack.c.b16 %v2397, %v2393
        %3422 = vmatprep.subr.bf16.mxu0 %v2399
        %3423 = vmatpush1.bf16.msra.mxu0 %v2398
        %3424 = vmatprep.subr.bf16.mxu0 %v2403
        %3425 = vmatpush1.bf16.msra.mxu0 %v2402
        %3426 = vmatprep.subr.bf16.mxu0 %v2407
        %3427 = vmatpush1.bf16.msra.mxu0 %v2406
        %3428 = vmatprep.subr.bf16.mxu0 %v2411
        %3429 = vmatpush1.bf16.msra.mxu0 %v2410
        %3430 = vmatprep.subr.bf16.mxu0 %v2415
        %3431 = vmatpush1.bf16.msra.mxu0 %v2414
        %3432 = vmatprep.subr.bf16.mxu0 %v2419
        %3433 = vmatpush1.bf16.msra.mxu0 %v2418
        %3434 = vmatprep.subr.bf16.mxu0 %v2423
        %3435 = vmatpush1.bf16.msra.mxu0 %v2422
        %3436 = vmatprep.subr.bf16.mxu0 %v2427
        %3437 = vmatpush1.bf16.msra.mxu0 %v2426
        %3438 = vmatprep.subr.bf16.mxu0 %v2431
        %3439 = vmatpush1.bf16.msra.mxu0 %v2430
        %3440 = vmatprep.subr.bf16.mxu0 %v2435
        %3441 = vmatpush1.bf16.msra.mxu0 %v2434
        %3442 = vmatprep.subr.bf16.mxu0 %v2439
        %3443 = vmatpush1.bf16.msra.mxu0 %v2438
        %3444 = vmatprep.subr.bf16.mxu0 %v2443
        %3445 = vmatpush1.bf16.msra.mxu0 %v2442
        %3446 = vmatprep.subr.bf16.mxu0 %v2447
        %3447 = vmatpush1.bf16.msra.mxu0 %v2446
        %3448 = vmatprep.subr.bf16.mxu0 %v2451
        %3449 = vmatpush1.bf16.msra.mxu0 %v2450
        %3450 = vmatprep.subr.bf16.mxu0 %v2455
        %3451 = vmatpush1.bf16.msra.mxu0 %v2454
        %3452 = vmatprep.subr.bf16.mxu0 %v2459
        %3453 = vmatpush1.bf16.msra.mxu0 %v2458
        %3454 = vmatprep.mubr.bf16.mxu0 %v313
        %3455 = vmatmul.mubr.bf16.gmra.mrb[0].mxu0 %v312
        %v3456 = vpop.f32.mrb[0].mxu0
        %v3457 = vadd.f32 %v845, %v3456
        %v3458 = vpop.f32.mrb[0].mxu0
        %v3459 = vadd.f32 %v849, %v3458
        %v3460 = vpop.f32.mrb[0].mxu0
        %v3461 = vpop.f32.mrb[0].mxu0
        %3462 = vdwg.mxu0
        %3463 = vmatprep.subr.bf16.mxu0 %v2463
        %3464 = vmatpush1.bf16.msra.mxu0 %v2462
        %3465 = vmatprep.subr.bf16.mxu0 %v2467
        %3466 = vmatpush1.bf16.msra.mxu0 %v2466
        %3467 = vmatprep.subr.bf16.mxu0 %v2471
        %3468 = vmatpush1.bf16.msra.mxu0 %v2470
        %3469 = vmatprep.subr.bf16.mxu0 %v2475
        %3470 = vmatpush1.bf16.msra.mxu0 %v2474
        %3471 = vmatprep.subr.bf16.mxu0 %v2479
        %3472 = vmatpush1.bf16.msra.mxu0 %v2478
        %3473 = vmatprep.subr.bf16.mxu0 %v2483
        %3474 = vmatpush1.bf16.msra.mxu0 %v2482
        %3475 = vmatprep.subr.bf16.mxu0 %v2487
        %3476 = vmatpush1.bf16.msra.mxu0 %v2486
        %3477 = vmatprep.subr.bf16.mxu0 %v2491
        %3478 = vmatpush1.bf16.msra.mxu0 %v2490
        %3479 = vmatprep.subr.bf16.mxu0 %v2495
        %3480 = vmatpush1.bf16.msra.mxu0 %v2494
        %3481 = vmatprep.subr.bf16.mxu0 %v2499
        %3482 = vmatpush1.bf16.msra.mxu0 %v2498
        %3483 = vmatprep.subr.bf16.mxu0 %v2503
        %3484 = vmatpush1.bf16.msra.mxu0 %v2502
        %3485 = vmatprep.subr.bf16.mxu0 %v2507
        %3486 = vmatpush1.bf16.msra.mxu0 %v2506
        %3487 = vmatprep.subr.bf16.mxu0 %v2511
        %3488 = vmatpush1.bf16.msra.mxu0 %v2510
        %3489 = vmatprep.subr.bf16.mxu0 %v2515
        %3490 = vmatpush1.bf16.msra.mxu0 %v2514
        %3491 = vmatprep.subr.bf16.mxu0 %v2519
        %3492 = vmatpush1.bf16.msra.mxu0 %v2518
        %3493 = vmatprep.subr.bf16.mxu0 %v2523
        %3494 = vmatpush1.bf16.msra.mxu0 %v2522
        %3495 = vmatprep.mubr.bf16.mxu0 %v315
        %3496 = vmatmul.mubr.bf16.gmra.mrb[0].mxu0 %v314
        %v3497 = vpop.f32.mrb[0].mxu0
        %v3498 = vadd.f32 %v3457, %v3497
        %v3499 = vpop.f32.mrb[0].mxu0
        %v3500 = vadd.f32 %v3459, %v3499
        %v3501 = vpop.f32.mrb[0].mxu0
        %v3502 = vpop.f32.mrb[0].mxu0
        %3503 = vdwg.mxu0
        %3504 = vmatprep.subr.bf16.mxu0 %v2527
        %3505 = vmatpush1.bf16.msra.mxu0 %v2526
        %3506 = vmatprep.subr.bf16.mxu0 %v2531
        %3507 = vmatpush1.bf16.msra.mxu0 %v2530
        %3508 = vmatprep.subr.bf16.mxu0 %v2535
        %3509 = vmatpush1.bf16.msra.mxu0 %v2534
        %3510 = vmatprep.subr.bf16.mxu0 %v2539
        %3511 = vmatpush1.bf16.msra.mxu0 %v2538
        %3512 = vmatprep.subr.bf16.mxu0 %v2543
        %3513 = vmatpush1.bf16.msra.mxu0 %v2542
        %3514 = vmatprep.subr.bf16.mxu0 %v2547
        %3515 = vmatpush1.bf16.msra.mxu0 %v2546
        %3516 = vmatprep.subr.bf16.mxu0 %v2551
        %3517 = vmatpush1.bf16.msra.mxu0 %v2550
        %3518 = vmatprep.subr.bf16.mxu0 %v2555
        %3519 = vmatpush1.bf16.msra.mxu0 %v2554
        %3520 = vmatprep.subr.bf16.mxu0 %v2559
        %3521 = vmatpush1.bf16.msra.mxu0 %v2558
        %3522 = vmatprep.subr.bf16.mxu0 %v2563
        %3523 = vmatpush1.bf16.msra.mxu0 %v2562
        %3524 = vmatprep.subr.bf16.mxu0 %v2567
        %3525 = vmatpush1.bf16.msra.mxu0 %v2566
        %3526 = vmatprep.subr.bf16.mxu0 %v2571
        %3527 = vmatpush1.bf16.msra.mxu0 %v2570
        %3528 = vmatprep.subr.bf16.mxu0 %v2575
        %3529 = vmatpush1.bf16.msra.mxu0 %v2574
        %3530 = vmatprep.subr.bf16.mxu0 %v2579
        %3531 = vmatpush1.bf16.msra.mxu0 %v2578
        %3532 = vmatprep.subr.bf16.mxu0 %v2583
        %3533 = vmatpush1.bf16.msra.mxu0 %v2582
        %3534 = vmatprep.subr.bf16.mxu0 %v2587
        %3535 = vmatpush1.bf16.msra.mxu0 %v2586
        %3536 = vmatprep.mubr.bf16.mxu0 %v317
        %3537 = vmatmul.mubr.bf16.gmra.mrb[0].mxu0 %v316
        %v3538 = vpop.f32.mrb[0].mxu0
        %v3539 = vadd.f32 %v3498, %v3538
        %v3540 = vpop.f32.mrb[0].mxu0
        %v3541 = vadd.f32 %v3500, %v3540
        %v3542 = vpop.f32.mrb[0].mxu0
        %v3543 = vpop.f32.mrb[0].mxu0
        %3544 = vdwg.mxu0
        %3545 = vmatprep.subr.bf16.mxu0 %v2591
        %3546 = vmatpush1.bf16.msra.mxu0 %v2590
        %3547 = vmatprep.subr.bf16.mxu0 %v2595
        %3548 = vmatpush1.bf16.msra.mxu0 %v2594
        %3549 = vmatprep.subr.bf16.mxu0 %v2599
        %3550 = vmatpush1.bf16.msra.mxu0 %v2598
        %3551 = vmatprep.subr.bf16.mxu0 %v2603
        %3552 = vmatpush1.bf16.msra.mxu0 %v2602
        %3553 = vmatprep.subr.bf16.mxu0 %v2607
        %3554 = vmatpush1.bf16.msra.mxu0 %v2606
        %3555 = vmatprep.subr.bf16.mxu0 %v2611
        %3556 = vmatpush1.bf16.msra.mxu0 %v2610
        %3557 = vmatprep.subr.bf16.mxu0 %v2615
        %3558 = vmatpush1.bf16.msra.mxu0 %v2614
        %3559 = vmatprep.subr.bf16.mxu0 %v2619
        %3560 = vmatpush1.bf16.msra.mxu0 %v2618
        %3561 = vmatprep.subr.bf16.mxu0 %v2623
        %3562 = vmatpush1.bf16.msra.mxu0 %v2622
        %3563 = vmatprep.subr.bf16.mxu0 %v2627
        %3564 = vmatpush1.bf16.msra.mxu0 %v2626
        %3565 = vmatprep.subr.bf16.mxu0 %v2631
        %3566 = vmatpush1.bf16.msra.mxu0 %v2630
        %3567 = vmatprep.subr.bf16.mxu0 %v2635
        %3568 = vmatpush1.bf16.msra.mxu0 %v2634
        %3569 = vmatprep.subr.bf16.mxu0 %v2639
        %3570 = vmatpush1.bf16.msra.mxu0 %v2638
        %3571 = vmatprep.subr.bf16.mxu0 %v2643
        %3572 = vmatpush1.bf16.msra.mxu0 %v2642
        %3573 = vmatprep.subr.bf16.mxu0 %v2647
        %3574 = vmatpush1.bf16.msra.mxu0 %v2646
        %3575 = vmatprep.subr.bf16.mxu0 %v2651
        %3576 = vmatpush1.bf16.msra.mxu0 %v2650
        %3577 = vmatprep.mubr.bf16.mxu0 %v319
        %3578 = vmatmul.mubr.bf16.gmra.mrb[0].mxu0 %v318
        %v3579 = vpop.f32.mrb[0].mxu0
        %v3580 = vadd.f32 %v3539, %v3579
        %v3581 = vpop.f32.mrb[0].mxu0
        %v3582 = vadd.f32 %v3541, %v3581
        %v3583 = vpop.f32.mrb[0].mxu0
        %v3584 = vpop.f32.mrb[0].mxu0
        %3585 = vdwg.mxu0
        %3586 = vmatprep.subr.bf16.mxu0 %v2655
        %3587 = vmatpush1.bf16.msra.mxu0 %v2654
        %3588 = vmatprep.subr.bf16.mxu0 %v2659
        %3589 = vmatpush1.bf16.msra.mxu0 %v2658
        %3590 = vmatprep.subr.bf16.mxu0 %v2663
        %3591 = vmatpush1.bf16.msra.mxu0 %v2662
        %3592 = vmatprep.subr.bf16.mxu0 %v2667
        %3593 = vmatpush1.bf16.msra.mxu0 %v2666
        %3594 = vmatprep.subr.bf16.mxu0 %v2671
        %3595 = vmatpush1.bf16.msra.mxu0 %v2670
        %3596 = vmatprep.subr.bf16.mxu0 %v2675
        %3597 = vmatpush1.bf16.msra.mxu0 %v2674
        %3598 = vmatprep.subr.bf16.mxu0 %v2679
        %3599 = vmatpush1.bf16.msra.mxu0 %v2678
        %3600 = vmatprep.subr.bf16.mxu0 %v2683
        %3601 = vmatpush1.bf16.msra.mxu0 %v2682
        %3602 = vmatprep.subr.bf16.mxu0 %v2687
        %3603 = vmatpush1.bf16.msra.mxu0 %v2686
        %3604 = vmatprep.subr.bf16.mxu0 %v2691
        %3605 = vmatpush1.bf16.msra.mxu0 %v2690
        %3606 = vmatprep.subr.bf16.mxu0 %v2695
        %3607 = vmatpush1.bf16.msra.mxu0 %v2694
        %3608 = vmatprep.subr.bf16.mxu0 %v2699
        %3609 = vmatpush1.bf16.msra.mxu0 %v2698
        %3610 = vmatprep.subr.bf16.mxu0 %v2703
        %3611 = vmatpush1.bf16.msra.mxu0 %v2702
        %3612 = vmatprep.subr.bf16.mxu0 %v2707
        %3613 = vmatpush1.bf16.msra.mxu0 %v2706
        %3614 = vmatprep.subr.bf16.mxu0 %v2711
        %3615 = vmatpush1.bf16.msra.mxu0 %v2710
        %3616 = vmatprep.subr.bf16.mxu0 %v2715
        %3617 = vmatpush1.bf16.msra.mxu0 %v2714
        %3618 = vmatprep.mubr.bf16.mxu0 %v321
        %3619 = vmatmul.mubr.bf16.gmra.mrb[0].mxu0 %v320
        %v3620 = vpop.f32.mrb[0].mxu0
        %v3621 = vadd.f32 %v3580, %v3620
        %v3622 = vpop.f32.mrb[0].mxu0
        %v3623 = vadd.f32 %v3582, %v3622
        %v3624 = vpop.f32.mrb[0].mxu0
        %v3625 = vpop.f32.mrb[0].mxu0
        %3626 = vdwg.mxu0
        %3627 = vmatprep.subr.bf16.mxu0 %v2719
        %3628 = vmatpush1.bf16.msra.mxu0 %v2718
        %3629 = vmatprep.subr.bf16.mxu0 %v2723
        %3630 = vmatpush1.bf16.msra.mxu0 %v2722
        %3631 = vmatprep.subr.bf16.mxu0 %v2727
        %3632 = vmatpush1.bf16.msra.mxu0 %v2726
        %3633 = vmatprep.subr.bf16.mxu0 %v2731
        %3634 = vmatpush1.bf16.msra.mxu0 %v2730
        %3635 = vmatprep.subr.bf16.mxu0 %v2735
        %3636 = vmatpush1.bf16.msra.mxu0 %v2734
        %3637 = vmatprep.subr.bf16.mxu0 %v2739
        %3638 = vmatpush1.bf16.msra.mxu0 %v2738
        %3639 = vmatprep.subr.bf16.mxu0 %v2743
        %3640 = vmatpush1.bf16.msra.mxu0 %v2742
        %3641 = vmatprep.subr.bf16.mxu0 %v2747
        %3642 = vmatpush1.bf16.msra.mxu0 %v2746
        %3643 = vmatprep.subr.bf16.mxu0 %v2751
        %3644 = vmatpush1.bf16.msra.mxu0 %v2750
        %3645 = vmatprep.subr.bf16.mxu0 %v2755
        %3646 = vmatpush1.bf16.msra.mxu0 %v2754
        %3647 = vmatprep.subr.bf16.mxu0 %v2759
        %3648 = vmatpush1.bf16.msra.mxu0 %v2758
        %3649 = vmatprep.subr.bf16.mxu0 %v2763
        %3650 = vmatpush1.bf16.msra.mxu0 %v2762
        %3651 = vmatprep.subr.bf16.mxu0 %v2767
        %3652 = vmatpush1.bf16.msra.mxu0 %v2766
        %3653 = vmatprep.subr.bf16.mxu0 %v2771
        %3654 = vmatpush1.bf16.msra.mxu0 %v2770
        %3655 = vmatprep.subr.bf16.mxu0 %v2775
        %3656 = vmatpush1.bf16.msra.mxu0 %v2774
        %3657 = vmatprep.subr.bf16.mxu0 %v2779
        %3658 = vmatpush1.bf16.msra.mxu0 %v2778
        %3659 = vmatprep.mubr.bf16.mxu0 %v323
        %3660 = vmatmul.mubr.bf16.gmra.mrb[0].mxu0 %v322
        %v3661 = vpop.f32.mrb[0].mxu0
        %v3662 = vadd.f32 %v3621, %v3661
        %v3663 = vpop.f32.mrb[0].mxu0
        %v3664 = vadd.f32 %v3623, %v3663
        %v3665 = vpop.f32.mrb[0].mxu0
        %v3666 = vpop.f32.mrb[0].mxu0
        %3667 = vdwg.mxu0
        %3668 = vmatprep.subr.bf16.mxu0 %v2783
        %3669 = vmatpush1.bf16.msra.mxu0 %v2782
        %3670 = vmatprep.subr.bf16.mxu0 %v2787
        %3671 = vmatpush1.bf16.msra.mxu0 %v2786
        %3672 = vmatprep.subr.bf16.mxu0 %v2791
        %3673 = vmatpush1.bf16.msra.mxu0 %v2790
        %3674 = vmatprep.subr.bf16.mxu0 %v2795
        %3675 = vmatpush1.bf16.msra.mxu0 %v2794
        %3676 = vmatprep.subr.bf16.mxu0 %v2799
        %3677 = vmatpush1.bf16.msra.mxu0 %v2798
        %3678 = vmatprep.subr.bf16.mxu0 %v2803
        %3679 = vmatpush1.bf16.msra.mxu0 %v2802
        %3680 = vmatprep.subr.bf16.mxu0 %v2807
        %3681 = vmatpush1.bf16.msra.mxu0 %v2806
        %3682 = vmatprep.subr.bf16.mxu0 %v2811
        %3683 = vmatpush1.bf16.msra.mxu0 %v2810
        %3684 = vmatprep.subr.bf16.mxu0 %v2815
        %3685 = vmatpush1.bf16.msra.mxu0 %v2814
        %3686 = vmatprep.subr.bf16.mxu0 %v2819
        %3687 = vmatpush1.bf16.msra.mxu0 %v2818
        %3688 = vmatprep.subr.bf16.mxu0 %v2823
        %3689 = vmatpush1.bf16.msra.mxu0 %v2822
        %3690 = vmatprep.subr.bf16.mxu0 %v2827
        %3691 = vmatpush1.bf16.msra.mxu0 %v2826
        %3692 = vmatprep.subr.bf16.mxu0 %v2831
        %3693 = vmatpush1.bf16.msra.mxu0 %v2830
        %3694 = vmatprep.subr.bf16.mxu0 %v2835
        %3695 = vmatpush1.bf16.msra.mxu0 %v2834
        %3696 = vmatprep.subr.bf16.mxu0 %v2839
        %3697 = vmatpush1.bf16.msra.mxu0 %v2838
        %3698 = vmatprep.subr.bf16.mxu0 %v2843
        %3699 = vmatpush1.bf16.msra.mxu0 %v2842
        %3700 = vmatprep.mubr.bf16.mxu0 %v325
        %3701 = vmatmul.mubr.bf16.gmra.mrb[0].mxu0 %v324
        %v3702 = vpop.f32.mrb[0].mxu0
        %v3703 = vadd.f32 %v3662, %v3702
        %v3704 = vpop.f32.mrb[0].mxu0
        %v3705 = vadd.f32 %v3664, %v3704
        %v3706 = vpop.f32.mrb[0].mxu0
        %v3707 = vpop.f32.mrb[0].mxu0
        %3708 = vdwg.mxu0
        %3709 = vmatprep.subr.bf16.mxu0 %v2847
        %3710 = vmatpush1.bf16.msra.mxu0 %v2846
        %3711 = vmatprep.subr.bf16.mxu0 %v2851
        %3712 = vmatpush1.bf16.msra.mxu0 %v2850
        %3713 = vmatprep.subr.bf16.mxu0 %v2855
        %3714 = vmatpush1.bf16.msra.mxu0 %v2854
        %3715 = vmatprep.subr.bf16.mxu0 %v2859
        %3716 = vmatpush1.bf16.msra.mxu0 %v2858
        %3717 = vmatprep.subr.bf16.mxu0 %v2863
        %3718 = vmatpush1.bf16.msra.mxu0 %v2862
        %3719 = vmatprep.subr.bf16.mxu0 %v2867
        %3720 = vmatpush1.bf16.msra.mxu0 %v2866
        %3721 = vmatprep.subr.bf16.mxu0 %v2871
        %3722 = vmatpush1.bf16.msra.mxu0 %v2870
        %3723 = vmatprep.subr.bf16.mxu0 %v2875
        %3724 = vmatpush1.bf16.msra.mxu0 %v2874
        %3725 = vmatprep.subr.bf16.mxu0 %v2879
        %3726 = vmatpush1.bf16.msra.mxu0 %v2878
        %3727 = vmatprep.subr.bf16.mxu0 %v2883
        %3728 = vmatpush1.bf16.msra.mxu0 %v2882
        %3729 = vmatprep.subr.bf16.mxu0 %v2887
        %3730 = vmatpush1.bf16.msra.mxu0 %v2886
        %3731 = vmatprep.subr.bf16.mxu0 %v2891
        %3732 = vmatpush1.bf16.msra.mxu0 %v2890
        %3733 = vmatprep.subr.bf16.mxu0 %v2895
        %3734 = vmatpush1.bf16.msra.mxu0 %v2894
        %3735 = vmatprep.subr.bf16.mxu0 %v2899
        %3736 = vmatpush1.bf16.msra.mxu0 %v2898
        %3737 = vmatprep.subr.bf16.mxu0 %v2903
        %3738 = vmatpush1.bf16.msra.mxu0 %v2902
        %3739 = vmatprep.subr.bf16.mxu0 %v2907
        %3740 = vmatpush1.bf16.msra.mxu0 %v2906
        %3741 = vmatprep.mubr.bf16.mxu0 %v327
        %3742 = vmatmul.mubr.bf16.gmra.mrb[0].mxu0 %v326
        %v3743 = vpop.f32.mrb[0].mxu0
        %v3744 = vadd.f32 %v3703, %v3743
        %v3745 = vpop.f32.mrb[0].mxu0
        %v3746 = vadd.f32 %v3705, %v3745
        %v3747 = vpop.f32.mrb[0].mxu0
        %v3748 = vpop.f32.mrb[0].mxu0
        %3749 = vdwg.mxu0
        %3750 = vmatprep.subr.bf16.mxu0 %v2401
        %3751 = vmatpush1.bf16.msra.mxu0 %v2400
        %3752 = vmatprep.subr.bf16.mxu0 %v2405
        %3753 = vmatpush1.bf16.msra.mxu0 %v2404
        %3754 = vmatprep.subr.bf16.mxu0 %v2409
        %3755 = vmatpush1.bf16.msra.mxu0 %v2408
        %3756 = vmatprep.subr.bf16.mxu0 %v2413
        %3757 = vmatpush1.bf16.msra.mxu0 %v2412
        %3758 = vmatprep.subr.bf16.mxu0 %v2417
        %3759 = vmatpush1.bf16.msra.mxu0 %v2416
        %3760 = vmatprep.subr.bf16.mxu0 %v2421
        %3761 = vmatpush1.bf16.msra.mxu0 %v2420
        %3762 = vmatprep.subr.bf16.mxu0 %v2425
        %3763 = vmatpush1.bf16.msra.mxu0 %v2424
        %3764 = vmatprep.subr.bf16.mxu0 %v2429
        %3765 = vmatpush1.bf16.msra.mxu0 %v2428
        %3766 = vmatprep.subr.bf16.mxu0 %v2433
        %3767 = vmatpush1.bf16.msra.mxu0 %v2432
        %3768 = vmatprep.subr.bf16.mxu0 %v2437
        %3769 = vmatpush1.bf16.msra.mxu0 %v2436
        %3770 = vmatprep.subr.bf16.mxu0 %v2441
        %3771 = vmatpush1.bf16.msra.mxu0 %v2440
        %3772 = vmatprep.subr.bf16.mxu0 %v2445
        %3773 = vmatpush1.bf16.msra.mxu0 %v2444
        %3774 = vmatprep.subr.bf16.mxu0 %v2449
        %3775 = vmatpush1.bf16.msra.mxu0 %v2448
        %3776 = vmatprep.subr.bf16.mxu0 %v2453
        %3777 = vmatpush1.bf16.msra.mxu0 %v2452
        %3778 = vmatprep.subr.bf16.mxu0 %v2457
        %3779 = vmatpush1.bf16.msra.mxu0 %v2456
        %3780 = vmatprep.subr.bf16.mxu0 %v2461
        %3781 = vmatpush1.bf16.msra.mxu0 %v2460
        %3782 = vmatprep.mubr.bf16.mxu0 %v313
        %3783 = vmatmul.mubr.bf16.gmra.mrb[0].mxu0 %v312
        %v3784 = vpop.f32.mrb[0].mxu0
        %v3785 = vadd.f32 %v853, %v3784
        %v3786 = vpop.f32.mrb[0].mxu0
        %v3787 = vadd.f32 %v857, %v3786
        %v3788 = vpop.f32.mrb[0].mxu0
        %v3789 = vpop.f32.mrb[0].mxu0
        %3790 = vdwg.mxu0
        %3791 = vmatprep.subr.bf16.mxu0 %v2465
        %3792 = vmatpush1.bf16.msra.mxu0 %v2464
        %3793 = vmatprep.subr.bf16.mxu0 %v2469
        %3794 = vmatpush1.bf16.msra.mxu0 %v2468
        %3795 = vmatprep.subr.bf16.mxu0 %v2473
        %3796 = vmatpush1.bf16.msra.mxu0 %v2472
        %3797 = vmatprep.subr.bf16.mxu0 %v2477
        %3798 = vmatpush1.bf16.msra.mxu0 %v2476
        %3799 = vmatprep.subr.bf16.mxu0 %v2481
        %3800 = vmatpush1.bf16.msra.mxu0 %v2480
        %3801 = vmatprep.subr.bf16.mxu0 %v2485
        %3802 = vmatpush1.bf16.msra.mxu0 %v2484
        %3803 = vmatprep.subr.bf16.mxu0 %v2489
        %3804 = vmatpush1.bf16.msra.mxu0 %v2488
        %3805 = vmatprep.subr.bf16.mxu0 %v2493
        %3806 = vmatpush1.bf16.msra.mxu0 %v2492
        %3807 = vmatprep.subr.bf16.mxu0 %v2497
        %3808 = vmatpush1.bf16.msra.mxu0 %v2496
        %3809 = vmatprep.subr.bf16.mxu0 %v2501
        %3810 = vmatpush1.bf16.msra.mxu0 %v2500
        %3811 = vmatprep.subr.bf16.mxu0 %v2505
        %3812 = vmatpush1.bf16.msra.mxu0 %v2504
        %3813 = vmatprep.subr.bf16.mxu0 %v2509
        %3814 = vmatpush1.bf16.msra.mxu0 %v2508
        %3815 = vmatprep.subr.bf16.mxu0 %v2513
        %3816 = vmatpush1.bf16.msra.mxu0 %v2512
        %3817 = vmatprep.subr.bf16.mxu0 %v2517
        %3818 = vmatpush1.bf16.msra.mxu0 %v2516
        %3819 = vmatprep.subr.bf16.mxu0 %v2521
        %3820 = vmatpush1.bf16.msra.mxu0 %v2520
        %3821 = vmatprep.subr.bf16.mxu0 %v2525
        %3822 = vmatpush1.bf16.msra.mxu0 %v2524
        %3823 = vmatprep.mubr.bf16.mxu0 %v315
        %3824 = vmatmul.mubr.bf16.gmra.mrb[0].mxu0 %v314
        %v3825 = vpop.f32.mrb[0].mxu0
        %v3826 = vadd.f32 %v3785, %v3825
        %v3827 = vpop.f32.mrb[0].mxu0
        %v3828 = vadd.f32 %v3787, %v3827
        %v3829 = vpop.f32.mrb[0].mxu0
        %v3830 = vpop.f32.mrb[0].mxu0
        %3831 = vdwg.mxu0
        %3832 = vmatprep.subr.bf16.mxu0 %v2529
        %3833 = vmatpush1.bf16.msra.mxu0 %v2528
        %3834 = vmatprep.subr.bf16.mxu0 %v2533
        %3835 = vmatpush1.bf16.msra.mxu0 %v2532
        %3836 = vmatprep.subr.bf16.mxu0 %v2537
        %3837 = vmatpush1.bf16.msra.mxu0 %v2536
        %3838 = vmatprep.subr.bf16.mxu0 %v2541
        %3839 = vmatpush1.bf16.msra.mxu0 %v2540
        %3840 = vmatprep.subr.bf16.mxu0 %v2545
        %3841 = vmatpush1.bf16.msra.mxu0 %v2544
        %3842 = vmatprep.subr.bf16.mxu0 %v2549
        %3843 = vmatpush1.bf16.msra.mxu0 %v2548
        %3844 = vmatprep.subr.bf16.mxu0 %v2553
        %3845 = vmatpush1.bf16.msra.mxu0 %v2552
        %3846 = vmatprep.subr.bf16.mxu0 %v2557
        %3847 = vmatpush1.bf16.msra.mxu0 %v2556
        %3848 = vmatprep.subr.bf16.mxu0 %v2561
        %3849 = vmatpush1.bf16.msra.mxu0 %v2560
        %3850 = vmatprep.subr.bf16.mxu0 %v2565
        %3851 = vmatpush1.bf16.msra.mxu0 %v2564
        %3852 = vmatprep.subr.bf16.mxu0 %v2569
        %3853 = vmatpush1.bf16.msra.mxu0 %v2568
        %3854 = vmatprep.subr.bf16.mxu0 %v2573
        %3855 = vmatpush1.bf16.msra.mxu0 %v2572
        %3856 = vmatprep.subr.bf16.mxu0 %v2577
        %3857 = vmatpush1.bf16.msra.mxu0 %v2576
        %3858 = vmatprep.subr.bf16.mxu0 %v2581
        %3859 = vmatpush1.bf16.msra.mxu0 %v2580
        %3860 = vmatprep.subr.bf16.mxu0 %v2585
        %3861 = vmatpush1.bf16.msra.mxu0 %v2584
        %3862 = vmatprep.subr.bf16.mxu0 %v2589
        %3863 = vmatpush1.bf16.msra.mxu0 %v2588
        %3864 = vmatprep.mubr.bf16.mxu0 %v317
        %3865 = vmatmul.mubr.bf16.gmra.mrb[0].mxu0 %v316
        %v3866 = vpop.f32.mrb[0].mxu0
        %v3867 = vadd.f32 %v3826, %v3866
        %v3868 = vpop.f32.mrb[0].mxu0
        %v3869 = vadd.f32 %v3828, %v3868
        %v3870 = vpop.f32.mrb[0].mxu0
        %v3871 = vpop.f32.mrb[0].mxu0
        %3872 = vdwg.mxu0
        %3873 = vmatprep.subr.bf16.mxu0 %v2593
        %3874 = vmatpush1.bf16.msra.mxu0 %v2592
        %3875 = vmatprep.subr.bf16.mxu0 %v2597
        %3876 = vmatpush1.bf16.msra.mxu0 %v2596
        %3877 = vmatprep.subr.bf16.mxu0 %v2601
        %3878 = vmatpush1.bf16.msra.mxu0 %v2600
        %3879 = vmatprep.subr.bf16.mxu0 %v2605
        %3880 = vmatpush1.bf16.msra.mxu0 %v2604
        %3881 = vmatprep.subr.bf16.mxu0 %v2609
        %3882 = vmatpush1.bf16.msra.mxu0 %v2608
        %3883 = vmatprep.subr.bf16.mxu0 %v2613
        %3884 = vmatpush1.bf16.msra.mxu0 %v2612
        %3885 = vmatprep.subr.bf16.mxu0 %v2617
        %3886 = vmatpush1.bf16.msra.mxu0 %v2616
        %3887 = vmatprep.subr.bf16.mxu0 %v2621
        %3888 = vmatpush1.bf16.msra.mxu0 %v2620
        %3889 = vmatprep.subr.bf16.mxu0 %v2625
        %3890 = vmatpush1.bf16.msra.mxu0 %v2624
        %3891 = vmatprep.subr.bf16.mxu0 %v2629
        %3892 = vmatpush1.bf16.msra.mxu0 %v2628
        %3893 = vmatprep.subr.bf16.mxu0 %v2633
        %3894 = vmatpush1.bf16.msra.mxu0 %v2632
        %3895 = vmatprep.subr.bf16.mxu0 %v2637
        %3896 = vmatpush1.bf16.msra.mxu0 %v2636
        %3897 = vmatprep.subr.bf16.mxu0 %v2641
        %3898 = vmatpush1.bf16.msra.mxu0 %v2640
        %3899 = vmatprep.subr.bf16.mxu0 %v2645
        %3900 = vmatpush1.bf16.msra.mxu0 %v2644
        %3901 = vmatprep.subr.bf16.mxu0 %v2649
        %3902 = vmatpush1.bf16.msra.mxu0 %v2648
        %3903 = vmatprep.subr.bf16.mxu0 %v2653
        %3904 = vmatpush1.bf16.msra.mxu0 %v2652
        %3905 = vmatprep.mubr.bf16.mxu0 %v319
        %3906 = vmatmul.mubr.bf16.gmra.mrb[0].mxu0 %v318
        %v3907 = vpop.f32.mrb[0].mxu0
        %v3908 = vadd.f32 %v3867, %v3907
        %v3909 = vpop.f32.mrb[0].mxu0
        %v3910 = vadd.f32 %v3869, %v3909
        %v3911 = vpop.f32.mrb[0].mxu0
        %v3912 = vpop.f32.mrb[0].mxu0
        %3913 = vdwg.mxu0
        %3914 = vmatprep.subr.bf16.mxu0 %v2657
        %3915 = vmatpush1.bf16.msra.mxu0 %v2656
        %3916 = vmatprep.subr.bf16.mxu0 %v2661
        %3917 = vmatpush1.bf16.msra.mxu0 %v2660
        %3918 = vmatprep.subr.bf16.mxu0 %v2665
        %3919 = vmatpush1.bf16.msra.mxu0 %v2664
        %3920 = vmatprep.subr.bf16.mxu0 %v2669
        %3921 = vmatpush1.bf16.msra.mxu0 %v2668
        %3922 = vmatprep.subr.bf16.mxu0 %v2673
        %3923 = vmatpush1.bf16.msra.mxu0 %v2672
        %3924 = vmatprep.subr.bf16.mxu0 %v2677
        %3925 = vmatpush1.bf16.msra.mxu0 %v2676
        %3926 = vmatprep.subr.bf16.mxu0 %v2681
        %3927 = vmatpush1.bf16.msra.mxu0 %v2680
        %3928 = vmatprep.subr.bf16.mxu0 %v2685
        %3929 = vmatpush1.bf16.msra.mxu0 %v2684
        %3930 = vmatprep.subr.bf16.mxu0 %v2689
        %3931 = vmatpush1.bf16.msra.mxu0 %v2688
        %3932 = vmatprep.subr.bf16.mxu0 %v2693
        %3933 = vmatpush1.bf16.msra.mxu0 %v2692
        %3934 = vmatprep.subr.bf16.mxu0 %v2697
        %3935 = vmatpush1.bf16.msra.mxu0 %v2696
        %3936 = vmatprep.subr.bf16.mxu0 %v2701
        %3937 = vmatpush1.bf16.msra.mxu0 %v2700
        %3938 = vmatprep.subr.bf16.mxu0 %v2705
        %3939 = vmatpush1.bf16.msra.mxu0 %v2704
        %3940 = vmatprep.subr.bf16.mxu0 %v2709
        %3941 = vmatpush1.bf16.msra.mxu0 %v2708
        %3942 = vmatprep.subr.bf16.mxu0 %v2713
        %3943 = vmatpush1.bf16.msra.mxu0 %v2712
        %3944 = vmatprep.subr.bf16.mxu0 %v2717
        %3945 = vmatpush1.bf16.msra.mxu0 %v2716
        %3946 = vmatprep.mubr.bf16.mxu0 %v321
        %3947 = vmatmul.mubr.bf16.gmra.mrb[0].mxu0 %v320
        %v3948 = vpop.f32.mrb[0].mxu0
        %v3949 = vadd.f32 %v3908, %v3948
        %v3950 = vpop.f32.mrb[0].mxu0
        %v3951 = vadd.f32 %v3910, %v3950
        %v3952 = vpop.f32.mrb[0].mxu0
        %v3953 = vpop.f32.mrb[0].mxu0
        %3954 = vdwg.mxu0
        %3955 = vmatprep.subr.bf16.mxu0 %v2721
        %3956 = vmatpush1.bf16.msra.mxu0 %v2720
        %3957 = vmatprep.subr.bf16.mxu0 %v2725
        %3958 = vmatpush1.bf16.msra.mxu0 %v2724
        %3959 = vmatprep.subr.bf16.mxu0 %v2729
        %3960 = vmatpush1.bf16.msra.mxu0 %v2728
        %3961 = vmatprep.subr.bf16.mxu0 %v2733
        %3962 = vmatpush1.bf16.msra.mxu0 %v2732
        %3963 = vmatprep.subr.bf16.mxu0 %v2737
        %3964 = vmatpush1.bf16.msra.mxu0 %v2736
        %3965 = vmatprep.subr.bf16.mxu0 %v2741
        %3966 = vmatpush1.bf16.msra.mxu0 %v2740
        %3967 = vmatprep.subr.bf16.mxu0 %v2745
        %3968 = vmatpush1.bf16.msra.mxu0 %v2744
        %3969 = vmatprep.subr.bf16.mxu0 %v2749
        %3970 = vmatpush1.bf16.msra.mxu0 %v2748
        %3971 = vmatprep.subr.bf16.mxu0 %v2753
        %3972 = vmatpush1.bf16.msra.mxu0 %v2752
        %3973 = vmatprep.subr.bf16.mxu0 %v2757
        %3974 = vmatpush1.bf16.msra.mxu0 %v2756
        %3975 = vmatprep.subr.bf16.mxu0 %v2761
        %3976 = vmatpush1.bf16.msra.mxu0 %v2760
        %3977 = vmatprep.subr.bf16.mxu0 %v2765
        %3978 = vmatpush1.bf16.msra.mxu0 %v2764
        %3979 = vmatprep.subr.bf16.mxu0 %v2769
        %3980 = vmatpush1.bf16.msra.mxu0 %v2768
        %3981 = vmatprep.subr.bf16.mxu0 %v2773
        %3982 = vmatpush1.bf16.msra.mxu0 %v2772
        %3983 = vmatprep.subr.bf16.mxu0 %v2777
        %3984 = vmatpush1.bf16.msra.mxu0 %v2776
        %3985 = vmatprep.subr.bf16.mxu0 %v2781
        %3986 = vmatpush1.bf16.msra.mxu0 %v2780
        %3987 = vmatprep.mubr.bf16.mxu0 %v323
        %3988 = vmatmul.mubr.bf16.gmra.mrb[0].mxu0 %v322
        %v3989 = vpop.f32.mrb[0].mxu0
        %v3990 = vadd.f32 %v3949, %v3989
        %v3991 = vpop.f32.mrb[0].mxu0
        %v3992 = vadd.f32 %v3951, %v3991
        %v3993 = vpop.f32.mrb[0].mxu0
        %v3994 = vpop.f32.mrb[0].mxu0
        %3995 = vdwg.mxu0
        %3996 = vmatprep.subr.bf16.mxu0 %v2785
        %3997 = vmatpush1.bf16.msra.mxu0 %v2784
        %3998 = vmatprep.subr.bf16.mxu0 %v2789
        %3999 = vmatpush1.bf16.msra.mxu0 %v2788
        %4000 = vmatprep.subr.bf16.mxu0 %v2793
        %4001 = vmatpush1.bf16.msra.mxu0 %v2792
        %4002 = vmatprep.subr.bf16.mxu0 %v2797
        %4003 = vmatpush1.bf16.msra.mxu0 %v2796
        %4004 = vmatprep.subr.bf16.mxu0 %v2801
        %4005 = vmatpush1.bf16.msra.mxu0 %v2800
        %4006 = vmatprep.subr.bf16.mxu0 %v2805
        %4007 = vmatpush1.bf16.msra.mxu0 %v2804
        %4008 = vmatprep.subr.bf16.mxu0 %v2809
        %4009 = vmatpush1.bf16.msra.mxu0 %v2808
        %4010 = vmatprep.subr.bf16.mxu0 %v2813
        %4011 = vmatpush1.bf16.msra.mxu0 %v2812
        %4012 = vmatprep.subr.bf16.mxu0 %v2817
        %4013 = vmatpush1.bf16.msra.mxu0 %v2816
        %4014 = vmatprep.subr.bf16.mxu0 %v2821
        %4015 = vmatpush1.bf16.msra.mxu0 %v2820
        %4016 = vmatprep.subr.bf16.mxu0 %v2825
        %4017 = vmatpush1.bf16.msra.mxu0 %v2824
        %4018 = vmatprep.subr.bf16.mxu0 %v2829
        %4019 = vmatpush1.bf16.msra.mxu0 %v2828
        %4020 = vmatprep.subr.bf16.mxu0 %v2833
        %4021 = vmatpush1.bf16.msra.mxu0 %v2832
        %4022 = vmatprep.subr.bf16.mxu0 %v2837
        %4023 = vmatpush1.bf16.msra.mxu0 %v2836
        %4024 = vmatprep.subr.bf16.mxu0 %v2841
        %4025 = vmatpush1.bf16.msra.mxu0 %v2840
        %4026 = vmatprep.subr.bf16.mxu0 %v2845
        %4027 = vmatpush1.bf16.msra.mxu0 %v2844
        %4028 = vmatprep.mubr.bf16.mxu0 %v325
        %4029 = vmatmul.mubr.bf16.gmra.mrb[0].mxu0 %v324
        %v4030 = vpop.f32.mrb[0].mxu0
        %v4031 = vadd.f32 %v3990, %v4030
        %v4032 = vpop.f32.mrb[0].mxu0
        %v4033 = vadd.f32 %v3992, %v4032
        %v4034 = vpop.f32.mrb[0].mxu0
        %v4035 = vpop.f32.mrb[0].mxu0
        %4036 = vdwg.mxu0
        %4037 = vmatprep.subr.bf16.mxu0 %v2849
        %4038 = vmatpush1.bf16.msra.mxu0 %v2848
        %4039 = vmatprep.subr.bf16.mxu0 %v2853
        %4040 = vmatpush1.bf16.msra.mxu0 %v2852
        %4041 = vmatprep.subr.bf16.mxu0 %v2857
        %4042 = vmatpush1.bf16.msra.mxu0 %v2856
        %4043 = vmatprep.subr.bf16.mxu0 %v2861
        %4044 = vmatpush1.bf16.msra.mxu0 %v2860
        %4045 = vmatprep.subr.bf16.mxu0 %v2865
        %4046 = vmatpush1.bf16.msra.mxu0 %v2864
        %4047 = vmatprep.subr.bf16.mxu0 %v2869
        %4048 = vmatpush1.bf16.msra.mxu0 %v2868
        %4049 = vmatprep.subr.bf16.mxu0 %v2873
        %4050 = vmatpush1.bf16.msra.mxu0 %v2872
        %4051 = vmatprep.subr.bf16.mxu0 %v2877
        %4052 = vmatpush1.bf16.msra.mxu0 %v2876
        %4053 = vmatprep.subr.bf16.mxu0 %v2881
        %4054 = vmatpush1.bf16.msra.mxu0 %v2880
        %4055 = vmatprep.subr.bf16.mxu0 %v2885
        %4056 = vmatpush1.bf16.msra.mxu0 %v2884
        %4057 = vmatprep.subr.bf16.mxu0 %v2889
        %4058 = vmatpush1.bf16.msra.mxu0 %v2888
        %4059 = vmatprep.subr.bf16.mxu0 %v2893
        %4060 = vmatpush1.bf16.msra.mxu0 %v2892
        %4061 = vmatprep.subr.bf16.mxu0 %v2897
        %4062 = vmatpush1.bf16.msra.mxu0 %v2896
        %4063 = vmatprep.subr.bf16.mxu0 %v2901
        %4064 = vmatpush1.bf16.msra.mxu0 %v2900
        %4065 = vmatprep.subr.bf16.mxu0 %v2905
        %4066 = vmatpush1.bf16.msra.mxu0 %v2904
        %4067 = vmatprep.subr.bf16.mxu0 %v2909
        %4068 = vmatpush1.bf16.msra.mxu0 %v2908
        %4069 = vmatprep.mubr.bf16.mxu0 %v327
        %4070 = vmatmul.mubr.bf16.gmra.mrb[0].mxu0 %v326
        %v4071 = vpop.f32.mrb[0].mxu0
        %v4072 = vadd.f32 %v4031, %v4071
        %v4073 = vpop.f32.mrb[0].mxu0
        %v4074 = vadd.f32 %v4033, %v4073
        %v4075 = vpop.f32.mrb[0].mxu0
        %v4076 = vpop.f32.mrb[0].mxu0
        %4077 = vdwg.mxu0
        %v4078 = vmax.f32 %v3744, 0.0
        %v4079 = vmax.f32 %v3746, 0.0
        %v4080 = vmax.f32 %v4072, 0.0
        %v4081 = vmax.f32 %v4074, 0.0
        %v4082 = vpack.c.bf16 %v4078, %v4078
        %v4083 = vpack.c.bf16 %v4079, %v4079
        %v4084 = vpack.c.bf16 %v4080, %v4080
        %v4085 = vpack.c.bf16 %v4081, %v4081
        %v4086 = vld [vmem:[#allocation8] sm:$0xff]
        %v4087 = vld [vmem:[#allocation8 + $0x8] sm:$0xf]
        %v4088 = vld [vmem:[#allocation8 + $0xc] sm:$0xff]
        %v4089 = vld [vmem:[#allocation8 + $0x14] sm:$0xf]
        %v4090 = vld [vmem:[#allocation8 + $0x18] sm:$0xff]
        %v4091 = vld [vmem:[#allocation8 + $0x20] sm:$0xf]
        %v4092 = vld [vmem:[#allocation8 + $0x24] sm:$0xff]
        %v4093 = vld [vmem:[#allocation8 + $0x2c] sm:$0xf]
        %v4094 = vld [vmem:[#allocation8 + $0x30] sm:$0xff]
        %v4095 = vld [vmem:[#allocation8 + $0x38] sm:$0xf]
        %v4096 = vld [vmem:[#allocation8 + $0x3c] sm:$0xff]
        %v4097 = vld [vmem:[#allocation8 + $0x44] sm:$0xf]
        %v4098 = vld [vmem:[#allocation8 + $0x48] sm:$0xff]
        %v4099 = vld [vmem:[#allocation8 + $0x50] sm:$0xf]
        %v4100 = vld [vmem:[#allocation8 + $0x54] sm:$0xff]
        %v4101 = vld [vmem:[#allocation8 + $0x5c] sm:$0xf]
        %v4102 = vld [vmem:[#allocation8 + $0x60] sm:$0xff]
        %v4103 = vld [vmem:[#allocation8 + $0x68] sm:$0xf]
        %v4104 = vld [vmem:[#allocation8 + $0x6c] sm:$0xff]
        %v4105 = vld [vmem:[#allocation8 + $0x74] sm:$0xf]
        %v4106 = vld [vmem:[#allocation8 + $0x78] sm:$0xff]
        %v4107 = vld [vmem:[#allocation8 + $0x80] sm:$0xf]
        %v4108 = vld [vmem:[#allocation8 + $0x84] sm:$0xff]
        %v4109 = vld [vmem:[#allocation8 + $0x8c] sm:$0xf]
        %v4110 = vld [vmem:[#allocation8 + $0x90] sm:$0xff]
        %v4111 = vld [vmem:[#allocation8 + $0x98] sm:$0xf]
        %v4112 = vld [vmem:[#allocation8 + $0x9c] sm:$0xff]
        %v4113 = vld [vmem:[#allocation8 + $0xa4] sm:$0xf]
        %v4114 = vld [vmem:[#allocation8 + $0xa8] sm:$0xff]
        %v4115 = vld [vmem:[#allocation8 + $0xb0] sm:$0xf]
        %v4116 = vld [vmem:[#allocation8 + $0xb4] sm:$0xff]
        %v4117 = vld [vmem:[#allocation8 + $0xbc] sm:$0xf]
        %v4118 = vld [vmem:[#allocation8 + $0xc0] sm:$0xff]
        %v4119 = vld [vmem:[#allocation8 + $0xc8] sm:$0xf]
        %v4120 = vld [vmem:[#allocation8 + $0xcc] sm:$0xff]
        %v4121 = vld [vmem:[#allocation8 + $0xd4] sm:$0xf]
        %v4122 = vld [vmem:[#allocation8 + $0xd8] sm:$0xff]
        %v4123 = vld [vmem:[#allocation8 + $0xe0] sm:$0xf]
        %v4124 = vld [vmem:[#allocation8 + $0xe4] sm:$0xff]
        %v4125 = vld [vmem:[#allocation8 + $0xec] sm:$0xf]
        %v4126 = vld [vmem:[#allocation8 + $0xf0] sm:$0xff]
        %v4127 = vld [vmem:[#allocation8 + $0xf8] sm:$0xf]
        %v4128 = vld [vmem:[#allocation8 + $0xfc] sm:$0xff]
        %v4129 = vld [vmem:[#allocation8 + $0x104] sm:$0xf]
        %v4130 = vld [vmem:[#allocation8 + $0x108] sm:$0xff]
        %v4131 = vld [vmem:[#allocation8 + $0x110] sm:$0xf]
        %v4132 = vld [vmem:[#allocation8 + $0x114] sm:$0xff]
        %v4133 = vld [vmem:[#allocation8 + $0x11c] sm:$0xf]
        %v4134 = vld [vmem:[#allocation8 + $0x120] sm:$0xff]
        %v4135 = vld [vmem:[#allocation8 + $0x128] sm:$0xf]
        %v4136 = vld [vmem:[#allocation8 + $0x12c] sm:$0xff]
        %v4137 = vld [vmem:[#allocation8 + $0x134] sm:$0xf]
        %v4138 = vld [vmem:[#allocation8 + $0x138] sm:$0xff]
        %v4139 = vld [vmem:[#allocation8 + $0x140] sm:$0xf]
        %v4140 = vld [vmem:[#allocation8 + $0x144] sm:$0xff]
        %v4141 = vld [vmem:[#allocation8 + $0x14c] sm:$0xf]
        %v4142 = vld [vmem:[#allocation8 + $0x150] sm:$0xff]
        %v4143 = vld [vmem:[#allocation8 + $0x158] sm:$0xf]
        %v4144 = vld [vmem:[#allocation8 + $0x15c] sm:$0xff]
        %v4145 = vld [vmem:[#allocation8 + $0x164] sm:$0xf]
        %v4146 = vld [vmem:[#allocation8 + $0x168] sm:$0xff]
        %v4147 = vld [vmem:[#allocation8 + $0x170] sm:$0xf]
        %v4148 = vld [vmem:[#allocation8 + $0x174] sm:$0xff]
        %v4149 = vld [vmem:[#allocation8 + $0x17c] sm:$0xf]
        %v4150 = vld [vmem:[#allocation8 + $0x180] sm:$0xff]
        %v4151 = vld [vmem:[#allocation8 + $0x188] sm:$0xf]
        %v4152 = vld [vmem:[#allocation8 + $0x18c] sm:$0xff]
        %v4153 = vld [vmem:[#allocation8 + $0x194] sm:$0xf]
        %v4154 = vld [vmem:[#allocation8 + $0x198] sm:$0xff]
        %v4155 = vld [vmem:[#allocation8 + $0x1a0] sm:$0xf]
        %v4156 = vld [vmem:[#allocation8 + $0x1a4] sm:$0xff]
        %v4157 = vld [vmem:[#allocation8 + $0x1ac] sm:$0xf]
        %v4158 = vld [vmem:[#allocation8 + $0x1b0] sm:$0xff]
        %v4159 = vld [vmem:[#allocation8 + $0x1b8] sm:$0xf]
        %v4160 = vld [vmem:[#allocation8 + $0x1bc] sm:$0xff]
        %v4161 = vld [vmem:[#allocation8 + $0x1c4] sm:$0xf]
        %v4162 = vld [vmem:[#allocation8 + $0x1c8] sm:$0xff]
        %v4163 = vld [vmem:[#allocation8 + $0x1d0] sm:$0xf]
        %v4164 = vld [vmem:[#allocation8 + $0x1d4] sm:$0xff]
        %v4165 = vld [vmem:[#allocation8 + $0x1dc] sm:$0xf]
        %v4166 = vld [vmem:[#allocation8 + $0x1e0] sm:$0xff]
        %v4167 = vld [vmem:[#allocation8 + $0x1e8] sm:$0xf]
        %v4168 = vld [vmem:[#allocation8 + $0x1ec] sm:$0xff]
        %v4169 = vld [vmem:[#allocation8 + $0x1f4] sm:$0xf]
        %v4170 = vld [vmem:[#allocation8 + $0x1f8] sm:$0xff]
        %v4171 = vld [vmem:[#allocation8 + $0x200] sm:$0xf]
        %v4172 = vld [vmem:[#allocation8 + $0x204] sm:$0xff]
        %v4173 = vld [vmem:[#allocation8 + $0x20c] sm:$0xf]
        %v4174 = vld [vmem:[#allocation8 + $0x210] sm:$0xff]
        %v4175 = vld [vmem:[#allocation8 + $0x218] sm:$0xf]
        %v4176 = vld [vmem:[#allocation8 + $0x21c] sm:$0xff]
        %v4177 = vld [vmem:[#allocation8 + $0x224] sm:$0xf]
        %v4178 = vld [vmem:[#allocation8 + $0x228] sm:$0xff]
        %v4179 = vld [vmem:[#allocation8 + $0x230] sm:$0xf]
        %v4180 = vld [vmem:[#allocation8 + $0x234] sm:$0xff]
        %v4181 = vld [vmem:[#allocation8 + $0x23c] sm:$0xf]
        %v4182 = vld [vmem:[#allocation8 + $0x240] sm:$0xff]
        %v4183 = vld [vmem:[#allocation8 + $0x248] sm:$0xf]
        %v4184 = vld [vmem:[#allocation8 + $0x24c] sm:$0xff]
        %v4185 = vld [vmem:[#allocation8 + $0x254] sm:$0xf]
        %v4186 = vld [vmem:[#allocation8 + $0x258] sm:$0xff]
        %v4187 = vld [vmem:[#allocation8 + $0x260] sm:$0xf]
        %v4188 = vld [vmem:[#allocation8 + $0x264] sm:$0xff]
        %v4189 = vld [vmem:[#allocation8 + $0x26c] sm:$0xf]
        %v4190 = vld [vmem:[#allocation8 + $0x270] sm:$0xff]
        %v4191 = vld [vmem:[#allocation8 + $0x278] sm:$0xf]
        %v4192 = vld [vmem:[#allocation8 + $0x27c] sm:$0xff]
        %v4193 = vld [vmem:[#allocation8 + $0x284] sm:$0xf]
        %v4194 = vld [vmem:[#allocation8 + $0x288] sm:$0xff]
        %v4195 = vld [vmem:[#allocation8 + $0x290] sm:$0xf]
        %v4196 = vld [vmem:[#allocation8 + $0x294] sm:$0xff]
        %v4197 = vld [vmem:[#allocation8 + $0x29c] sm:$0xf]
        %v4198 = vld [vmem:[#allocation8 + $0x2a0] sm:$0xff]
        %v4199 = vld [vmem:[#allocation8 + $0x2a8] sm:$0xf]
        %v4200 = vld [vmem:[#allocation8 + $0x2ac] sm:$0xff]
        %v4201 = vld [vmem:[#allocation8 + $0x2b4] sm:$0xf]
        %v4202 = vld [vmem:[#allocation8 + $0x2b8] sm:$0xff]
        %v4203 = vld [vmem:[#allocation8 + $0x2c0] sm:$0xf]
        %v4204 = vld [vmem:[#allocation8 + $0x2c4] sm:$0xff]
        %v4205 = vld [vmem:[#allocation8 + $0x2cc] sm:$0xf]
        %v4206 = vld [vmem:[#allocation8 + $0x2d0] sm:$0xff]
        %v4207 = vld [vmem:[#allocation8 + $0x2d8] sm:$0xf]
        %v4208 = vld [vmem:[#allocation8 + $0x2dc] sm:$0xff]
        %v4209 = vld [vmem:[#allocation8 + $0x2e4] sm:$0xf]
        %v4210 = vld [vmem:[#allocation8 + $0x2e8] sm:$0xff]
        %v4211 = vld [vmem:[#allocation8 + $0x2f0] sm:$0xf]
        %v4212 = vld [vmem:[#allocation8 + $0x2f4] sm:$0xff]
        %v4213 = vld [vmem:[#allocation8 + $0x2fc] sm:$0xf]
        %v4214 = vld [vmem:[#allocation10] sm:$0x7]
        %v4216 = vlaneseq
        %v4217 = vshrl.u32 %v4216, 7
        %v4218 = vsub.s32 0, %v4217
        %v4219 = vrot.slane %v4214, %v4218
        %v4220 = vlaneseq
        %v4221 = vshrl.u32 %v4220, 7
        %v4222 = vsub.s32 1, %v4221
        %v4223 = vrot.slane %v4214, %v4222
        %v4224 = vlaneseq
        %v4225 = vshrl.u32 %v4224, 7
        %v4226 = vsub.s32 2, %v4225
        %v4227 = vrot.slane %v4214, %v4226
        %v4359 = vunpack.c.l.b16 %v4086
        %v4360 = vunpack.c.h.b16 %v4086
        %v4361 = vunpack.c.l.b16 %v4087
        %v4362 = vunpack.c.l.b16 %v4088
        %v4363 = vunpack.c.h.b16 %v4088
        %v4364 = vunpack.c.l.b16 %v4089
        %v4365 = vunpack.c.l.b16 %v4090
        %v4366 = vunpack.c.h.b16 %v4090
        %v4367 = vunpack.c.l.b16 %v4091
        %v4368 = vunpack.c.l.b16 %v4092
        %v4369 = vunpack.c.h.b16 %v4092
        %v4370 = vunpack.c.l.b16 %v4093
        %v4371 = vunpack.c.l.b16 %v4094
        %v4372 = vunpack.c.h.b16 %v4094
        %v4373 = vunpack.c.l.b16 %v4095
        %v4374 = vunpack.c.l.b16 %v4096
        %v4375 = vunpack.c.h.b16 %v4096
        %v4376 = vunpack.c.l.b16 %v4097
        %v4377 = vunpack.c.l.b16 %v4098
        %v4378 = vunpack.c.h.b16 %v4098
        %v4379 = vunpack.c.l.b16 %v4099
        %v4380 = vunpack.c.l.b16 %v4100
        %v4381 = vunpack.c.h.b16 %v4100
        %v4382 = vunpack.c.l.b16 %v4101
        %v4383 = vunpack.c.l.b16 %v4102
        %v4384 = vunpack.c.h.b16 %v4102
        %v4385 = vunpack.c.l.b16 %v4103
        %v4386 = vunpack.c.l.b16 %v4104
        %v4387 = vunpack.c.h.b16 %v4104
        %v4388 = vunpack.c.l.b16 %v4105
        %v4389 = vunpack.c.l.b16 %v4106
        %v4390 = vunpack.c.h.b16 %v4106
        %v4391 = vunpack.c.l.b16 %v4107
        %v4392 = vunpack.c.l.b16 %v4108
        %v4393 = vunpack.c.h.b16 %v4108
        %v4394 = vunpack.c.l.b16 %v4109
        %v4395 = vunpack.c.l.b16 %v4110
        %v4396 = vunpack.c.h.b16 %v4110
        %v4397 = vunpack.c.l.b16 %v4111
        %v4398 = vunpack.c.l.b16 %v4112
        %v4399 = vunpack.c.h.b16 %v4112
        %v4400 = vunpack.c.l.b16 %v4113
        %v4401 = vunpack.c.l.b16 %v4114
        %v4402 = vunpack.c.h.b16 %v4114
        %v4403 = vunpack.c.l.b16 %v4115
        %v4404 = vunpack.c.l.b16 %v4116
        %v4405 = vunpack.c.h.b16 %v4116
        %v4406 = vunpack.c.l.b16 %v4117
        %v4407 = vunpack.c.l.b16 %v4118
        %v4408 = vunpack.c.h.b16 %v4118
        %v4409 = vunpack.c.l.b16 %v4119
        %v4410 = vunpack.c.l.b16 %v4120
        %v4411 = vunpack.c.h.b16 %v4120
        %v4412 = vunpack.c.l.b16 %v4121
        %v4413 = vunpack.c.l.b16 %v4122
        %v4414 = vunpack.c.h.b16 %v4122
        %v4415 = vunpack.c.l.b16 %v4123
        %v4416 = vunpack.c.l.b16 %v4124
        %v4417 = vunpack.c.h.b16 %v4124
        %v4418 = vunpack.c.l.b16 %v4125
        %v4419 = vunpack.c.l.b16 %v4126
        %v4420 = vunpack.c.h.b16 %v4126
        %v4421 = vunpack.c.l.b16 %v4127
        %v4422 = vunpack.c.l.b16 %v4128
        %v4423 = vunpack.c.h.b16 %v4128
        %v4424 = vunpack.c.l.b16 %v4129
        %v4425 = vunpack.c.l.b16 %v4130
        %v4426 = vunpack.c.h.b16 %v4130
        %v4427 = vunpack.c.l.b16 %v4131
        %v4428 = vunpack.c.l.b16 %v4132
        %v4429 = vunpack.c.h.b16 %v4132
        %v4430 = vunpack.c.l.b16 %v4133
        %v4431 = vunpack.c.l.b16 %v4134
        %v4432 = vunpack.c.h.b16 %v4134
        %v4433 = vunpack.c.l.b16 %v4135
        %v4434 = vunpack.c.l.b16 %v4136
        %v4435 = vunpack.c.h.b16 %v4136
        %v4436 = vunpack.c.l.b16 %v4137
        %v4437 = vunpack.c.l.b16 %v4138
        %v4438 = vunpack.c.h.b16 %v4138
        %v4439 = vunpack.c.l.b16 %v4139
        %v4440 = vunpack.c.l.b16 %v4140
        %v4441 = vunpack.c.h.b16 %v4140
        %v4442 = vunpack.c.l.b16 %v4141
        %v4443 = vunpack.c.l.b16 %v4142
        %v4444 = vunpack.c.h.b16 %v4142
        %v4445 = vunpack.c.l.b16 %v4143
        %v4446 = vunpack.c.l.b16 %v4144
        %v4447 = vunpack.c.h.b16 %v4144
        %v4448 = vunpack.c.l.b16 %v4145
        %v4449 = vunpack.c.l.b16 %v4146
        %v4450 = vunpack.c.h.b16 %v4146
        %v4451 = vunpack.c.l.b16 %v4147
        %v4452 = vunpack.c.l.b16 %v4148
        %v4453 = vunpack.c.h.b16 %v4148
        %v4454 = vunpack.c.l.b16 %v4149
        %v4455 = vunpack.c.l.b16 %v4150
        %v4456 = vunpack.c.h.b16 %v4150
        %v4457 = vunpack.c.l.b16 %v4151
        %v4458 = vunpack.c.l.b16 %v4152
        %v4459 = vunpack.c.h.b16 %v4152
        %v4460 = vunpack.c.l.b16 %v4153
        %v4461 = vunpack.c.l.b16 %v4154
        %v4462 = vunpack.c.h.b16 %v4154
        %v4463 = vunpack.c.l.b16 %v4155
        %v4464 = vunpack.c.l.b16 %v4156
        %v4465 = vunpack.c.h.b16 %v4156
        %v4466 = vunpack.c.l.b16 %v4157
        %v4467 = vunpack.c.l.b16 %v4158
        %v4468 = vunpack.c.h.b16 %v4158
        %v4469 = vunpack.c.l.b16 %v4159
        %v4470 = vunpack.c.l.b16 %v4160
        %v4471 = vunpack.c.h.b16 %v4160
        %v4472 = vunpack.c.l.b16 %v4161
        %v4473 = vunpack.c.l.b16 %v4162
        %v4474 = vunpack.c.h.b16 %v4162
        %v4475 = vunpack.c.l.b16 %v4163
        %v4476 = vunpack.c.l.b16 %v4164
        %v4477 = vunpack.c.h.b16 %v4164
        %v4478 = vunpack.c.l.b16 %v4165
        %v4479 = vunpack.c.l.b16 %v4166
        %v4480 = vunpack.c.h.b16 %v4166
        %v4481 = vunpack.c.l.b16 %v4167
        %v4482 = vunpack.c.l.b16 %v4168
        %v4483 = vunpack.c.h.b16 %v4168
        %v4484 = vunpack.c.l.b16 %v4169
        %v4485 = vunpack.c.l.b16 %v4170
        %v4486 = vunpack.c.h.b16 %v4170
        %v4487 = vunpack.c.l.b16 %v4171
        %v4488 = vunpack.c.l.b16 %v4172
        %v4489 = vunpack.c.h.b16 %v4172
        %v4490 = vunpack.c.l.b16 %v4173
        %v4491 = vunpack.c.l.b16 %v4174
        %v4492 = vunpack.c.h.b16 %v4174
        %v4493 = vunpack.c.l.b16 %v4175
        %v4494 = vunpack.c.l.b16 %v4176
        %v4495 = vunpack.c.h.b16 %v4176
        %v4496 = vunpack.c.l.b16 %v4177
        %v4497 = vunpack.c.l.b16 %v4178
        %v4498 = vunpack.c.h.b16 %v4178
        %v4499 = vunpack.c.l.b16 %v4179
        %v4500 = vunpack.c.l.b16 %v4180
        %v4501 = vunpack.c.h.b16 %v4180
        %v4502 = vunpack.c.l.b16 %v4181
        %v4503 = vunpack.c.l.b16 %v4182
        %v4504 = vunpack.c.h.b16 %v4182
        %v4505 = vunpack.c.l.b16 %v4183
        %v4506 = vunpack.c.l.b16 %v4184
        %v4507 = vunpack.c.h.b16 %v4184
        %v4508 = vunpack.c.l.b16 %v4185
        %v4509 = vunpack.c.l.b16 %v4186
        %v4510 = vunpack.c.h.b16 %v4186
        %v4511 = vunpack.c.l.b16 %v4187
        %v4512 = vunpack.c.l.b16 %v4188
        %v4513 = vunpack.c.h.b16 %v4188
        %v4514 = vunpack.c.l.b16 %v4189
        %v4515 = vunpack.c.l.b16 %v4190
        %v4516 = vunpack.c.h.b16 %v4190
        %v4517 = vunpack.c.l.b16 %v4191
        %v4518 = vunpack.c.l.b16 %v4192
        %v4519 = vunpack.c.h.b16 %v4192
        %v4520 = vunpack.c.l.b16 %v4193
        %v4521 = vunpack.c.l.b16 %v4194
        %v4522 = vunpack.c.h.b16 %v4194
        %v4523 = vunpack.c.l.b16 %v4195
        %v4524 = vunpack.c.l.b16 %v4196
        %v4525 = vunpack.c.h.b16 %v4196
        %v4526 = vunpack.c.l.b16 %v4197
        %v4527 = vunpack.c.l.b16 %v4198
        %v4528 = vunpack.c.h.b16 %v4198
        %v4529 = vunpack.c.l.b16 %v4199
        %v4530 = vunpack.c.l.b16 %v4200
        %v4531 = vunpack.c.h.b16 %v4200
        %v4532 = vunpack.c.l.b16 %v4201
        %v4533 = vunpack.c.l.b16 %v4202
        %v4534 = vunpack.c.h.b16 %v4202
        %v4535 = vunpack.c.l.b16 %v4203
        %v4536 = vunpack.c.l.b16 %v4204
        %v4537 = vunpack.c.h.b16 %v4204
        %v4538 = vunpack.c.l.b16 %v4205
        %v4539 = vunpack.c.l.b16 %v4206
        %v4540 = vunpack.c.h.b16 %v4206
        %v4541 = vunpack.c.l.b16 %v4207
        %v4542 = vunpack.c.l.b16 %v4208
        %v4543 = vunpack.c.h.b16 %v4208
        %v4544 = vunpack.c.l.b16 %v4209
        %v4545 = vunpack.c.l.b16 %v4210
        %v4546 = vunpack.c.h.b16 %v4210
        %v4547 = vunpack.c.l.b16 %v4211
        %v4548 = vunpack.c.l.b16 %v4212
        %v4549 = vunpack.c.h.b16 %v4212
        %v4550 = vunpack.c.l.b16 %v4213
        %v4551 = vpack.c.b16 %v4362, %v4359
        %v4552 = vpack.c.b16 %v4363, %v4360
        %v4553 = vpack.c.b16 %v4364, %v4361
        %v4554 = vpack.c.b16 %v4368, %v4365
        %v4555 = vpack.c.b16 %v4369, %v4366
        %v4556 = vpack.c.b16 %v4370, %v4367
        %v4557 = vpack.c.b16 %v4374, %v4371
        %v4558 = vpack.c.b16 %v4375, %v4372
        %v4559 = vpack.c.b16 %v4376, %v4373
        %v4560 = vpack.c.b16 %v4380, %v4377
        %v4561 = vpack.c.b16 %v4381, %v4378
        %v4562 = vpack.c.b16 %v4382, %v4379
        %v4563 = vpack.c.b16 %v4386, %v4383
        %v4564 = vpack.c.b16 %v4387, %v4384
        %v4565 = vpack.c.b16 %v4388, %v4385
        %v4566 = vpack.c.b16 %v4392, %v4389
        %v4567 = vpack.c.b16 %v4393, %v4390
        %v4568 = vpack.c.b16 %v4394, %v4391
        %v4569 = vpack.c.b16 %v4398, %v4395
        %v4570 = vpack.c.b16 %v4399, %v4396
        %v4571 = vpack.c.b16 %v4400, %v4397
        %v4572 = vpack.c.b16 %v4404, %v4401
        %v4573 = vpack.c.b16 %v4405, %v4402
        %v4574 = vpack.c.b16 %v4406, %v4403
        %v4575 = vpack.c.b16 %v4410, %v4407
        %v4576 = vpack.c.b16 %v4411, %v4408
        %v4577 = vpack.c.b16 %v4412, %v4409
        %v4578 = vpack.c.b16 %v4416, %v4413
        %v4579 = vpack.c.b16 %v4417, %v4414
        %v4580 = vpack.c.b16 %v4418, %v4415
        %v4581 = vpack.c.b16 %v4422, %v4419
        %v4582 = vpack.c.b16 %v4423, %v4420
        %v4583 = vpack.c.b16 %v4424, %v4421
        %v4584 = vpack.c.b16 %v4428, %v4425
        %v4585 = vpack.c.b16 %v4429, %v4426
        %v4586 = vpack.c.b16 %v4430, %v4427
        %v4587 = vpack.c.b16 %v4434, %v4431
        %v4588 = vpack.c.b16 %v4435, %v4432
        %v4589 = vpack.c.b16 %v4436, %v4433
        %v4590 = vpack.c.b16 %v4440, %v4437
        %v4591 = vpack.c.b16 %v4441, %v4438
        %v4592 = vpack.c.b16 %v4442, %v4439
        %v4593 = vpack.c.b16 %v4446, %v4443
        %v4594 = vpack.c.b16 %v4447, %v4444
        %v4595 = vpack.c.b16 %v4448, %v4445
        %v4596 = vpack.c.b16 %v4452, %v4449
        %v4597 = vpack.c.b16 %v4453, %v4450
        %v4598 = vpack.c.b16 %v4454, %v4451
        %v4599 = vpack.c.b16 %v4458, %v4455
        %v4600 = vpack.c.b16 %v4459, %v4456
        %v4601 = vpack.c.b16 %v4460, %v4457
        %v4602 = vpack.c.b16 %v4464, %v4461
        %v4603 = vpack.c.b16 %v4465, %v4462
        %v4604 = vpack.c.b16 %v4466, %v4463
        %v4605 = vpack.c.b16 %v4470, %v4467
        %v4606 = vpack.c.b16 %v4471, %v4468
        %v4607 = vpack.c.b16 %v4472, %v4469
        %v4608 = vpack.c.b16 %v4476, %v4473
        %v4609 = vpack.c.b16 %v4477, %v4474
        %v4610 = vpack.c.b16 %v4478, %v4475
        %v4611 = vpack.c.b16 %v4482, %v4479
        %v4612 = vpack.c.b16 %v4483, %v4480
        %v4613 = vpack.c.b16 %v4484, %v4481
        %v4614 = vpack.c.b16 %v4488, %v4485
        %v4615 = vpack.c.b16 %v4489, %v4486
        %v4616 = vpack.c.b16 %v4490, %v4487
        %v4617 = vpack.c.b16 %v4494, %v4491
        %v4618 = vpack.c.b16 %v4495, %v4492
        %v4619 = vpack.c.b16 %v4496, %v4493
        %v4620 = vpack.c.b16 %v4500, %v4497
        %v4621 = vpack.c.b16 %v4501, %v4498
        %v4622 = vpack.c.b16 %v4502, %v4499
        %v4623 = vpack.c.b16 %v4506, %v4503
        %v4624 = vpack.c.b16 %v4507, %v4504
        %v4625 = vpack.c.b16 %v4508, %v4505
        %v4626 = vpack.c.b16 %v4512, %v4509
        %v4627 = vpack.c.b16 %v4513, %v4510
        %v4628 = vpack.c.b16 %v4514, %v4511
        %v4629 = vpack.c.b16 %v4518, %v4515
        %v4630 = vpack.c.b16 %v4519, %v4516
        %v4631 = vpack.c.b16 %v4520, %v4517
        %v4632 = vpack.c.b16 %v4524, %v4521
        %v4633 = vpack.c.b16 %v4525, %v4522
        %v4634 = vpack.c.b16 %v4526, %v4523
        %v4635 = vpack.c.b16 %v4530, %v4527
        %v4636 = vpack.c.b16 %v4531, %v4528
        %v4637 = vpack.c.b16 %v4532, %v4529
        %v4638 = vpack.c.b16 %v4536, %v4533
        %v4639 = vpack.c.b16 %v4537, %v4534
        %v4640 = vpack.c.b16 %v4538, %v4535
        %v4641 = vpack.c.b16 %v4542, %v4539
        %v4642 = vpack.c.b16 %v4543, %v4540
        %v4643 = vpack.c.b16 %v4544, %v4541
        %v4644 = vpack.c.b16 %v4548, %v4545
        %v4645 = vpack.c.b16 %v4549, %v4546
        %v4646 = vpack.c.b16 %v4550, %v4547
        %4743 = vmatprep.subr.bf16.mxu0 %v4552
        %4744 = vmatpush1.bf16.msra.mxu0 %v4551
        %4745 = vmatprep.subr.bf16.mxu0 %v4555
        %4746 = vmatpush1.bf16.msra.mxu0 %v4554
        %4747 = vmatprep.subr.bf16.mxu0 %v4558
        %4748 = vmatpush1.bf16.msra.mxu0 %v4557
        %4749 = vmatprep.subr.bf16.mxu0 %v4561
        %4750 = vmatpush1.bf16.msra.mxu0 %v4560
        %4751 = vmatprep.subr.bf16.mxu0 %v4564
        %4752 = vmatpush1.bf16.msra.mxu0 %v4563
        %4753 = vmatprep.subr.bf16.mxu0 %v4567
        %4754 = vmatpush1.bf16.msra.mxu0 %v4566
        %4755 = vmatprep.subr.bf16.mxu0 %v4570
        %4756 = vmatpush1.bf16.msra.mxu0 %v4569
        %4757 = vmatprep.subr.bf16.mxu0 %v4573
        %4758 = vmatpush1.bf16.msra.mxu0 %v4572
        %4759 = vmatprep.subr.bf16.mxu0 %v4576
        %4760 = vmatpush1.bf16.msra.mxu0 %v4575
        %4761 = vmatprep.subr.bf16.mxu0 %v4579
        %4762 = vmatpush1.bf16.msra.mxu0 %v4578
        %4763 = vmatprep.subr.bf16.mxu0 %v4582
        %4764 = vmatpush1.bf16.msra.mxu0 %v4581
        %4765 = vmatprep.subr.bf16.mxu0 %v4585
        %4766 = vmatpush1.bf16.msra.mxu0 %v4584
        %4767 = vmatprep.subr.bf16.mxu0 %v4588
        %4768 = vmatpush1.bf16.msra.mxu0 %v4587
        %4769 = vmatprep.subr.bf16.mxu0 %v4591
        %4770 = vmatpush1.bf16.msra.mxu0 %v4590
        %4771 = vmatprep.subr.bf16.mxu0 %v4594
        %4772 = vmatpush1.bf16.msra.mxu0 %v4593
        %4773 = vmatprep.subr.bf16.mxu0 %v4597
        %4774 = vmatpush1.bf16.msra.mxu0 %v4596
        %4775 = vmatprep.mubr.bf16.mxu0 %v4083
        %4776 = vmatmul.mubr.bf16.gmra.mrb[0].mxu0 %v4082
        %v4777 = vpop.f32.mrb[0].mxu0
        %v4778 = vadd.f32 %v4219, %v4777
        %v4779 = vpop.f32.mrb[0].mxu0
        %v4780 = vadd.f32 %v4223, %v4779
        %v4781 = vpop.f32.mrb[0].mxu0
        %v4782 = vpop.f32.mrb[0].mxu0
        %4783 = vdwg.mxu0
        %4784 = vmatprep.subr.bf16.mxu0 %v4600
        %4785 = vmatpush1.bf16.msra.mxu0 %v4599
        %4786 = vmatprep.subr.bf16.mxu0 %v4603
        %4787 = vmatpush1.bf16.msra.mxu0 %v4602
        %4788 = vmatprep.subr.bf16.mxu0 %v4606
        %4789 = vmatpush1.bf16.msra.mxu0 %v4605
        %4790 = vmatprep.subr.bf16.mxu0 %v4609
        %4791 = vmatpush1.bf16.msra.mxu0 %v4608
        %4792 = vmatprep.subr.bf16.mxu0 %v4612
        %4793 = vmatpush1.bf16.msra.mxu0 %v4611
        %4794 = vmatprep.subr.bf16.mxu0 %v4615
        %4795 = vmatpush1.bf16.msra.mxu0 %v4614
        %4796 = vmatprep.subr.bf16.mxu0 %v4618
        %4797 = vmatpush1.bf16.msra.mxu0 %v4617
        %4798 = vmatprep.subr.bf16.mxu0 %v4621
        %4799 = vmatpush1.bf16.msra.mxu0 %v4620
        %4800 = vmatprep.subr.bf16.mxu0 %v4624
        %4801 = vmatpush1.bf16.msra.mxu0 %v4623
        %4802 = vmatprep.subr.bf16.mxu0 %v4627
        %4803 = vmatpush1.bf16.msra.mxu0 %v4626
        %4804 = vmatprep.subr.bf16.mxu0 %v4630
        %4805 = vmatpush1.bf16.msra.mxu0 %v4629
        %4806 = vmatprep.subr.bf16.mxu0 %v4633
        %4807 = vmatpush1.bf16.msra.mxu0 %v4632
        %4808 = vmatprep.subr.bf16.mxu0 %v4636
        %4809 = vmatpush1.bf16.msra.mxu0 %v4635
        %4810 = vmatprep.subr.bf16.mxu0 %v4639
        %4811 = vmatpush1.bf16.msra.mxu0 %v4638
        %4812 = vmatprep.subr.bf16.mxu0 %v4642
        %4813 = vmatpush1.bf16.msra.mxu0 %v4641
        %4814 = vmatprep.subr.bf16.mxu0 %v4645
        %4815 = vmatpush1.bf16.msra.mxu0 %v4644
        %4816 = vmatprep.mubr.bf16.mxu0 %v4085
        %4817 = vmatmul.mubr.bf16.gmra.mrb[0].mxu0 %v4084
        %v4818 = vpop.f32.mrb[0].mxu0
        %v4819 = vadd.f32 %v4778, %v4818
        %v4820 = vpop.f32.mrb[0].mxu0
        %v4821 = vadd.f32 %v4780, %v4820
        %v4822 = vpop.f32.mrb[0].mxu0
        %v4823 = vpop.f32.mrb[0].mxu0
        %4824 = vdwg.mxu0
        %4825 = vmatprep.subr.bf16.mxu0 0
        %4826 = vmatpush1.bf16.msra.mxu0 %v4553
        %4827 = vmatprep.subr.bf16.mxu0 0
        %4828 = vmatpush1.bf16.msra.mxu0 %v4556
        %4829 = vmatprep.subr.bf16.mxu0 0
        %4830 = vmatpush1.bf16.msra.mxu0 %v4559
        %4831 = vmatprep.subr.bf16.mxu0 0
        %4832 = vmatpush1.bf16.msra.mxu0 %v4562
        %4833 = vmatprep.subr.bf16.mxu0 0
        %4834 = vmatpush1.bf16.msra.mxu0 %v4565
        %4835 = vmatprep.subr.bf16.mxu0 0
        %4836 = vmatpush1.bf16.msra.mxu0 %v4568
        %4837 = vmatprep.subr.bf16.mxu0 0
        %4838 = vmatpush1.bf16.msra.mxu0 %v4571
        %4839 = vmatprep.subr.bf16.mxu0 0
        %4840 = vmatpush1.bf16.msra.mxu0 %v4574
        %4841 = vmatprep.subr.bf16.mxu0 0
        %4842 = vmatpush1.bf16.msra.mxu0 %v4577
        %4843 = vmatprep.subr.bf16.mxu0 0
        %4844 = vmatpush1.bf16.msra.mxu0 %v4580
        %4845 = vmatprep.subr.bf16.mxu0 0
        %4846 = vmatpush1.bf16.msra.mxu0 %v4583
        %4847 = vmatprep.subr.bf16.mxu0 0
        %4848 = vmatpush1.bf16.msra.mxu0 %v4586
        %4849 = vmatprep.subr.bf16.mxu0 0
        %4850 = vmatpush1.bf16.msra.mxu0 %v4589
        %4851 = vmatprep.subr.bf16.mxu0 0
        %4852 = vmatpush1.bf16.msra.mxu0 %v4592
        %4853 = vmatprep.subr.bf16.mxu0 0
        %4854 = vmatpush1.bf16.msra.mxu0 %v4595
        %4855 = vmatprep.subr.bf16.mxu0 0
        %4856 = vmatpush1.bf16.msra.mxu0 %v4598
        %4857 = vmatprep.mubr.bf16.mxu0 %v4083
        %4858 = vmatmul.mubr.bf16.gmra.mrb[0].mxu0 %v4082
        %v4859 = vpop.f32.mrb[0].mxu0
        %v4860 = vadd.f32 %v4227, %v4859
        %v4861 = vpop.f32.mrb[0].mxu0
        %v4862 = vpop.f32.mrb[0].mxu0
        %v4863 = vpop.f32.mrb[0].mxu0
        %4864 = vdwg.mxu0
        %4865 = vmatprep.subr.bf16.mxu0 0
        %4866 = vmatpush1.bf16.msra.mxu0 %v4601
        %4867 = vmatprep.subr.bf16.mxu0 0
        %4868 = vmatpush1.bf16.msra.mxu0 %v4604
        %4869 = vmatprep.subr.bf16.mxu0 0
        %4870 = vmatpush1.bf16.msra.mxu0 %v4607
        %4871 = vmatprep.subr.bf16.mxu0 0
        %4872 = vmatpush1.bf16.msra.mxu0 %v4610
        %4873 = vmatprep.subr.bf16.mxu0 0
        %4874 = vmatpush1.bf16.msra.mxu0 %v4613
        %4875 = vmatprep.subr.bf16.mxu0 0
        %4876 = vmatpush1.bf16.msra.mxu0 %v4616
        %4877 = vmatprep.subr.bf16.mxu0 0
        %4878 = vmatpush1.bf16.msra.mxu0 %v4619
        %4879 = vmatprep.subr.bf16.mxu0 0
        %4880 = vmatpush1.bf16.msra.mxu0 %v4622
        %4881 = vmatprep.subr.bf16.mxu0 0
        %4882 = vmatpush1.bf16.msra.mxu0 %v4625
        %4883 = vmatprep.subr.bf16.mxu0 0
        %4884 = vmatpush1.bf16.msra.mxu0 %v4628
        %4885 = vmatprep.subr.bf16.mxu0 0
        %4886 = vmatpush1.bf16.msra.mxu0 %v4631
        %4887 = vmatprep.subr.bf16.mxu0 0
        %4888 = vmatpush1.bf16.msra.mxu0 %v4634
        %4889 = vmatprep.subr.bf16.mxu0 0
        %4890 = vmatpush1.bf16.msra.mxu0 %v4637
        %4891 = vmatprep.subr.bf16.mxu0 0
        %4892 = vmatpush1.bf16.msra.mxu0 %v4640
        %4893 = vmatprep.subr.bf16.mxu0 0
        %4894 = vmatpush1.bf16.msra.mxu0 %v4643
        %4895 = vmatprep.subr.bf16.mxu0 0
        %4896 = vmatpush1.bf16.msra.mxu0 %v4646
        %4897 = vmatprep.mubr.bf16.mxu0 %v4085
        %4898 = vmatmul.mubr.bf16.gmra.mrb[0].mxu0 %v4084
        %v4899 = vpop.f32.mrb[0].mxu0
        %v4900 = vadd.f32 %v4860, %v4899
        %v4901 = vpop.f32.mrb[0].mxu0
        %v4902 = vpop.f32.mrb[0].mxu0
        %v4903 = vpop.f32.mrb[0].mxu0
        %4904 = vdwg.mxu0
        %4905 = vst [vmem:[%s294] sm:$0xff] %v4819
        %4906 = vst [vmem:[%s294 + $0x8] sm:$0xff] %v4821
        %4907 = vst [vmem:[%s294 + $0x10] sm:$0xff] %v4900
        %s4908 = sand.u32 %s142, 1
        %s4909 = scalar_lea.sflag [#allocation4], %s4908
        %s4910 = sand.u32 %s142, 1
        %s4911 = smul.addr %s4910, 24
        %s4912 = scalar_lea.vmem [#allocation11], %s4911
        // Predicated region
        $region61: #{tpu_custom_call.1} parent=39 // pred_check
          %p4913 = pneg %p152
        $region62: #{tpu_custom_call.1} parent=39 // pred_check_branch
          %4915 = sbr.rel (%p4913) target = $region64
        $region63: #{tpu_custom_call.1} parent=39 // pred_region
          %s4917 = ssub.s32 384, 384
          %4918 = vsyncadd %s4909, %s4917
          %s4919 = smul.addr %s24, 3
          %s4920 = smul.addr %s4919, 128
          %s4921 = scalar_lea.hbm %s5, %s4920
          %s4923 = sshll.u32 %s4912, 4
          %s4924 = int_to_ptr.vmem [resolvable:$true] %s4923
          %4926 = dma.vmem_to_hbm [thread:$0]  %s4924, 384, %s4921, %s4909
        $region64: #{tpu_custom_call.1} parent=39 // pred_fallthru
          _
      $region40: #{tpu_custom_call.1} parent=5 // pred_fallthru
        _
      %p4927 = scmp.le.s32.totalorder 2, %s19
      // Predicated region
      $region65: #{tpu_custom_call.1} parent=5 // pred_check
        %p4928 = pneg %p4927
      $region66: #{tpu_custom_call.1} parent=5 // pred_check_branch
        %4930 = sbr.rel (%p4928) target = $region68
      $region67: #{tpu_custom_call.1} parent=5 // pred_region
        %s4931 = ssub.s32 %s19, 2
        // Predicated region
        $region69: #{tpu_custom_call.1} parent=67 // pred_check
          %p4932 = pneg %p158
        $region70: #{tpu_custom_call.1} parent=67 // pred_check_branch
          %4934 = sbr.rel (%p4932) target = $region72
        $region71: #{tpu_custom_call.1} parent=67 // pred_region
          %s4935 = sand.u32 %s143, 1
          %s4936 = scalar_lea.sflag [#allocation4], %s4935
          %s4937 = sand.u32 %s143, 1
          %s4938 = smul.addr %s4937, 24
          %s4939 = scalar_lea.vmem [#allocation11], %s4938
          %4940 = dma.done %s4936, 384
        $region72: #{tpu_custom_call.1} parent=67 // pred_fallthru
          _
      $region68: #{tpu_custom_call.1} parent=5 // pred_fallthru
        _
    $region6: #{tpu_custom_call.1} parent=1 // loop_footer
      %s23 = sadd.s32 1, %s19
    $region7: #{tpu_custom_call.1} parent=1 // loop_footer_branch
      %18 = sbr.rel target = $region3
    $region8: #{tpu_custom_call.1} parent=1 // loop_exit
      _
    %4941 = vsyncpa [#allocation3], 1
    %s4942 = scalar_lea.sflag [#allocation3], 1
    %4943 = vsyncpa %s4942, 1
    %4944 = vsyncpa [#allocation6], 1
    %4945 = vsyncpa [#allocation9], 1
    %4946 = vsyncpa [#allocation4], 1
    %s4947 = scalar_lea.sflag [#allocation4], 1
    %4948 = vsyncpa %s4947, 1

</llo_original>
